<compile_context>
chip_gen: v7x
topology: tpu7x:2x2x1
jax: 0.10.0
libtpu: 0.0.40
codegen_flags: <defaults>
</compile_context>

<pallas_src>
import functools

import numpy as np

import jax
import jax.numpy as jnp
from jax.experimental import pallas as pl
from jax.experimental.pallas import tpu as pltpu


def _round_up(x, m):
    return (x + m - 1) // m * m


# ----------------------- Pallas kernels -----------------------

def _gemm_bias_kernel(a_ref, w_ref, shift_ref, o_ref, *, apply_relu):
    # Single-pass GEMM: full K resident, fused BN shift (+ optional ReLU) epilogue.
    y = jnp.dot(a_ref[...], w_ref[...], preferred_element_type=jnp.float32)
    y = y + shift_ref[...]
    if apply_relu:
        y = jnp.maximum(y, 0.0)
    o_ref[...] = y.astype(o_ref.dtype)


def _gemm_bias_skip_kernel(a_ref, w_ref, shift_ref, skip_ref, o_ref, *, apply_relu):
    # Same, with the skip-connection add fused into the epilogue (f32 math).
    y = jnp.dot(a_ref[...], w_ref[...], preferred_element_type=jnp.float32)
    y = y + shift_ref[...] + skip_ref[...].astype(jnp.float32)
    if apply_relu:
        y = jnp.maximum(y, 0.0)
    o_ref[...] = y.astype(o_ref.dtype)


def _choose_tiling(M):
    """Pick tm dividing M with >=2 grid steps (v7x megacore) and tm <= 512."""
    for tm in (512, 256, 128, 64, 32, 16):
        if M % tm == 0 and M // tm >= 2:
            return tm, M
    for tm in (512, 256, 128, 64, 32, 16):
        if M % tm == 0:
            return tm, M
    tm = 256
    return tm, _round_up(M, tm)


def gemm_fused(a, w_pad, shift_pad, skip=None, *, cout, apply_relu):
    """(M, Kp) bf16 patches @ pre-padded (Kp, 128) bf16 weights with fused BN
    shift, optional fused bf16 skip-add and optional ReLU. Returns (M, cout) bf16."""
    M, Kp = a.shape
    _, Np = w_pad.shape
    tm, Mp = _choose_tiling(M)
    if Mp > M:
        a = jnp.pad(a, ((0, Mp - M), (0, 0)))

    inputs = [a, w_pad, shift_pad]
    in_specs = [
        pl.BlockSpec((tm, Kp), lambda i: (i, 0)),   # patches: tile over M, full K
        pl.BlockSpec((Kp, Np), lambda i: (0, 0)),   # weights: resident
        pl.BlockSpec((1, Np), lambda i: (0, 0)),    # BN shift: resident
    ]
    bytes_accessed = (Mp * Kp + Kp * Np + Mp * Np) * 2 + Np * 4
    if skip is None:
        kernel = functools.partial(_gemm_bias_kernel, apply_relu=apply_relu)
    else:
        skip_p = jnp.pad(skip.astype(jnp.bfloat16),
                         ((0, Mp - skip.shape[0]), (0, Np - skip.shape[1])))
        inputs.append(skip_p)
        in_specs.append(pl.BlockSpec((tm, Np), lambda i: (i, 0)))
        kernel = functools.partial(_gemm_bias_skip_kernel, apply_relu=apply_relu)
        bytes_accessed += Mp * Np * 2

    out = pl.pallas_call(
        kernel,
        out_shape=jax.ShapeDtypeStruct((Mp, Np), jnp.bfloat16),
        grid=(Mp // tm,),
        in_specs=in_specs,
        out_specs=pl.BlockSpec((tm, Np), lambda i: (i, 0)),
        compiler_params=pltpu.CompilerParams(dimension_semantics=("parallel",)),
        cost_estimate=pl.CostEstimate(flops=2 * Mp * Kp * Np,
                                      transcendentals=0,
                                      bytes_accessed=bytes_accessed),
    )(*inputs)
    return out[:M, :cout]


# ----------------------- im2col glue (XLA data movement only) -----------------------

def _extract_patches_3d(x, *, k, stride, pad_lo, pad_hi, k_align=16):
    """x: (B, D, H, W, C) bf16 -> patches (B*Do*Ho*Wo, Kp), columns (kd,kh,kw,c)
    with Kp = round_up(k^3*C, k_align) zero-padded inside the concat."""
    B, D, H, W, C = x.shape
    xp = jnp.pad(x, ((0, 0), (pad_lo, pad_hi), (pad_lo, pad_hi), (pad_lo, pad_hi), (0, 0)))
    Dp, Hp, Wp = D + pad_lo + pad_hi, H + pad_lo + pad_hi, W + pad_lo + pad_hi
    Do, Ho, Wo = (Dp - k) // stride + 1, (Hp - k) // stride + 1, (Wp - k) // stride + 1
    cols = []
    for kd in range(k):
        for kh in range(k):
            for kw in range(k):
                sl = xp[:, kd:kd + stride * (Do - 1) + 1:stride,
                           kh:kh + stride * (Ho - 1) + 1:stride,
                           kw:kw + stride * (Wo - 1) + 1:stride, :]
                cols.append(sl)
    K = k * k * k * C
    Kp = _round_up(K, k_align)
    if Kp > K:
        cols.append(jnp.zeros((B, Do, Ho, Wo, Kp - K), x.dtype))
    patches = jnp.concatenate(cols, axis=-1)
    return patches.reshape(B * Do * Ho * Wo, Kp), (B, Do, Ho, Wo)


def conv3d_bn(x, p, *, cout, stride, apply_relu, skip=None):
    a, (B, Do, Ho, Wo) = _extract_patches_3d(x, k=3, stride=stride, pad_lo=1, pad_hi=1)
    skip2d = None if skip is None else skip.reshape(B * Do * Ho * Wo, -1)
    y = gemm_fused(a, p["w"], p["shift"], skip2d, cout=cout, apply_relu=apply_relu)
    return y.reshape(B, Do, Ho, Wo, cout)


def convT3d_bn(x, p, *, cout, apply_relu, skip=None):
    """ConvTranspose3d(k=3, s=2, p=1, output_padding=1) via the stride-parity
    (sub-pixel) decomposition: stride-1 2x2x2 conv producing 8 parity groups of
    cout channels, then depth-to-space.  Skip-add + ReLU fused in the epilogue
    (skip is rearranged into the parity layout first)."""
    B, D, H, W, C = x.shape
    a, _ = _extract_patches_3d(x, k=2, stride=1, pad_lo=0, pad_hi=1)   # (B*D*H*W, 8C)
    skip2d = None
    if skip is not None:
        s = skip.reshape(B, D, 2, H, 2, W, 2, cout)
        s = jnp.transpose(s, (0, 1, 3, 5, 2, 4, 6, 7))
        skip2d = s.reshape(B * D * H * W, 8 * cout)
    y = gemm_fused(a, p["w"], p["shift"], skip2d, cout=8 * cout, apply_relu=apply_relu)
    y = y.reshape(B, D, H, W, 2, 2, 2, cout)
    y = jnp.transpose(y, (0, 1, 4, 2, 5, 3, 6, 7))
    return y.reshape(B, 2 * D, 2 * H, 2 * W, cout)


# ----------------------- deterministic parameters -----------------------

def _bn_affine(key, c, eps=1e-5):
    k1, k2, k3, k4 = jax.random.split(key, 4)
    gamma = 1.0 + 0.1 * jax.random.normal(k1, (c,), jnp.float32)
    beta = 0.1 * jax.random.normal(k2, (c,), jnp.float32)
    mean = 0.1 * jax.random.normal(k3, (c,), jnp.float32)
    var = 0.5 + jax.random.uniform(k4, (c,), jnp.float32)
    scale = gamma / jnp.sqrt(var + eps)
    shift = beta - mean * scale
    return scale, shift


def _pack(w_mat, shift, *, k_align=16):
    """Pre-pad the BN-scaled weight matrix to (Kp, 128) bf16; shift to (1, 128) f32."""
    w_mat = jnp.asarray(w_mat, jnp.float32)
    K, cols = w_mat.shape
    Kp = _round_up(K, k_align)
    Np = _round_up(cols, 128)
    w_pad = jnp.pad(w_mat, ((0, Kp - K), (0, Np - cols))).astype(jnp.bfloat16)
    shift_pad = jnp.pad(jnp.asarray(shift, jnp.float32).reshape(1, -1),
                        ((0, 0), (0, Np - cols)))
    return {"w": w_pad, "shift": shift_pad}


def _conv_params(key, cin, cout):
    kw_, kb = jax.random.split(key)
    w = 0.05 * jax.random.normal(kw_, (cout, cin, 3, 3, 3), jnp.float32)  # PyTorch OIkkk
    scale, shift = _bn_affine(kb, cout)
    w_mat = jnp.transpose(w, (2, 3, 4, 1, 0)).reshape(27 * cin, cout) * scale[None, :]
    return _pack(w_mat, shift)


# k index for (output parity r, tap offset t); None -> structurally zero tap.
_KMAP = {(0, 0): 1, (0, 1): None, (1, 0): 2, (1, 1): 0}


def _convT_parity_matrix(w):
    """w: (Cin, Cout, 3, 3, 3) (BN scale already folded) -> (8*Cin, 8*Cout) with
    rows ordered (td,th,tw,cin) and columns ordered (rd,rh,rw,cout)."""
    w = np.asarray(w)
    cin, cout = w.shape[0], w.shape[1]
    Wm = np.zeros((2, 2, 2, cin, 2, 2, 2, cout), np.float32)
    for td in range(2):
        for th in range(2):
            for tw in range(2):
                for rd in range(2):
                    for rh in range(2):
                        for rw in range(2):
                            kd, kh, kw = _KMAP[(rd, td)], _KMAP[(rh, th)], _KMAP[(rw, tw)]
                            if kd is None or kh is None or kw is None:
                                continue
                            Wm[td, th, tw, :, rd, rh, rw, :] = w[:, :, kd, kh, kw]
    return Wm.reshape(8 * cin, 8 * cout)


def _convT_params(key, cin, cout):
    kw_, kb = jax.random.split(key)
    w = 0.05 * jax.random.normal(kw_, (cin, cout, 3, 3, 3), jnp.float32)  # PyTorch IOkkk
    scale, shift = _bn_affine(kb, cout)
    w_scaled = w * scale[None, :, None, None, None]
    w_mat = _convT_parity_matrix(w_scaled)         # (8*cin, 8*cout)
    shift8 = jnp.tile(shift, 8)                    # replicate over the 8 parity groups
    return _pack(w_mat, shift8)


def make_hourglass_params(key, in_layers):
    keys = jax.random.split(key, 6)
    c = in_layers
    return {
        "conv1": _conv_params(keys[0], c, 2 * c),
        "conv2": _conv_params(keys[1], 2 * c, 2 * c),
        "conv3": _conv_params(keys[2], 2 * c, 2 * c),
        "conv4": _conv_params(keys[3], 2 * c, 2 * c),
        "deconv1": _convT_params(keys[4], 2 * c, 2 * c),
        "deconv2": _convT_params(keys[5], 2 * c, c),
    }


# ----------------------- Hourglass forward -----------------------

def hourglass_forward(params, x_ncdhw, skip1=None, skip2=None):
    c = x_ncdhw.shape[1]          # static channel count
    c2 = 2 * c
    x = jnp.transpose(x_ncdhw, (0, 2, 3, 4, 1)).astype(jnp.bfloat16)  # NCDHW -> NDHWC bf16

    # conv1: conv + BN + ReLU
    out = conv3d_bn(x, params["conv1"], cout=c2, stride=2, apply_relu=True)

    # conv2: conv + BN, (+skip1), ReLU -- skip-add + ReLU fused into the GEMM epilogue
    s1 = None
    if skip1 is not None:
        s1 = jnp.transpose(skip1, (0, 2, 3, 4, 1)).astype(jnp.bfloat16)
    out = conv3d_bn(out, params["conv2"], cout=c2, stride=1, apply_relu=True, skip=s1)
    out_skip1 = out

    # conv3 / conv4: conv + BN + ReLU
    out = conv3d_bn(out, params["conv3"], cout=c2, stride=2, apply_relu=True)
    out = conv3d_bn(out, params["conv4"], cout=c2, stride=1, apply_relu=True)

    # deconv1: convT + BN, (+skip2 | +out_skip1), ReLU -- fused epilogue
    if skip2 is not None:
        s2 = jnp.transpose(skip2, (0, 2, 3, 4, 1)).astype(jnp.bfloat16)
    else:
        s2 = out_skip1
    out = convT3d_bn(out, params["deconv1"], cout=c2, apply_relu=True, skip=s2)
    out_skip2 = out

    # deconv2: convT + BN (no ReLU, no skip)
    out = convT3d_bn(out, params["deconv2"], cout=c, apply_relu=False)

    to_ncdhw = lambda t: jnp.transpose(t, (0, 4, 1, 2, 3)).astype(jnp.float32)
    return to_ncdhw(out), to_ncdhw(out_skip1), to_ncdhw(out_skip2)


if __name__ == "__main__":
    key = jax.random.PRNGKey(0)
    kx, kp = jax.random.split(key)

    in_layers = 4
    x = jax.random.normal(kx, (2, in_layers, 16, 16, 16), jnp.float32)  # NCDHW
    params = make_hourglass_params(kp, in_layers)

    fwd = jax.jit(hourglass_forward)
    out, skip1, skip2 = fwd(params, x)
    jax.block_until_ready((out, skip1, skip2))

    assert out.shape == (2, in_layers, 16, 16, 16)
    assert skip1.shape == (2, 2 * in_layers, 8, 8, 8)
    assert skip2.shape == (2, 2 * in_layers, 8, 8, 8)
    assert bool(jnp.all(jnp.isfinite(out)))
    assert bool(jnp.all(skip1 >= 0)) and bool(jnp.all(skip2 >= 0))  # post-ReLU outputs
    print("KERNEL_OK")
</pallas_src>

<mosaic_0001>
module attributes {stable_mosaic.version = 11 : i64} {
  func.func @_gemm_bias_kernel(%arg0: i32, %arg1: memref<512x112xbf16, #tpu.memory_space<vmem>>, %arg2: memref<112x128xbf16, #tpu.memory_space<vmem>>, %arg3: memref<1x128xf32, #tpu.memory_space<vmem>>, %arg4: memref<512x128xbf16, #tpu.memory_space<vmem>>) attributes {dimension_semantics = [#tpu.dimension_semantics<parallel>], iteration_bounds = array<i64: 2>, scalar_prefetch = 0 : i64, scratch_operands = 0 : i64, tpu.core_type = #tpu.core_type<tc>, window_params = [{transform_indices = @transform_0, window_bounds = array<i64: 512, 112>}, {pipeline_mode = #tpu.pipeline_mode<synchronous>, transform_indices = @transform_1, window_bounds = array<i64: 112, 128>}, {pipeline_mode = #tpu.pipeline_mode<synchronous>, transform_indices = @transform_2, window_bounds = array<i64: 1, 128>}, {transform_indices = @transform_3, window_bounds = array<i64: 512, 128>}]} {
    %c0 = arith.constant 0 : index
    %c0_0 = arith.constant 0 : index
    %0 = vector.load %arg1[%c0, %c0_0] : memref<512x112xbf16, #tpu.memory_space<vmem>>, vector<512x112xbf16>
    %c0_1 = arith.constant 0 : index
    %c0_2 = arith.constant 0 : index
    %1 = vector.load %arg2[%c0_1, %c0_2] : memref<112x128xbf16, #tpu.memory_space<vmem>>, vector<112x128xbf16>
    %cst = arith.constant dense<0.000000e+00> : vector<512x128xf32>
    %2 = tpu.matmul %0, %1, %cst {dimension_numbers = #tpu.dot_dimension_numbers<[1], [0], [0], [1], [0, 0, 1, 1], [], []>} : vector<512x112xbf16>, vector<112x128xbf16>, vector<512x128xf32> -> vector<512x128xf32>
    %c0_3 = arith.constant 0 : index
    %c0_4 = arith.constant 0 : index
    %3 = vector.load %arg3[%c0_3, %c0_4] : memref<1x128xf32, #tpu.memory_space<vmem>>, vector<1x128xf32>
    %4 = vector.broadcast %3 : vector<1x128xf32> to vector<512x128xf32>
    %5 = arith.addf %2, %4 : vector<512x128xf32>
    %cst_5 = arith.constant 0.000000e+00 : f32
    %6 = vector.broadcast %cst_5 : f32 to vector<512x128xf32>
    %7 = arith.maximumf %5, %6 : vector<512x128xf32>
    %8 = arith.truncf %7 : vector<512x128xf32> to vector<512x128xbf16>
    %c0_6 = arith.constant 0 : index
    %c0_7 = arith.constant 0 : index
    %9 = vector.load %arg4[%c0_6, %c0_7] : memref<512x128xbf16, #tpu.memory_space<vmem>>, vector<512x128xbf16>
    tpu.vector_store %arg4[%c0_6, %c0_7], %8 {strides = array<i32>} : memref<512x128xbf16, #tpu.memory_space<vmem>>, vector<512x128xbf16>,
    return
  }
  func.func @transform_0(%arg0: i32) -> (i32, i32) {
    %c0_i32 = arith.constant 0 : i32
    %c0_i32_0 = arith.constant 0 : i32
    return %arg0, %c0_i32 : i32, i32
  }
  func.func @transform_1(%arg0: i32) -> (i32, i32) {
    %c0_i32 = arith.constant 0 : i32
    %c0_i32_0 = arith.constant 0 : i32
    %c0_i32_1 = arith.constant 0 : i32
    return %c0_i32, %c0_i32_0 : i32, i32
  }
  func.func @transform_2(%arg0: i32) -> (i32, i32) {
    %c0_i32 = arith.constant 0 : i32
    %c0_i32_0 = arith.constant 0 : i32
    %c0_i32_1 = arith.constant 0 : i32
    return %c0_i32, %c0_i32_0 : i32, i32
  }
  func.func @transform_3(%arg0: i32) -> (i32, i32) {
    %c0_i32 = arith.constant 0 : i32
    %c0_i32_0 = arith.constant 0 : i32
    return %arg0, %c0_i32 : i32, i32
  }
}

module attributes {stable_mosaic.version = 11 : i64} {
  func.func @_gemm_bias_kernel(%arg0: i32, %arg1: memref<512x224xbf16, #tpu.memory_space<vmem>>, %arg2: memref<224x128xbf16, #tpu.memory_space<vmem>>, %arg3: memref<1x128xf32, #tpu.memory_space<vmem>>, %arg4: memref<512x128xbf16, #tpu.memory_space<vmem>>) attributes {dimension_semantics = [#tpu.dimension_semantics<parallel>], iteration_bounds = array<i64: 2>, scalar_prefetch = 0 : i64, scratch_operands = 0 : i64, tpu.core_type = #tpu.core_type<tc>, window_params = [{transform_indices = @transform_0, window_bounds = array<i64: 512, 224>}, {pipeline_mode = #tpu.pipeline_mode<synchronous>, transform_indices = @transform_1, window_bounds = array<i64: 224, 128>}, {pipeline_mode = #tpu.pipeline_mode<synchronous>, transform_indices = @transform_2, window_bounds = array<i64: 1, 128>}, {transform_indices = @transform_3, window_bounds = array<i64: 512, 128>}]} {
    %c0 = arith.constant 0 : index
    %c0_0 = arith.constant 0 : index
    %0 = vector.load %arg1[%c0, %c0_0] : memref<512x224xbf16, #tpu.memory_space<vmem>>, vector<512x224xbf16>
    %c0_1 = arith.constant 0 : index
    %c0_2 = arith.constant 0 : index
    %1 = vector.load %arg2[%c0_1, %c0_2] : memref<224x128xbf16, #tpu.memory_space<vmem>>, vector<224x128xbf16>
    %cst = arith.constant dense<0.000000e+00> : vector<512x128xf32>
    %2 = tpu.matmul %0, %1, %cst {dimension_numbers = #tpu.dot_dimension_numbers<[1], [0], [0], [1], [0, 0, 1, 1], [], []>} : vector<512x224xbf16>, vector<224x128xbf16>, vector<512x128xf32> -> vector<512x128xf32>
    %c0_3 = arith.constant 0 : index
    %c0_4 = arith.constant 0 : index
    %3 = vector.load %arg3[%c0_3, %c0_4] : memref<1x128xf32, #tpu.memory_space<vmem>>, vector<1x128xf32>
    %4 = vector.broadcast %3 : vector<1x128xf32> to vector<512x128xf32>
    %5 = arith.addf %2, %4 : vector<512x128xf32>
    %cst_5 = arith.constant 0.000000e+00 : f32
    %6 = vector.broadcast %cst_5 : f32 to vector<512x128xf32>
    %7 = arith.maximumf %5, %6 : vector<512x128xf32>
    %8 = arith.truncf %7 : vector<512x128xf32> to vector<512x128xbf16>
    %c0_6 = arith.constant 0 : index
    %c0_7 = arith.constant 0 : index
    %9 = vector.load %arg4[%c0_6, %c0_7] : memref<512x128xbf16, #tpu.memory_space<vmem>>, vector<512x128xbf16>
    tpu.vector_store %arg4[%c0_6, %c0_7], %8 {strides = array<i32>} : memref<512x128xbf16, #tpu.memory_space<vmem>>, vector<512x128xbf16>,
    return
  }
  func.func @transform_0(%arg0: i32) -> (i32, i32) {
    %c0_i32 = arith.constant 0 : i32
    %c0_i32_0 = arith.constant 0 : i32
    return %arg0, %c0_i32 : i32, i32
  }
  func.func @transform_1(%arg0: i32) -> (i32, i32) {
    %c0_i32 = arith.constant 0 : i32
    %c0_i32_0 = arith.constant 0 : i32
    %c0_i32_1 = arith.constant 0 : i32
    return %c0_i32, %c0_i32_0 : i32, i32
  }
  func.func @transform_2(%arg0: i32) -> (i32, i32) {
    %c0_i32 = arith.constant 0 : i32
    %c0_i32_0 = arith.constant 0 : i32
    %c0_i32_1 = arith.constant 0 : i32
    return %c0_i32, %c0_i32_0 : i32, i32
  }
  func.func @transform_3(%arg0: i32) -> (i32, i32) {
    %c0_i32 = arith.constant 0 : i32
    %c0_i32_0 = arith.constant 0 : i32
    return %arg0, %c0_i32 : i32, i32
  }
}

module attributes {stable_mosaic.version = 11 : i64} {
  func.func @_gemm_bias_kernel(%arg0: i32, %arg1: memref<64x224xbf16, #tpu.memory_space<vmem>>, %arg2: memref<224x128xbf16, #tpu.memory_space<vmem>>, %arg3: memref<1x128xf32, #tpu.memory_space<vmem>>, %arg4: memref<64x128xbf16, #tpu.memory_space<vmem>>) attributes {dimension_semantics = [#tpu.dimension_semantics<parallel>], iteration_bounds = array<i64: 2>, scalar_prefetch = 0 : i64, scratch_operands = 0 : i64, tpu.core_type = #tpu.core_type<tc>, window_params = [{transform_indices = @transform_0, window_bounds = array<i64: 64, 224>}, {pipeline_mode = #tpu.pipeline_mode<synchronous>, transform_indices = @transform_1, window_bounds = array<i64: 224, 128>}, {pipeline_mode = #tpu.pipeline_mode<synchronous>, transform_indices = @transform_2, window_bounds = array<i64: 1, 128>}, {transform_indices = @transform_3, window_bounds = array<i64: 64, 128>}]} {
    %c0 = arith.constant 0 : index
    %c0_0 = arith.constant 0 : index
    %0 = vector.load %arg1[%c0, %c0_0] : memref<64x224xbf16, #tpu.memory_space<vmem>>, vector<64x224xbf16>
    %c0_1 = arith.constant 0 : index
    %c0_2 = arith.constant 0 : index
    %1 = vector.load %arg2[%c0_1, %c0_2] : memref<224x128xbf16, #tpu.memory_space<vmem>>, vector<224x128xbf16>
    %cst = arith.constant dense<0.000000e+00> : vector<64x128xf32>
    %2 = tpu.matmul %0, %1, %cst {dimension_numbers = #tpu.dot_dimension_numbers<[1], [0], [0], [1], [0, 0, 1, 1], [], []>} : vector<64x224xbf16>, vector<224x128xbf16>, vector<64x128xf32> -> vector<64x128xf32>
    %c0_3 = arith.constant 0 : index
    %c0_4 = arith.constant 0 : index
    %3 = vector.load %arg3[%c0_3, %c0_4] : memref<1x128xf32, #tpu.memory_space<vmem>>, vector<1x128xf32>
    %4 = vector.broadcast %3 : vector<1x128xf32> to vector<64x128xf32>
    %5 = arith.addf %2, %4 : vector<64x128xf32>
    %cst_5 = arith.constant 0.000000e+00 : f32
    %6 = vector.broadcast %cst_5 : f32 to vector<64x128xf32>
    %7 = arith.maximumf %5, %6 : vector<64x128xf32>
    %8 = arith.truncf %7 : vector<64x128xf32> to vector<64x128xbf16>
    %c0_6 = arith.constant 0 : index
    %c0_7 = arith.constant 0 : index
    %9 = vector.load %arg4[%c0_6, %c0_7] : memref<64x128xbf16, #tpu.memory_space<vmem>>, vector<64x128xbf16>
    tpu.vector_store %arg4[%c0_6, %c0_7], %8 {strides = array<i32>} : memref<64x128xbf16, #tpu.memory_space<vmem>>, vector<64x128xbf16>,
    return
  }
  func.func @transform_0(%arg0: i32) -> (i32, i32) {
    %c0_i32 = arith.constant 0 : i32
    %c0_i32_0 = arith.constant 0 : i32
    return %arg0, %c0_i32 : i32, i32
  }
  func.func @transform_1(%arg0: i32) -> (i32, i32) {
    %c0_i32 = arith.constant 0 : i32
    %c0_i32_0 = arith.constant 0 : i32
    %c0_i32_1 = arith.constant 0 : i32
    return %c0_i32, %c0_i32_0 : i32, i32
  }
  func.func @transform_2(%arg0: i32) -> (i32, i32) {
    %c0_i32 = arith.constant 0 : i32
    %c0_i32_0 = arith.constant 0 : i32
    %c0_i32_1 = arith.constant 0 : i32
    return %c0_i32, %c0_i32_0 : i32, i32
  }
  func.func @transform_3(%arg0: i32) -> (i32, i32) {
    %c0_i32 = arith.constant 0 : i32
    %c0_i32_0 = arith.constant 0 : i32
    return %arg0, %c0_i32 : i32, i32
  }
}

module attributes {stable_mosaic.version = 11 : i64} {
  func.func @_gemm_bias_skip_kernel(%arg0: i32, %arg1: memref<64x64xbf16, #tpu.memory_space<vmem>>, %arg2: memref<64x128xbf16, #tpu.memory_space<vmem>>, %arg3: memref<1x128xf32, #tpu.memory_space<vmem>>, %arg4: memref<64x128xbf16, #tpu.memory_space<vmem>>, %arg5: memref<64x128xbf16, #tpu.memory_space<vmem>>) attributes {dimension_semantics = [#tpu.dimension_semantics<parallel>], iteration_bounds = array<i64: 2>, scalar_prefetch = 0 : i64, scratch_operands = 0 : i64, tpu.core_type = #tpu.core_type<tc>, window_params = [{transform_indices = @transform_0, window_bounds = array<i64: 64, 64>}, {pipeline_mode = #tpu.pipeline_mode<synchronous>, transform_indices = @transform_1, window_bounds = array<i64: 64, 128>}, {pipeline_mode = #tpu.pipeline_mode<synchronous>, transform_indices = @transform_2, window_bounds = array<i64: 1, 128>}, {transform_indices = @transform_3, window_bounds = array<i64: 64, 128>}, {transform_indices = @transform_4, window_bounds = array<i64: 64, 128>}]} {
    %c0 = arith.constant 0 : index
    %c0_0 = arith.constant 0 : index
    %0 = vector.load %arg1[%c0, %c0_0] : memref<64x64xbf16, #tpu.memory_space<vmem>>, vector<64x64xbf16>
    %c0_1 = arith.constant 0 : index
    %c0_2 = arith.constant 0 : index
    %1 = vector.load %arg2[%c0_1, %c0_2] : memref<64x128xbf16, #tpu.memory_space<vmem>>, vector<64x128xbf16>
    %cst = arith.constant dense<0.000000e+00> : vector<64x128xf32>
    %2 = tpu.matmul %0, %1, %cst {dimension_numbers = #tpu.dot_dimension_numbers<[1], [0], [0], [1], [0, 0, 1, 1], [], []>} : vector<64x64xbf16>, vector<64x128xbf16>, vector<64x128xf32> -> vector<64x128xf32>
    %c0_3 = arith.constant 0 : index
    %c0_4 = arith.constant 0 : index
    %3 = vector.load %arg3[%c0_3, %c0_4] : memref<1x128xf32, #tpu.memory_space<vmem>>, vector<1x128xf32>
    %4 = vector.broadcast %3 : vector<1x128xf32> to vector<64x128xf32>
    %5 = arith.addf %2, %4 : vector<64x128xf32>
    %c0_5 = arith.constant 0 : index
    %c0_6 = arith.constant 0 : index
    %6 = vector.load %arg4[%c0_5, %c0_6] : memref<64x128xbf16, #tpu.memory_space<vmem>>, vector<64x128xbf16>
    %7 = arith.extf %6 : vector<64x128xbf16> to vector<64x128xf32>
    %8 = arith.addf %5, %7 : vector<64x128xf32>
    %cst_7 = arith.constant 0.000000e+00 : f32
    %9 = vector.broadcast %cst_7 : f32 to vector<64x128xf32>
    %10 = arith.maximumf %8, %9 : vector<64x128xf32>
    %11 = arith.truncf %10 : vector<64x128xf32> to vector<64x128xbf16>
    %c0_8 = arith.constant 0 : index
    %c0_9 = arith.constant 0 : index
    %12 = vector.load %arg5[%c0_8, %c0_9] : memref<64x128xbf16, #tpu.memory_space<vmem>>, vector<64x128xbf16>
    tpu.vector_store %arg5[%c0_8, %c0_9], %11 {strides = array<i32>} : memref<64x128xbf16, #tpu.memory_space<vmem>>, vector<64x128xbf16>,
    return
  }
  func.func @transform_0(%arg0: i32) -> (i32, i32) {
    %c0_i32 = arith.constant 0 : i32
    %c0_i32_0 = arith.constant 0 : i32
    return %arg0, %c0_i32 : i32, i32
  }
  func.func @transform_1(%arg0: i32) -> (i32, i32) {
    %c0_i32 = arith.constant 0 : i32
    %c0_i32_0 = arith.constant 0 : i32
    %c0_i32_1 = arith.constant 0 : i32
    return %c0_i32, %c0_i32_0 : i32, i32
  }
  func.func @transform_2(%arg0: i32) -> (i32, i32) {
    %c0_i32 = arith.constant 0 : i32
    %c0_i32_0 = arith.constant 0 : i32
    %c0_i32_1 = arith.constant 0 : i32
    return %c0_i32, %c0_i32_0 : i32, i32
  }
  func.func @transform_3(%arg0: i32) -> (i32, i32) {
    %c0_i32 = arith.constant 0 : i32
    %c0_i32_0 = arith.constant 0 : i32
    return %arg0, %c0_i32 : i32, i32
  }
  func.func @transform_4(%arg0: i32) -> (i32, i32) {
    %c0_i32 = arith.constant 0 : i32
    %c0_i32_0 = arith.constant 0 : i32
    return %arg0, %c0_i32 : i32, i32
  }
}

module attributes {stable_mosaic.version = 11 : i64} {
  func.func @_gemm_bias_kernel(%arg0: i32, %arg1: memref<512x64xbf16, #tpu.memory_space<vmem>>, %arg2: memref<64x128xbf16, #tpu.memory_space<vmem>>, %arg3: memref<1x128xf32, #tpu.memory_space<vmem>>, %arg4: memref<512x128xbf16, #tpu.memory_space<vmem>>) attributes {dimension_semantics = [#tpu.dimension_semantics<parallel>], iteration_bounds = array<i64: 2>, scalar_prefetch = 0 : i64, scratch_operands = 0 : i64, tpu.core_type = #tpu.core_type<tc>, window_params = [{transform_indices = @transform_0, window_bounds = array<i64: 512, 64>}, {pipeline_mode = #tpu.pipeline_mode<synchronous>, transform_indices = @transform_1, window_bounds = array<i64: 64, 128>}, {pipeline_mode = #tpu.pipeline_mode<synchronous>, transform_indices = @transform_2, window_bounds = array<i64: 1, 128>}, {transform_indices = @transform_3, window_bounds = array<i64: 512, 128>}]} {
    %c0 = arith.constant 0 : index
    %c0_0 = arith.constant 0 : index
    %0 = vector.load %arg1[%c0, %c0_0] : memref<512x64xbf16, #tpu.memory_space<vmem>>, vector<512x64xbf16>
    %c0_1 = arith.constant 0 : index
    %c0_2 = arith.constant 0 : index
    %1 = vector.load %arg2[%c0_1, %c0_2] : memref<64x128xbf16, #tpu.memory_space<vmem>>, vector<64x128xbf16>
    %cst = arith.constant dense<0.000000e+00> : vector<512x128xf32>
    %2 = tpu.matmul %0, %1, %cst {dimension_numbers = #tpu.dot_dimension_numbers<[1], [0], [0], [1], [0, 0, 1, 1], [], []>} : vector<512x64xbf16>, vector<64x128xbf16>, vector<512x128xf32> -> vector<512x128xf32>
    %c0_3 = arith.constant 0 : index
    %c0_4 = arith.constant 0 : index
    %3 = vector.load %arg3[%c0_3, %c0_4] : memref<1x128xf32, #tpu.memory_space<vmem>>, vector<1x128xf32>
    %4 = vector.broadcast %3 : vector<1x128xf32> to vector<512x128xf32>
    %5 = arith.addf %2, %4 : vector<512x128xf32>
    %6 = arith.truncf %5 : vector<512x128xf32> to vector<512x128xbf16>
    %c0_5 = arith.constant 0 : index
    %c0_6 = arith.constant 0 : index
    %7 = vector.load %arg4[%c0_5, %c0_6] : memref<512x128xbf16, #tpu.memory_space<vmem>>, vector<512x128xbf16>
    tpu.vector_store %arg4[%c0_5, %c0_6], %6 {strides = array<i32>} : memref<512x128xbf16, #tpu.memory_space<vmem>>, vector<512x128xbf16>,
    return
  }
  func.func @transform_0(%arg0: i32) -> (i32, i32) {
    %c0_i32 = arith.constant 0 : i32
    %c0_i32_0 = arith.constant 0 : i32
    return %arg0, %c0_i32 : i32, i32
  }
  func.func @transform_1(%arg0: i32) -> (i32, i32) {
    %c0_i32 = arith.constant 0 : i32
    %c0_i32_0 = arith.constant 0 : i32
    %c0_i32_1 = arith.constant 0 : i32
    return %c0_i32, %c0_i32_0 : i32, i32
  }
  func.func @transform_2(%arg0: i32) -> (i32, i32) {
    %c0_i32 = arith.constant 0 : i32
    %c0_i32_0 = arith.constant 0 : i32
    %c0_i32_1 = arith.constant 0 : i32
    return %c0_i32, %c0_i32_0 : i32, i32
  }
  func.func @transform_3(%arg0: i32) -> (i32, i32) {
    %c0_i32 = arith.constant 0 : i32
    %c0_i32_0 = arith.constant 0 : i32
    return %arg0, %c0_i32 : i32, i32
  }
}

</mosaic_0001>

<llo_original>
// kernel: hourglass_forward.6
$region0: #{hourglass_forward.6}
  #allocation0 [shape = 'u32[]', space=smem, size = 0x4, offset = 0x4, fixed_abs, tag = 'smem constant byte address 0x4 - core index']
  #allocation1 [shape = 'u32[144,128]{1,0:T(1,128)}', space=vmem, size = 0x12000, scoped, tag = 'internal scratch']
  %s0 = inlined_call_operand.vmem [shape: bf16[1024,112], index: 0, kind: input, shape index: {}]
  %s1 = inlined_call_operand.vmem [shape: bf16[112,128], index: 1, kind: input, shape index: {}]
  %s2 = inlined_call_operand.vmem [shape: f32[1,128], index: 2, kind: input, shape index: {}]
  %s3 = inlined_call_operand.vmem [shape: bf16[1024,128], index: 3, kind: output, shape index: {}]
  %s4 = sld [smem:[#allocation0]]
  $region45: #{hourglass_forward.6} parent=0
    _
  %s6 = ssub.s32 1, %s4
  %s7 = scalar_select 0, %s6, %s4
  loop: start=0, step=1, limit=4
  $region2: #{hourglass_forward.6} parent=0 // loop_pre_header
    _
  $region3: #{hourglass_forward.6} parent=0 // loop_header
    %s9 = sphi 0, %s13
    %p10 = scmp.ge.s32.totalorder %s9, 4
    %s19 = sphi 0, %s21
    %s22 = sphi 0, %s19
    %s23 = sphi 0, %s22
    %s39 = sphi 0, %s23
    %s43 = sphi 0, %s43
    %s45 = sphi 0, %s43
    %s46 = sphi 0, %s45
    %s60 = sphi 0, %s46
    %s64 = sphi 0, %s64
    %s66 = sphi 0, %s64
    %s67 = sphi 0, %s66
    %s81 = sphi 0, %s67
    %s87 = sphi 0, %s89
    %s90 = sphi 0, %s87
    %s91 = sphi 0, %s90
    %s107 = sphi 0, %s91
  $region4: #{hourglass_forward.6} parent=0 // loop_header_branch
    %12 = sbr.rel (%p10) target = $region8
  $region5: #{hourglass_forward.6} parent=0 // loop_body
    %s14 = ssub.s32 %s9, 1
    %s15 = ssub.s32 %s9, 2
    %s16 = sadd.s32 %s9, 1
    %s17 = ssub.s32 %s9, %s16
    %p18 = scmp.eq.s32.totalorder %s17, 0
    %s20 = sadd.s32 %s19, 1
    %s21 = scalar_select %p18, %s19, %s20
    %p24 = pneg %p18
    %p25 = scmp.eq.s32.totalorder %s9, 1
    %p26 = por %p24, %p25
    %p27 = scmp.ne.s32.totalorder %s19, %s22
    %p28 = scmp.eq.s32.totalorder %s9, 0
    %p29 = por %p27, %p28
    %p30 = scmp.ne.s32.totalorder %s19, %s22
    %p31 = scmp.eq.s32.totalorder %s14, 1
    %p32 = por %p30, %p31
    %p33 = scmp.ne.s32.totalorder %s22, %s23
    %p34 = scmp.eq.s32.totalorder %s14, 0
    %p35 = por %p33, %p34
    %p36 = scmp.ne.s32.totalorder %s22, %s23
    %p37 = scmp.eq.s32.totalorder %s15, 1
    %p38 = por %p36, %p37
    %p40 = scmp.ne.s32.totalorder %s23, %s39
    %p41 = scmp.eq.s32.totalorder %s15, 0
    %p42 = por %p40, %p41
    %s44 = sadd.s32 %s43, 1
    %p47 = scmp.eq.s32.totalorder %s9, 1
    %p48 = scmp.ne.s32.totalorder %s43, %s45
    %p49 = scmp.eq.s32.totalorder %s9, 0
    %p50 = por %p48, %p49
    %p51 = scmp.ne.s32.totalorder %s43, %s45
    %p52 = scmp.eq.s32.totalorder %s14, 1
    %p53 = por %p51, %p52
    %p54 = scmp.ne.s32.totalorder %s45, %s46
    %p55 = scmp.eq.s32.totalorder %s14, 0
    %p56 = por %p54, %p55
    %p57 = scmp.ne.s32.totalorder %s45, %s46
    %p58 = scmp.eq.s32.totalorder %s15, 1
    %p59 = por %p57, %p58
    %p61 = scmp.ne.s32.totalorder %s46, %s60
    %p62 = scmp.eq.s32.totalorder %s15, 0
    %p63 = por %p61, %p62
    %s65 = sadd.s32 %s64, 1
    %p68 = scmp.eq.s32.totalorder %s9, 1
    %p69 = scmp.ne.s32.totalorder %s64, %s66
    %p70 = scmp.eq.s32.totalorder %s9, 0
    %p71 = por %p69, %p70
    %p72 = scmp.ne.s32.totalorder %s64, %s66
    %p73 = scmp.eq.s32.totalorder %s14, 1
    %p74 = por %p72, %p73
    %p75 = scmp.ne.s32.totalorder %s66, %s67
    %p76 = scmp.eq.s32.totalorder %s14, 0
    %p77 = por %p75, %p76
    %p78 = scmp.ne.s32.totalorder %s66, %s67
    %p79 = scmp.eq.s32.totalorder %s15, 1
    %p80 = por %p78, %p79
    %p82 = scmp.ne.s32.totalorder %s67, %s81
    %p83 = scmp.eq.s32.totalorder %s15, 0
    %p84 = por %p82, %p83
    %s85 = ssub.s32 %s9, %s16
    %p86 = scmp.eq.s32.totalorder %s85, 0
    %s88 = sadd.s32 %s87, 1
    %s89 = scalar_select %p86, %s87, %s88
    %p92 = pneg %p86
    %p93 = scmp.eq.s32.totalorder %s9, 1
    %p94 = por %p92, %p93
    %p95 = scmp.ne.s32.totalorder %s87, %s90
    %p96 = scmp.eq.s32.totalorder %s9, 0
    %p97 = por %p95, %p96
    %p98 = scmp.ne.s32.totalorder %s87, %s90
    %p99 = scmp.eq.s32.totalorder %s14, 1
    %p100 = por %p98, %p99
    %p101 = scmp.ne.s32.totalorder %s90, %s91
    %p102 = scmp.eq.s32.totalorder %s14, 0
    %p103 = por %p101, %p102
    %p104 = scmp.ne.s32.totalorder %s90, %s91
    %p105 = scmp.eq.s32.totalorder %s15, 1
    %p106 = por %p104, %p105
    %p108 = scmp.ne.s32.totalorder %s91, %s107
    %p109 = scmp.eq.s32.totalorder %s15, 0
    %p110 = por %p108, %p109
    %p111 = scmp.le.s32.totalorder 1, %s9
    %p112 = scmp.lt.s32.totalorder %s9, 3
    %p113 = pnand %p111, %p112
    %p114 = pneg %p113
    // Predicated region
    $region9: #{hourglass_forward.6} parent=5 // pred_check
      _
    $region10: #{hourglass_forward.6} parent=5 // pred_check_branch
      %116 = sbr.rel (%p113) target = $region12
    $region11: #{hourglass_forward.6} parent=5 // pred_region
      %s117 = ssub.s32 %s9, 1
      // Predicated region
      $region13: #{hourglass_forward.6} parent=11 // pred_check
        %p118 = pneg %p56
      $region14: #{hourglass_forward.6} parent=11 // pred_check_branch
        %120 = sbr.rel (%p118) target = $region16
      $region15: #{hourglass_forward.6} parent=11 // pred_region
        _
      $region16: #{hourglass_forward.6} parent=11 // pred_fallthru
        _
      // Predicated region
      $region17: #{hourglass_forward.6} parent=11 // pred_check
        %p121 = pneg %p77
      $region18: #{hourglass_forward.6} parent=11 // pred_check_branch
        %123 = sbr.rel (%p121) target = $region20
      $region19: #{hourglass_forward.6} parent=11 // pred_region
        _
      $region20: #{hourglass_forward.6} parent=11 // pred_fallthru
        _
    $region12: #{hourglass_forward.6} parent=5 // pred_fallthru
      _
    %p124 = scmp.lt.s32.totalorder %s9, 2
    // Predicated region
    $region21: #{hourglass_forward.6} parent=5 // pred_check
      %p125 = pneg %p124
    $region22: #{hourglass_forward.6} parent=5 // pred_check_branch
      %127 = sbr.rel (%p125) target = $region24
    $region23: #{hourglass_forward.6} parent=5 // pred_region
      // Predicated region
      $region25: #{hourglass_forward.6} parent=23 // pred_check
        %p128 = pneg %p29
      $region26: #{hourglass_forward.6} parent=23 // pred_check_branch
        %130 = sbr.rel (%p128) target = $region28
      $region27: #{hourglass_forward.6} parent=23 // pred_region
        %s131 = smul.u32 64, %s9
        %p132 = scmp.lt.s32.totalorder %s131, 127
        %s133 = scalar_select %p132, %s131, 127
        %s134 = smul.addr %s133, 4
        %s135 = scalar_lea.vmem %s0, %s134
        %s136 = smul.u32 64, %s9
      $region28: #{hourglass_forward.6} parent=23 // pred_fallthru
        _
    $region24: #{hourglass_forward.6} parent=5 // pred_fallthru
      _
    %p137 = scmp.le.s32.totalorder 1, %s9
    %p138 = scmp.lt.s32.totalorder %s9, 3
    %p139 = pnand %p137, %p138
    %p140 = pneg %p139
    // Predicated region
    $region29: #{hourglass_forward.6} parent=5 // pred_check
      _
    $region30: #{hourglass_forward.6} parent=5 // pred_check_branch
      %142 = sbr.rel (%p139) target = $region32
    $region31: #{hourglass_forward.6} parent=5 // pred_region
      %s143 = ssub.s32 %s9, 1
      %s144 = smul.u32 64, %s14
      %p145 = scmp.lt.s32.totalorder %s144, 127
      %s146 = scalar_select %p145, %s144, 127
      %s147 = smul.addr %s146, 4
      %s148 = scalar_lea.vmem %s0, %s147
      %p149 = pneg %p35
      %p150 = pneg %p32
      %p151 = pneg %p56
      %p152 = pneg %p53
      %p153 = pneg %p77
      %p154 = pneg %p74
      %p155 = pneg %p103
      %p156 = pneg %p100
      %s157 = smul.u32 64, %s14
      %p158 = scmp.lt.s32.totalorder %s157, 127
      %s159 = scalar_select %p158, %s157, 127
      %s160 = smul.addr %s159, 4
      %s161 = scalar_lea.vmem %s3, %s160
      %s162 = smul.u32 64, %s14
      %p163 = scmp.lt.s32.totalorder %s162, 127
      %s164 = scalar_select %p163, %s162, 127
      %s165 = smul.addr %s164, 4
      %s166 = scalar_lea.vmem %s0, %s165
      %s167 = smul.u32 64, %s14
      %s168 = smul.u32 64, %s14
      %p169 = scmp.lt.s32.totalorder %s168, 127
      %s170 = scalar_select %p169, %s168, 127
      %s171 = smul.addr %s170, 4
      %s172 = scalar_lea.vmem %s3, %s171
      %s173 = smul.u32 64, %s14
      %v175 = vld [vmem:[%s166] sm:$0xf]
      %v176 = vld [vmem:[%s166 + $0x4] sm:$0xf]
      %v177 = vld [vmem:[%s166 + $0x8] sm:$0xf]
      %v178 = vld [vmem:[%s166 + $0xc] sm:$0xf]
      %v179 = vld [vmem:[%s166 + $0x10] sm:$0xf]
      %v180 = vld [vmem:[%s166 + $0x14] sm:$0xf]
      %v181 = vld [vmem:[%s166 + $0x18] sm:$0xf]
      %v182 = vld [vmem:[%s166 + $0x1c] sm:$0xf]
      %v183 = vld [vmem:[%s166 + $0x20] sm:$0xf]
      %v184 = vld [vmem:[%s166 + $0x24] sm:$0xf]
      %v185 = vld [vmem:[%s166 + $0x28] sm:$0xf]
      %v186 = vld [vmem:[%s166 + $0x2c] sm:$0xf]
      %v187 = vld [vmem:[%s166 + $0x30] sm:$0xf]
      %v188 = vld [vmem:[%s166 + $0x34] sm:$0xf]
      %v189 = vld [vmem:[%s166 + $0x38] sm:$0xf]
      %v190 = vld [vmem:[%s166 + $0x3c] sm:$0xf]
      %v191 = vld [vmem:[%s166 + $0x40] sm:$0xf]
      %v192 = vld [vmem:[%s166 + $0x44] sm:$0xf]
      %v193 = vld [vmem:[%s166 + $0x48] sm:$0xf]
      %v194 = vld [vmem:[%s166 + $0x4c] sm:$0xf]
      %v195 = vld [vmem:[%s166 + $0x50] sm:$0xf]
      %v196 = vld [vmem:[%s166 + $0x54] sm:$0xf]
      %v197 = vld [vmem:[%s166 + $0x58] sm:$0xf]
      %v198 = vld [vmem:[%s166 + $0x5c] sm:$0xf]
      %v199 = vld [vmem:[%s166 + $0x60] sm:$0xf]
      %v200 = vld [vmem:[%s166 + $0x64] sm:$0xf]
      %v201 = vld [vmem:[%s166 + $0x68] sm:$0xf]
      %v202 = vld [vmem:[%s166 + $0x6c] sm:$0xf]
      %v203 = vld [vmem:[%s166 + $0x70] sm:$0xf]
      %v204 = vld [vmem:[%s166 + $0x74] sm:$0xf]
      %v205 = vld [vmem:[%s166 + $0x78] sm:$0xf]
      %v206 = vld [vmem:[%s166 + $0x7c] sm:$0xf]
      %v207 = vld [vmem:[%s166 + $0x80] sm:$0xf]
      %v208 = vld [vmem:[%s166 + $0x84] sm:$0xf]
      %v209 = vld [vmem:[%s166 + $0x88] sm:$0xf]
      %v210 = vld [vmem:[%s166 + $0x8c] sm:$0xf]
      %v211 = vld [vmem:[%s166 + $0x90] sm:$0xf]
      %v212 = vld [vmem:[%s166 + $0x94] sm:$0xf]
      %v213 = vld [vmem:[%s166 + $0x98] sm:$0xf]
      %v214 = vld [vmem:[%s166 + $0x9c] sm:$0xf]
      %v215 = vld [vmem:[%s166 + $0xa0] sm:$0xf]
      %v216 = vld [vmem:[%s166 + $0xa4] sm:$0xf]
      %v217 = vld [vmem:[%s166 + $0xa8] sm:$0xf]
      %v218 = vld [vmem:[%s166 + $0xac] sm:$0xf]
      %v219 = vld [vmem:[%s166 + $0xb0] sm:$0xf]
      %v220 = vld [vmem:[%s166 + $0xb4] sm:$0xf]
      %v221 = vld [vmem:[%s166 + $0xb8] sm:$0xf]
      %v222 = vld [vmem:[%s166 + $0xbc] sm:$0xf]
      %v223 = vld [vmem:[%s166 + $0xc0] sm:$0xf]
      %v224 = vld [vmem:[%s166 + $0xc4] sm:$0xf]
      %v225 = vld [vmem:[%s166 + $0xc8] sm:$0xf]
      %v226 = vld [vmem:[%s166 + $0xcc] sm:$0xf]
      %v227 = vld [vmem:[%s166 + $0xd0] sm:$0xf]
      %v228 = vld [vmem:[%s166 + $0xd4] sm:$0xf]
      %v229 = vld [vmem:[%s166 + $0xd8] sm:$0xf]
      %v230 = vld [vmem:[%s166 + $0xdc] sm:$0xf]
      %v231 = vld [vmem:[%s166 + $0xe0] sm:$0xf]
      %v232 = vld [vmem:[%s166 + $0xe4] sm:$0xf]
      %v233 = vld [vmem:[%s166 + $0xe8] sm:$0xf]
      %v234 = vld [vmem:[%s166 + $0xec] sm:$0xf]
      %v235 = vld [vmem:[%s166 + $0xf0] sm:$0xf]
      %v236 = vld [vmem:[%s166 + $0xf4] sm:$0xf]
      %v237 = vld [vmem:[%s166 + $0xf8] sm:$0xf]
      %v238 = vld [vmem:[%s166 + $0xfc] sm:$0xf]
      %v239 = vld [vmem:[%s1] sm:$0xf]
      %v240 = vld [vmem:[%s1 + $0x4] sm:$0xf]
      %v241 = vld [vmem:[%s1 + $0x8] sm:$0xf]
      %v242 = vld [vmem:[%s1 + $0xc] sm:$0xf]
      %v243 = vld [vmem:[%s1 + $0x10] sm:$0xf]
      %v244 = vld [vmem:[%s1 + $0x14] sm:$0xf]
      %v245 = vld [vmem:[%s1 + $0x18] sm:$0xf]
      %v246 = vld [vmem:[%s1 + $0x1c] sm:$0xf]
      %v247 = vld [vmem:[%s1 + $0x20] sm:$0xf]
      %v248 = vld [vmem:[%s1 + $0x24] sm:$0xf]
      %v249 = vld [vmem:[%s1 + $0x28] sm:$0xf]
      %v250 = vld [vmem:[%s1 + $0x2c] sm:$0xf]
      %v251 = vld [vmem:[%s1 + $0x30] sm:$0xf]
      %v252 = vld [vmem:[%s1 + $0x34] sm:$0xf]
      %v253 = vld [vmem:[%s2] sm:$0x1]
      %v255 = vlaneseq
      %v256 = vshrl.u32 %v255, 7
      %v257 = vsub.s32 0, %v256
      %v258 = vrot.slane %v253, %v257
      %v324 = vunpack.c.l.b16 %v175
      %v325 = vunpack.c.l.b16 %v176
      %v326 = vunpack.c.l.b16 %v177
      %v327 = vunpack.c.l.b16 %v178
      %v328 = vunpack.c.l.b16 %v179
      %v329 = vunpack.c.l.b16 %v180
      %v330 = vunpack.c.l.b16 %v181
      %v331 = vunpack.c.l.b16 %v182
      %v332 = vunpack.c.l.b16 %v183
      %v333 = vunpack.c.l.b16 %v184
      %v334 = vunpack.c.l.b16 %v185
      %v335 = vunpack.c.l.b16 %v186
      %v336 = vunpack.c.l.b16 %v187
      %v337 = vunpack.c.l.b16 %v188
      %v338 = vunpack.c.l.b16 %v189
      %v339 = vunpack.c.l.b16 %v190
      %v340 = vunpack.c.l.b16 %v191
      %v341 = vunpack.c.l.b16 %v192
      %v342 = vunpack.c.l.b16 %v193
      %v343 = vunpack.c.l.b16 %v194
      %v344 = vunpack.c.l.b16 %v195
      %v345 = vunpack.c.l.b16 %v196
      %v346 = vunpack.c.l.b16 %v197
      %v347 = vunpack.c.l.b16 %v198
      %v348 = vunpack.c.l.b16 %v199
      %v349 = vunpack.c.l.b16 %v200
      %v350 = vunpack.c.l.b16 %v201
      %v351 = vunpack.c.l.b16 %v202
      %v352 = vunpack.c.l.b16 %v203
      %v353 = vunpack.c.l.b16 %v204
      %v354 = vunpack.c.l.b16 %v205
      %v355 = vunpack.c.l.b16 %v206
      %v356 = vunpack.c.l.b16 %v207
      %v357 = vunpack.c.l.b16 %v208
      %v358 = vunpack.c.l.b16 %v209
      %v359 = vunpack.c.l.b16 %v210
      %v360 = vunpack.c.l.b16 %v211
      %v361 = vunpack.c.l.b16 %v212
      %v362 = vunpack.c.l.b16 %v213
      %v363 = vunpack.c.l.b16 %v214
      %v364 = vunpack.c.l.b16 %v215
      %v365 = vunpack.c.l.b16 %v216
      %v366 = vunpack.c.l.b16 %v217
      %v367 = vunpack.c.l.b16 %v218
      %v368 = vunpack.c.l.b16 %v219
      %v369 = vunpack.c.l.b16 %v220
      %v370 = vunpack.c.l.b16 %v221
      %v371 = vunpack.c.l.b16 %v222
      %v372 = vunpack.c.l.b16 %v223
      %v373 = vunpack.c.l.b16 %v224
      %v374 = vunpack.c.l.b16 %v225
      %v375 = vunpack.c.l.b16 %v226
      %v376 = vunpack.c.l.b16 %v227
      %v377 = vunpack.c.l.b16 %v228
      %v378 = vunpack.c.l.b16 %v229
      %v379 = vunpack.c.l.b16 %v230
      %v380 = vunpack.c.l.b16 %v231
      %v381 = vunpack.c.l.b16 %v232
      %v382 = vunpack.c.l.b16 %v233
      %v383 = vunpack.c.l.b16 %v234
      %v384 = vunpack.c.l.b16 %v235
      %v385 = vunpack.c.l.b16 %v236
      %v386 = vunpack.c.l.b16 %v237
      %v387 = vunpack.c.l.b16 %v238
      %v388 = vpack.c.b16 %v325, %v324
      %v389 = vpack.c.b16 %v327, %v326
      %v390 = vpack.c.b16 %v329, %v328
      %v391 = vpack.c.b16 %v331, %v330
      %v392 = vpack.c.b16 %v333, %v332
      %v393 = vpack.c.b16 %v335, %v334
      %v394 = vpack.c.b16 %v337, %v336
      %v395 = vpack.c.b16 %v339, %v338
      %v396 = vpack.c.b16 %v341, %v340
      %v397 = vpack.c.b16 %v343, %v342
      %v398 = vpack.c.b16 %v345, %v344
      %v399 = vpack.c.b16 %v347, %v346
      %v400 = vpack.c.b16 %v349, %v348
      %v401 = vpack.c.b16 %v351, %v350
      %v402 = vpack.c.b16 %v353, %v352
      %v403 = vpack.c.b16 %v355, %v354
      %v404 = vpack.c.b16 %v357, %v356
      %v405 = vpack.c.b16 %v359, %v358
      %v406 = vpack.c.b16 %v361, %v360
      %v407 = vpack.c.b16 %v363, %v362
      %v408 = vpack.c.b16 %v365, %v364
      %v409 = vpack.c.b16 %v367, %v366
      %v410 = vpack.c.b16 %v369, %v368
      %v411 = vpack.c.b16 %v371, %v370
      %v412 = vpack.c.b16 %v373, %v372
      %v413 = vpack.c.b16 %v375, %v374
      %v414 = vpack.c.b16 %v377, %v376
      %v415 = vpack.c.b16 %v379, %v378
      %v416 = vpack.c.b16 %v381, %v380
      %v417 = vpack.c.b16 %v383, %v382
      %v418 = vpack.c.b16 %v385, %v384
      %v419 = vpack.c.b16 %v387, %v386
      %v434 = vunpack.c.l.b16 %v239
      %v435 = vunpack.c.l.b16 %v240
      %v436 = vunpack.c.l.b16 %v241
      %v437 = vunpack.c.l.b16 %v242
      %v438 = vunpack.c.l.b16 %v243
      %v439 = vunpack.c.l.b16 %v244
      %v440 = vunpack.c.l.b16 %v245
      %v441 = vunpack.c.l.b16 %v246
      %v442 = vunpack.c.l.b16 %v247
      %v443 = vunpack.c.l.b16 %v248
      %v444 = vunpack.c.l.b16 %v249
      %v445 = vunpack.c.l.b16 %v250
      %v446 = vunpack.c.l.b16 %v251
      %v447 = vunpack.c.l.b16 %v252
      %v448 = vpack.c.b16 %v435, %v434
      %v449 = vpack.c.b16 %v437, %v436
      %v450 = vpack.c.b16 %v439, %v438
      %v451 = vpack.c.b16 %v441, %v440
      %v452 = vpack.c.b16 %v443, %v442
      %v453 = vpack.c.b16 %v445, %v444
      %v454 = vpack.c.b16 %v447, %v446
      %vm462 = vcmask 916480
      %v464 = vsel %vm462, %v388, 0
      %v467 = vsel %vm462, %v389, 0
      %v470 = vsel %vm462, %v390, 0
      %v473 = vsel %vm462, %v391, 0
      %v476 = vsel %vm462, %v392, 0
      %v479 = vsel %vm462, %v393, 0
      %v482 = vsel %vm462, %v394, 0
      %v485 = vsel %vm462, %v395, 0
      %v488 = vsel %vm462, %v396, 0
      %v491 = vsel %vm462, %v397, 0
      %v494 = vsel %vm462, %v398, 0
      %v497 = vsel %vm462, %v399, 0
      %v500 = vsel %vm462, %v400, 0
      %v503 = vsel %vm462, %v401, 0
      %v506 = vsel %vm462, %v402, 0
      %v509 = vsel %vm462, %v403, 0
      %v512 = vsel %vm462, %v404, 0
      %v515 = vsel %vm462, %v405, 0
      %v518 = vsel %vm462, %v406, 0
      %v521 = vsel %vm462, %v407, 0
      %v524 = vsel %vm462, %v408, 0
      %v527 = vsel %vm462, %v409, 0
      %v530 = vsel %vm462, %v410, 0
      %v533 = vsel %vm462, %v411, 0
      %v536 = vsel %vm462, %v412, 0
      %v539 = vsel %vm462, %v413, 0
      %v542 = vsel %vm462, %v414, 0
      %v545 = vsel %vm462, %v415, 0
      %v548 = vsel %vm462, %v416, 0
      %v551 = vsel %vm462, %v417, 0
      %v554 = vsel %vm462, %v418, 0
      %v557 = vsel %vm462, %v419, 0
      %559 = vmatprep.subr.bf16.mxu0 0
      %560 = vmatpush1.bf16.msra.mxu0 %v448
      %561 = vmatprep.subr.bf16.mxu0 0
      %562 = vmatpush1.bf16.msra.mxu0 %v449
      %563 = vmatprep.subr.bf16.mxu0 0
      %564 = vmatpush1.bf16.msra.mxu0 %v450
      %565 = vmatprep.subr.bf16.mxu0 0
      %566 = vmatpush1.bf16.msra.mxu0 %v451
      %567 = vmatprep.subr.bf16.mxu0 0
      %568 = vmatpush1.bf16.msra.mxu0 %v452
      %569 = vmatprep.subr.bf16.mxu0 0
      %570 = vmatpush1.bf16.msra.mxu0 %v453
      %571 = vmatprep.subr.bf16.mxu0 0
      %572 = vmatpush1.bf16.msra.mxu0 %v454
      %573 = vmatprep.subr.bf16.mxu0 0
      %574 = vmatpush1.bf16.msra.mxu0 0
      %575 = vmatprep.subr.bf16.mxu0 0
      %576 = vmatpush1.bf16.msra.mxu0 0
      %577 = vmatprep.subr.bf16.mxu0 0
      %578 = vmatpush1.bf16.msra.mxu0 0
      %579 = vmatprep.subr.bf16.mxu0 0
      %580 = vmatpush1.bf16.msra.mxu0 0
      %581 = vmatprep.subr.bf16.mxu0 0
      %582 = vmatpush1.bf16.msra.mxu0 0
      %583 = vmatprep.subr.bf16.mxu0 0
      %584 = vmatpush1.bf16.msra.mxu0 0
      %585 = vmatprep.subr.bf16.mxu0 0
      %586 = vmatpush1.bf16.msra.mxu0 0
      %587 = vmatprep.subr.bf16.mxu0 0
      %588 = vmatpush1.bf16.msra.mxu0 0
      %589 = vmatprep.subr.bf16.mxu0 0
      %590 = vmatpush1.bf16.msra.mxu0 0
      %591 = vmatprep.mubr.bf16.mxu0 0
      %592 = vmatmul.mubr.bf16.gmra.mrb[0].mxu0 %v464
      %v593 = vpop.f32.mrb[0].mxu0
      %v594 = vadd.f32 %v258, %v593
      %v595 = vpop.f32.mrb[0].mxu0
      %v596 = vpop.f32.mrb[0].mxu0
      %v597 = vadd.f32 %v258, %v596
      %v598 = vpop.f32.mrb[0].mxu0
      %599 = vmatprep.mubr.bf16.mxu0 0
      %600 = vmatmul.mubr.bf16.gmra.mrb[0].mxu0 %v467
      %v601 = vpop.f32.mrb[0].mxu0
      %v602 = vadd.f32 %v258, %v601
      %v603 = vpop.f32.mrb[0].mxu0
      %v604 = vpop.f32.mrb[0].mxu0
      %v605 = vadd.f32 %v258, %v604
      %v606 = vpop.f32.mrb[0].mxu0
      %607 = vmatprep.mubr.bf16.mxu0 0
      %608 = vmatmul.mubr.bf16.gmra.mrb[0].mxu0 %v470
      %v609 = vpop.f32.mrb[0].mxu0
      %v610 = vadd.f32 %v258, %v609
      %v611 = vpop.f32.mrb[0].mxu0
      %v612 = vpop.f32.mrb[0].mxu0
      %v613 = vadd.f32 %v258, %v612
      %v614 = vpop.f32.mrb[0].mxu0
      %615 = vmatprep.mubr.bf16.mxu0 0
      %616 = vmatmul.mubr.bf16.gmra.mrb[0].mxu0 %v473
      %v617 = vpop.f32.mrb[0].mxu0
      %v618 = vadd.f32 %v258, %v617
      %v619 = vpop.f32.mrb[0].mxu0
      %v620 = vpop.f32.mrb[0].mxu0
      %v621 = vadd.f32 %v258, %v620
      %v622 = vpop.f32.mrb[0].mxu0
      %623 = vmatprep.mubr.bf16.mxu0 0
      %624 = vmatmul.mubr.bf16.gmra.mrb[0].mxu0 %v476
      %v625 = vpop.f32.mrb[0].mxu0
      %v626 = vadd.f32 %v258, %v625
      %v627 = vpop.f32.mrb[0].mxu0
      %v628 = vpop.f32.mrb[0].mxu0
      %v629 = vadd.f32 %v258, %v628
      %v630 = vpop.f32.mrb[0].mxu0
      %631 = vmatprep.mubr.bf16.mxu0 0
      %632 = vmatmul.mubr.bf16.gmra.mrb[0].mxu0 %v479
      %v633 = vpop.f32.mrb[0].mxu0
      %v634 = vadd.f32 %v258, %v633
      %v635 = vpop.f32.mrb[0].mxu0
      %v636 = vpop.f32.mrb[0].mxu0
      %v637 = vadd.f32 %v258, %v636
      %v638 = vpop.f32.mrb[0].mxu0
      %639 = vmatprep.mubr.bf16.mxu0 0
      %640 = vmatmul.mubr.bf16.gmra.mrb[0].mxu0 %v482
      %v641 = vpop.f32.mrb[0].mxu0
      %v642 = vadd.f32 %v258, %v641
      %v643 = vpop.f32.mrb[0].mxu0
      %v644 = vpop.f32.mrb[0].mxu0
      %v645 = vadd.f32 %v258, %v644
      %v646 = vpop.f32.mrb[0].mxu0
      %647 = vmatprep.mubr.bf16.mxu0 0
      %648 = vmatmul.mubr.bf16.gmra.mrb[0].mxu0 %v485
      %v649 = vpop.f32.mrb[0].mxu0
      %v650 = vadd.f32 %v258, %v649
      %v651 = vpop.f32.mrb[0].mxu0
      %v652 = vpop.f32.mrb[0].mxu0
      %v653 = vadd.f32 %v258, %v652
      %v654 = vpop.f32.mrb[0].mxu0
      %655 = vmatprep.mubr.bf16.mxu0 0
      %656 = vmatmul.mubr.bf16.gmra.mrb[0].mxu0 %v488
      %v657 = vpop.f32.mrb[0].mxu0
      %v658 = vadd.f32 %v258, %v657
      %v659 = vpop.f32.mrb[0].mxu0
      %v660 = vpop.f32.mrb[0].mxu0
      %v661 = vadd.f32 %v258, %v660
      %v662 = vpop.f32.mrb[0].mxu0
      %663 = vmatprep.mubr.bf16.mxu0 0
      %664 = vmatmul.mubr.bf16.gmra.mrb[0].mxu0 %v491
      %v665 = vpop.f32.mrb[0].mxu0
      %v666 = vadd.f32 %v258, %v665
      %v667 = vpop.f32.mrb[0].mxu0
      %v668 = vpop.f32.mrb[0].mxu0
      %v669 = vadd.f32 %v258, %v668
      %v670 = vpop.f32.mrb[0].mxu0
      %671 = vmatprep.mubr.bf16.mxu0 0
      %672 = vmatmul.mubr.bf16.gmra.mrb[0].mxu0 %v494
      %v673 = vpop.f32.mrb[0].mxu0
      %v674 = vadd.f32 %v258, %v673
      %v675 = vpop.f32.mrb[0].mxu0
      %v676 = vpop.f32.mrb[0].mxu0
      %v677 = vadd.f32 %v258, %v676
      %v678 = vpop.f32.mrb[0].mxu0
      %679 = vmatprep.mubr.bf16.mxu0 0
      %680 = vmatmul.mubr.bf16.gmra.mrb[0].mxu0 %v497
      %v681 = vpop.f32.mrb[0].mxu0
      %v682 = vadd.f32 %v258, %v681
      %v683 = vpop.f32.mrb[0].mxu0
      %v684 = vpop.f32.mrb[0].mxu0
      %v685 = vadd.f32 %v258, %v684
      %v686 = vpop.f32.mrb[0].mxu0
      %687 = vmatprep.mubr.bf16.mxu0 0
      %688 = vmatmul.mubr.bf16.gmra.mrb[0].mxu0 %v500
      %v689 = vpop.f32.mrb[0].mxu0
      %v690 = vadd.f32 %v258, %v689
      %v691 = vpop.f32.mrb[0].mxu0
      %v692 = vpop.f32.mrb[0].mxu0
      %v693 = vadd.f32 %v258, %v692
      %v694 = vpop.f32.mrb[0].mxu0
      %695 = vmatprep.mubr.bf16.mxu0 0
      %696 = vmatmul.mubr.bf16.gmra.mrb[0].mxu0 %v503
      %v697 = vpop.f32.mrb[0].mxu0
      %v698 = vadd.f32 %v258, %v697
      %v699 = vpop.f32.mrb[0].mxu0
      %v700 = vpop.f32.mrb[0].mxu0
      %v701 = vadd.f32 %v258, %v700
      %v702 = vpop.f32.mrb[0].mxu0
      %703 = vmatprep.mubr.bf16.mxu0 0
      %704 = vmatmul.mubr.bf16.gmra.mrb[0].mxu0 %v506
      %v705 = vpop.f32.mrb[0].mxu0
      %v706 = vadd.f32 %v258, %v705
      %v707 = vpop.f32.mrb[0].mxu0
      %v708 = vpop.f32.mrb[0].mxu0
      %v709 = vadd.f32 %v258, %v708
      %v710 = vpop.f32.mrb[0].mxu0
      %711 = vmatprep.mubr.bf16.mxu0 0
      %712 = vmatmul.mubr.bf16.gmra.mrb[0].mxu0 %v509
      %v713 = vpop.f32.mrb[0].mxu0
      %v714 = vadd.f32 %v258, %v713
      %v715 = vpop.f32.mrb[0].mxu0
      %v716 = vpop.f32.mrb[0].mxu0
      %v717 = vadd.f32 %v258, %v716
      %v718 = vpop.f32.mrb[0].mxu0
      %719 = vmatprep.mubr.bf16.mxu0 0
      %720 = vmatmul.mubr.bf16.gmra.mrb[0].mxu0 %v512
      %v721 = vpop.f32.mrb[0].mxu0
      %v722 = vadd.f32 %v258, %v721
      %v723 = vpop.f32.mrb[0].mxu0
      %v724 = vpop.f32.mrb[0].mxu0
      %v725 = vadd.f32 %v258, %v724
      %v726 = vpop.f32.mrb[0].mxu0
      %727 = vmatprep.mubr.bf16.mxu0 0
      %728 = vmatmul.mubr.bf16.gmra.mrb[0].mxu0 %v515
      %v729 = vpop.f32.mrb[0].mxu0
      %v730 = vadd.f32 %v258, %v729
      %v731 = vpop.f32.mrb[0].mxu0
      %v732 = vpop.f32.mrb[0].mxu0
      %v733 = vadd.f32 %v258, %v732
      %v734 = vpop.f32.mrb[0].mxu0
      %735 = vmatprep.mubr.bf16.mxu0 0
      %736 = vmatmul.mubr.bf16.gmra.mrb[0].mxu0 %v518
      %v737 = vpop.f32.mrb[0].mxu0
      %v738 = vadd.f32 %v258, %v737
      %v739 = vpop.f32.mrb[0].mxu0
      %v740 = vpop.f32.mrb[0].mxu0
      %v741 = vadd.f32 %v258, %v740
      %v742 = vpop.f32.mrb[0].mxu0
      %743 = vmatprep.mubr.bf16.mxu0 0
      %744 = vmatmul.mubr.bf16.gmra.mrb[0].mxu0 %v521
      %v745 = vpop.f32.mrb[0].mxu0
      %v746 = vadd.f32 %v258, %v745
      %v747 = vpop.f32.mrb[0].mxu0
      %v748 = vpop.f32.mrb[0].mxu0
      %v749 = vadd.f32 %v258, %v748
      %v750 = vpop.f32.mrb[0].mxu0
      %751 = vmatprep.mubr.bf16.mxu0 0
      %752 = vmatmul.mubr.bf16.gmra.mrb[0].mxu0 %v524
      %v753 = vpop.f32.mrb[0].mxu0
      %v754 = vadd.f32 %v258, %v753
      %v755 = vpop.f32.mrb[0].mxu0
      %v756 = vpop.f32.mrb[0].mxu0
      %v757 = vadd.f32 %v258, %v756
      %v758 = vpop.f32.mrb[0].mxu0
      %759 = vmatprep.mubr.bf16.mxu0 0
      %760 = vmatmul.mubr.bf16.gmra.mrb[0].mxu0 %v527
      %v761 = vpop.f32.mrb[0].mxu0
      %v762 = vadd.f32 %v258, %v761
      %v763 = vpop.f32.mrb[0].mxu0
      %v764 = vpop.f32.mrb[0].mxu0
      %v765 = vadd.f32 %v258, %v764
      %v766 = vpop.f32.mrb[0].mxu0
      %767 = vmatprep.mubr.bf16.mxu0 0
      %768 = vmatmul.mubr.bf16.gmra.mrb[0].mxu0 %v530
      %v769 = vpop.f32.mrb[0].mxu0
      %v770 = vadd.f32 %v258, %v769
      %v771 = vpop.f32.mrb[0].mxu0
      %v772 = vpop.f32.mrb[0].mxu0
      %v773 = vadd.f32 %v258, %v772
      %v774 = vpop.f32.mrb[0].mxu0
      %775 = vmatprep.mubr.bf16.mxu0 0
      %776 = vmatmul.mubr.bf16.gmra.mrb[0].mxu0 %v533
      %v777 = vpop.f32.mrb[0].mxu0
      %v778 = vadd.f32 %v258, %v777
      %v779 = vpop.f32.mrb[0].mxu0
      %v780 = vpop.f32.mrb[0].mxu0
      %v781 = vadd.f32 %v258, %v780
      %v782 = vpop.f32.mrb[0].mxu0
      %783 = vmatprep.mubr.bf16.mxu0 0
      %784 = vmatmul.mubr.bf16.gmra.mrb[0].mxu0 %v536
      %v785 = vpop.f32.mrb[0].mxu0
      %v786 = vadd.f32 %v258, %v785
      %v787 = vpop.f32.mrb[0].mxu0
      %v788 = vpop.f32.mrb[0].mxu0
      %v789 = vadd.f32 %v258, %v788
      %v790 = vpop.f32.mrb[0].mxu0
      %791 = vmatprep.mubr.bf16.mxu0 0
      %792 = vmatmul.mubr.bf16.gmra.mrb[0].mxu0 %v539
      %v793 = vpop.f32.mrb[0].mxu0
      %v794 = vadd.f32 %v258, %v793
      %v795 = vpop.f32.mrb[0].mxu0
      %v796 = vpop.f32.mrb[0].mxu0
      %v797 = vadd.f32 %v258, %v796
      %v798 = vpop.f32.mrb[0].mxu0
      %799 = vmatprep.mubr.bf16.mxu0 0
      %800 = vmatmul.mubr.bf16.gmra.mrb[0].mxu0 %v542
      %v801 = vpop.f32.mrb[0].mxu0
      %v802 = vadd.f32 %v258, %v801
      %v803 = vpop.f32.mrb[0].mxu0
      %v804 = vpop.f32.mrb[0].mxu0
      %v805 = vadd.f32 %v258, %v804
      %v806 = vpop.f32.mrb[0].mxu0
      %807 = vmatprep.mubr.bf16.mxu0 0
      %808 = vmatmul.mubr.bf16.gmra.mrb[0].mxu0 %v545
      %v809 = vpop.f32.mrb[0].mxu0
      %v810 = vadd.f32 %v258, %v809
      %v811 = vpop.f32.mrb[0].mxu0
      %v812 = vpop.f32.mrb[0].mxu0
      %v813 = vadd.f32 %v258, %v812
      %v814 = vpop.f32.mrb[0].mxu0
      %815 = vmatprep.mubr.bf16.mxu0 0
      %816 = vmatmul.mubr.bf16.gmra.mrb[0].mxu0 %v548
      %v817 = vpop.f32.mrb[0].mxu0
      %v818 = vadd.f32 %v258, %v817
      %v819 = vpop.f32.mrb[0].mxu0
      %v820 = vpop.f32.mrb[0].mxu0
      %v821 = vadd.f32 %v258, %v820
      %v822 = vpop.f32.mrb[0].mxu0
      %823 = vmatprep.mubr.bf16.mxu0 0
      %824 = vmatmul.mubr.bf16.gmra.mrb[0].mxu0 %v551
      %v825 = vpop.f32.mrb[0].mxu0
      %v826 = vadd.f32 %v258, %v825
      %v827 = vpop.f32.mrb[0].mxu0
      %v828 = vpop.f32.mrb[0].mxu0
      %v829 = vadd.f32 %v258, %v828
      %v830 = vpop.f32.mrb[0].mxu0
      %831 = vmatprep.mubr.bf16.mxu0 0
      %832 = vmatmul.mubr.bf16.gmra.mrb[0].mxu0 %v554
      %v833 = vpop.f32.mrb[0].mxu0
      %v834 = vadd.f32 %v258, %v833
      %v835 = vpop.f32.mrb[0].mxu0
      %v836 = vpop.f32.mrb[0].mxu0
      %v837 = vadd.f32 %v258, %v836
      %v838 = vpop.f32.mrb[0].mxu0
      %839 = vmatprep.mubr.bf16.mxu0 0
      %840 = vmatmul.mubr.bf16.gmra.mrb[0].mxu0 %v557
      %v841 = vpop.f32.mrb[0].mxu0
      %v842 = vadd.f32 %v258, %v841
      %v843 = vpop.f32.mrb[0].mxu0
      %v844 = vpop.f32.mrb[0].mxu0
      %v845 = vadd.f32 %v258, %v844
      %v846 = vpop.f32.mrb[0].mxu0
      %847 = vdwg.mxu0
      %v848 = vmax.f32 %v594, 0.0
      %v849 = vmax.f32 %v597, 0.0
      %v850 = vmax.f32 %v602, 0.0
      %v851 = vmax.f32 %v605, 0.0
      %v852 = vmax.f32 %v610, 0.0
      %v853 = vmax.f32 %v613, 0.0
      %v854 = vmax.f32 %v618, 0.0
      %v855 = vmax.f32 %v621, 0.0
      %v856 = vmax.f32 %v626, 0.0
      %v857 = vmax.f32 %v629, 0.0
      %v858 = vmax.f32 %v634, 0.0
      %v859 = vmax.f32 %v637, 0.0
      %v860 = vmax.f32 %v642, 0.0
      %v861 = vmax.f32 %v645, 0.0
      %v862 = vmax.f32 %v650, 0.0
      %v863 = vmax.f32 %v653, 0.0
      %v864 = vmax.f32 %v658, 0.0
      %v865 = vmax.f32 %v661, 0.0
      %v866 = vmax.f32 %v666, 0.0
      %v867 = vmax.f32 %v669, 0.0
      %v868 = vmax.f32 %v674, 0.0
      %v869 = vmax.f32 %v677, 0.0
      %v870 = vmax.f32 %v682, 0.0
      %v871 = vmax.f32 %v685, 0.0
      %v872 = vmax.f32 %v690, 0.0
      %v873 = vmax.f32 %v693, 0.0
      %v874 = vmax.f32 %v698, 0.0
      %v875 = vmax.f32 %v701, 0.0
      %v876 = vmax.f32 %v706, 0.0
      %v877 = vmax.f32 %v709, 0.0
      %v878 = vmax.f32 %v714, 0.0
      %v879 = vmax.f32 %v717, 0.0
      %v880 = vmax.f32 %v722, 0.0
      %v881 = vmax.f32 %v725, 0.0
      %v882 = vmax.f32 %v730, 0.0
      %v883 = vmax.f32 %v733, 0.0
      %v884 = vmax.f32 %v738, 0.0
      %v885 = vmax.f32 %v741, 0.0
      %v886 = vmax.f32 %v746, 0.0
      %v887 = vmax.f32 %v749, 0.0
      %v888 = vmax.f32 %v754, 0.0
      %v889 = vmax.f32 %v757, 0.0
      %v890 = vmax.f32 %v762, 0.0
      %v891 = vmax.f32 %v765, 0.0
      %v892 = vmax.f32 %v770, 0.0
      %v893 = vmax.f32 %v773, 0.0
      %v894 = vmax.f32 %v778, 0.0
      %v895 = vmax.f32 %v781, 0.0
      %v896 = vmax.f32 %v786, 0.0
      %v897 = vmax.f32 %v789, 0.0
      %v898 = vmax.f32 %v794, 0.0
      %v899 = vmax.f32 %v797, 0.0
      %v900 = vmax.f32 %v802, 0.0
      %v901 = vmax.f32 %v805, 0.0
      %v902 = vmax.f32 %v810, 0.0
      %v903 = vmax.f32 %v813, 0.0
      %v904 = vmax.f32 %v818, 0.0
      %v905 = vmax.f32 %v821, 0.0
      %v906 = vmax.f32 %v826, 0.0
      %v907 = vmax.f32 %v829, 0.0
      %v908 = vmax.f32 %v834, 0.0
      %v909 = vmax.f32 %v837, 0.0
      %v910 = vmax.f32 %v842, 0.0
      %v911 = vmax.f32 %v845, 0.0
      %v912 = vpack.c.bf16 %v849, %v848
      %v913 = vpack.c.bf16 %v851, %v850
      %v914 = vpack.c.bf16 %v853, %v852
      %v915 = vpack.c.bf16 %v855, %v854
      %v916 = vpack.c.bf16 %v857, %v856
      %v917 = vpack.c.bf16 %v859, %v858
      %v918 = vpack.c.bf16 %v861, %v860
      %v919 = vpack.c.bf16 %v863, %v862
      %v920 = vpack.c.bf16 %v865, %v864
      %v921 = vpack.c.bf16 %v867, %v866
      %v922 = vpack.c.bf16 %v869, %v868
      %v923 = vpack.c.bf16 %v871, %v870
      %v924 = vpack.c.bf16 %v873, %v872
      %v925 = vpack.c.bf16 %v875, %v874
      %v926 = vpack.c.bf16 %v877, %v876
      %v927 = vpack.c.bf16 %v879, %v878
      %v928 = vpack.c.bf16 %v881, %v880
      %v929 = vpack.c.bf16 %v883, %v882
      %v930 = vpack.c.bf16 %v885, %v884
      %v931 = vpack.c.bf16 %v887, %v886
      %v932 = vpack.c.bf16 %v889, %v888
      %v933 = vpack.c.bf16 %v891, %v890
      %v934 = vpack.c.bf16 %v893, %v892
      %v935 = vpack.c.bf16 %v895, %v894
      %v936 = vpack.c.bf16 %v897, %v896
      %v937 = vpack.c.bf16 %v899, %v898
      %v938 = vpack.c.bf16 %v901, %v900
      %v939 = vpack.c.bf16 %v903, %v902
      %v940 = vpack.c.bf16 %v905, %v904
      %v941 = vpack.c.bf16 %v907, %v906
      %v942 = vpack.c.bf16 %v909, %v908
      %v943 = vpack.c.bf16 %v911, %v910
      %v976 = vunpack.c.l.b16 %v912
      %v977 = vunpack.c.h.b16 %v912
      %v978 = vunpack.c.l.b16 %v913
      %v979 = vunpack.c.h.b16 %v913
      %v980 = vunpack.c.l.b16 %v914
      %v981 = vunpack.c.h.b16 %v914
      %v982 = vunpack.c.l.b16 %v915
      %v983 = vunpack.c.h.b16 %v915
      %v984 = vunpack.c.l.b16 %v916
      %v985 = vunpack.c.h.b16 %v916
      %v986 = vunpack.c.l.b16 %v917
      %v987 = vunpack.c.h.b16 %v917
      %v988 = vunpack.c.l.b16 %v918
      %v989 = vunpack.c.h.b16 %v918
      %v990 = vunpack.c.l.b16 %v919
      %v991 = vunpack.c.h.b16 %v919
      %v992 = vunpack.c.l.b16 %v920
      %v993 = vunpack.c.h.b16 %v920
      %v994 = vunpack.c.l.b16 %v921
      %v995 = vunpack.c.h.b16 %v921
      %v996 = vunpack.c.l.b16 %v922
      %v997 = vunpack.c.h.b16 %v922
      %v998 = vunpack.c.l.b16 %v923
      %v999 = vunpack.c.h.b16 %v923
      %v1000 = vunpack.c.l.b16 %v924
      %v1001 = vunpack.c.h.b16 %v924
      %v1002 = vunpack.c.l.b16 %v925
      %v1003 = vunpack.c.h.b16 %v925
      %v1004 = vunpack.c.l.b16 %v926
      %v1005 = vunpack.c.h.b16 %v926
      %v1006 = vunpack.c.l.b16 %v927
      %v1007 = vunpack.c.h.b16 %v927
      %v1008 = vunpack.c.l.b16 %v928
      %v1009 = vunpack.c.h.b16 %v928
      %v1010 = vunpack.c.l.b16 %v929
      %v1011 = vunpack.c.h.b16 %v929
      %v1012 = vunpack.c.l.b16 %v930
      %v1013 = vunpack.c.h.b16 %v930
      %v1014 = vunpack.c.l.b16 %v931
      %v1015 = vunpack.c.h.b16 %v931
      %v1016 = vunpack.c.l.b16 %v932
      %v1017 = vunpack.c.h.b16 %v932
      %v1018 = vunpack.c.l.b16 %v933
      %v1019 = vunpack.c.h.b16 %v933
      %v1020 = vunpack.c.l.b16 %v934
      %v1021 = vunpack.c.h.b16 %v934
      %v1022 = vunpack.c.l.b16 %v935
      %v1023 = vunpack.c.h.b16 %v935
      %v1024 = vunpack.c.l.b16 %v936
      %v1025 = vunpack.c.h.b16 %v936
      %v1026 = vunpack.c.l.b16 %v937
      %v1027 = vunpack.c.h.b16 %v937
      %v1028 = vunpack.c.l.b16 %v938
      %v1029 = vunpack.c.h.b16 %v938
      %v1030 = vunpack.c.l.b16 %v939
      %v1031 = vunpack.c.h.b16 %v939
      %v1032 = vunpack.c.l.b16 %v940
      %v1033 = vunpack.c.h.b16 %v940
      %v1034 = vunpack.c.l.b16 %v941
      %v1035 = vunpack.c.h.b16 %v941
      %v1036 = vunpack.c.l.b16 %v942
      %v1037 = vunpack.c.h.b16 %v942
      %v1038 = vunpack.c.l.b16 %v943
      %v1039 = vunpack.c.h.b16 %v943
      %v1040 = vpack.c.b16 %v976, %v976
      %v1041 = vpack.c.b16 %v977, %v977
      %v1042 = vpack.c.b16 %v978, %v978
      %v1043 = vpack.c.b16 %v979, %v979
      %v1044 = vpack.c.b16 %v980, %v980
      %v1045 = vpack.c.b16 %v981, %v981
      %v1046 = vpack.c.b16 %v982, %v982
      %v1047 = vpack.c.b16 %v983, %v983
      %v1048 = vpack.c.b16 %v984, %v984
      %v1049 = vpack.c.b16 %v985, %v985
      %v1050 = vpack.c.b16 %v986, %v986
      %v1051 = vpack.c.b16 %v987, %v987
      %v1052 = vpack.c.b16 %v988, %v988
      %v1053 = vpack.c.b16 %v989, %v989
      %v1054 = vpack.c.b16 %v990, %v990
      %v1055 = vpack.c.b16 %v991, %v991
      %v1056 = vpack.c.b16 %v992, %v992
      %v1057 = vpack.c.b16 %v993, %v993
      %v1058 = vpack.c.b16 %v994, %v994
      %v1059 = vpack.c.b16 %v995, %v995
      %v1060 = vpack.c.b16 %v996, %v996
      %v1061 = vpack.c.b16 %v997, %v997
      %v1062 = vpack.c.b16 %v998, %v998
      %v1063 = vpack.c.b16 %v999, %v999
      %v1064 = vpack.c.b16 %v1000, %v1000
      %v1065 = vpack.c.b16 %v1001, %v1001
      %v1066 = vpack.c.b16 %v1002, %v1002
      %v1067 = vpack.c.b16 %v1003, %v1003
      %v1068 = vpack.c.b16 %v1004, %v1004
      %v1069 = vpack.c.b16 %v1005, %v1005
      %v1070 = vpack.c.b16 %v1006, %v1006
      %v1071 = vpack.c.b16 %v1007, %v1007
      %v1072 = vpack.c.b16 %v1008, %v1008
      %v1073 = vpack.c.b16 %v1009, %v1009
      %v1074 = vpack.c.b16 %v1010, %v1010
      %v1075 = vpack.c.b16 %v1011, %v1011
      %v1076 = vpack.c.b16 %v1012, %v1012
      %v1077 = vpack.c.b16 %v1013, %v1013
      %v1078 = vpack.c.b16 %v1014, %v1014
      %v1079 = vpack.c.b16 %v1015, %v1015
      %v1080 = vpack.c.b16 %v1016, %v1016
      %v1081 = vpack.c.b16 %v1017, %v1017
      %v1082 = vpack.c.b16 %v1018, %v1018
      %v1083 = vpack.c.b16 %v1019, %v1019
      %v1084 = vpack.c.b16 %v1020, %v1020
      %v1085 = vpack.c.b16 %v1021, %v1021
      %v1086 = vpack.c.b16 %v1022, %v1022
      %v1087 = vpack.c.b16 %v1023, %v1023
      %v1088 = vpack.c.b16 %v1024, %v1024
      %v1089 = vpack.c.b16 %v1025, %v1025
      %v1090 = vpack.c.b16 %v1026, %v1026
      %v1091 = vpack.c.b16 %v1027, %v1027
      %v1092 = vpack.c.b16 %v1028, %v1028
      %v1093 = vpack.c.b16 %v1029, %v1029
      %v1094 = vpack.c.b16 %v1030, %v1030
      %v1095 = vpack.c.b16 %v1031, %v1031
      %v1096 = vpack.c.b16 %v1032, %v1032
      %v1097 = vpack.c.b16 %v1033, %v1033
      %v1098 = vpack.c.b16 %v1034, %v1034
      %v1099 = vpack.c.b16 %v1035, %v1035
      %v1100 = vpack.c.b16 %v1036, %v1036
      %v1101 = vpack.c.b16 %v1037, %v1037
      %v1102 = vpack.c.b16 %v1038, %v1038
      %v1103 = vpack.c.b16 %v1039, %v1039
      %1168 = vst [vmem:[%s172] sm:$0xf] %v1040
      %1169 = vst [vmem:[%s172 + $0x4] sm:$0xf] %v1041
      %1170 = vst [vmem:[%s172 + $0x8] sm:$0xf] %v1042
      %1171 = vst [vmem:[%s172 + $0xc] sm:$0xf] %v1043
      %1172 = vst [vmem:[%s172 + $0x10] sm:$0xf] %v1044
      %1173 = vst [vmem:[%s172 + $0x14] sm:$0xf] %v1045
      %1174 = vst [vmem:[%s172 + $0x18] sm:$0xf] %v1046
      %1175 = vst [vmem:[%s172 + $0x1c] sm:$0xf] %v1047
      %1176 = vst [vmem:[%s172 + $0x20] sm:$0xf] %v1048
      %1177 = vst [vmem:[%s172 + $0x24] sm:$0xf] %v1049
      %1178 = vst [vmem:[%s172 + $0x28] sm:$0xf] %v1050
      %1179 = vst [vmem:[%s172 + $0x2c] sm:$0xf] %v1051
      %1180 = vst [vmem:[%s172 + $0x30] sm:$0xf] %v1052
      %1181 = vst [vmem:[%s172 + $0x34] sm:$0xf] %v1053
      %1182 = vst [vmem:[%s172 + $0x38] sm:$0xf] %v1054
      %1183 = vst [vmem:[%s172 + $0x3c] sm:$0xf] %v1055
      %1184 = vst [vmem:[%s172 + $0x40] sm:$0xf] %v1056
      %1185 = vst [vmem:[%s172 + $0x44] sm:$0xf] %v1057
      %1186 = vst [vmem:[%s172 + $0x48] sm:$0xf] %v1058
      %1187 = vst [vmem:[%s172 + $0x4c] sm:$0xf] %v1059
      %1188 = vst [vmem:[%s172 + $0x50] sm:$0xf] %v1060
      %1189 = vst [vmem:[%s172 + $0x54] sm:$0xf] %v1061
      %1190 = vst [vmem:[%s172 + $0x58] sm:$0xf] %v1062
      %1191 = vst [vmem:[%s172 + $0x5c] sm:$0xf] %v1063
      %1192 = vst [vmem:[%s172 + $0x60] sm:$0xf] %v1064
      %1193 = vst [vmem:[%s172 + $0x64] sm:$0xf] %v1065
      %1194 = vst [vmem:[%s172 + $0x68] sm:$0xf] %v1066
      %1195 = vst [vmem:[%s172 + $0x6c] sm:$0xf] %v1067
      %1196 = vst [vmem:[%s172 + $0x70] sm:$0xf] %v1068
      %1197 = vst [vmem:[%s172 + $0x74] sm:$0xf] %v1069
      %1198 = vst [vmem:[%s172 + $0x78] sm:$0xf] %v1070
      %1199 = vst [vmem:[%s172 + $0x7c] sm:$0xf] %v1071
      %1200 = vst [vmem:[%s172 + $0x80] sm:$0xf] %v1072
      %1201 = vst [vmem:[%s172 + $0x84] sm:$0xf] %v1073
      %1202 = vst [vmem:[%s172 + $0x88] sm:$0xf] %v1074
      %1203 = vst [vmem:[%s172 + $0x8c] sm:$0xf] %v1075
      %1204 = vst [vmem:[%s172 + $0x90] sm:$0xf] %v1076
      %1205 = vst [vmem:[%s172 + $0x94] sm:$0xf] %v1077
      %1206 = vst [vmem:[%s172 + $0x98] sm:$0xf] %v1078
      %1207 = vst [vmem:[%s172 + $0x9c] sm:$0xf] %v1079
      %1208 = vst [vmem:[%s172 + $0xa0] sm:$0xf] %v1080
      %1209 = vst [vmem:[%s172 + $0xa4] sm:$0xf] %v1081
      %1210 = vst [vmem:[%s172 + $0xa8] sm:$0xf] %v1082
      %1211 = vst [vmem:[%s172 + $0xac] sm:$0xf] %v1083
      %1212 = vst [vmem:[%s172 + $0xb0] sm:$0xf] %v1084
      %1213 = vst [vmem:[%s172 + $0xb4] sm:$0xf] %v1085
      %1214 = vst [vmem:[%s172 + $0xb8] sm:$0xf] %v1086
      %1215 = vst [vmem:[%s172 + $0xbc] sm:$0xf] %v1087
      %1216 = vst [vmem:[%s172 + $0xc0] sm:$0xf] %v1088
      %1217 = vst [vmem:[%s172 + $0xc4] sm:$0xf] %v1089
      %1218 = vst [vmem:[%s172 + $0xc8] sm:$0xf] %v1090
      %1219 = vst [vmem:[%s172 + $0xcc] sm:$0xf] %v1091
      %1220 = vst [vmem:[%s172 + $0xd0] sm:$0xf] %v1092
      %1221 = vst [vmem:[%s172 + $0xd4] sm:$0xf] %v1093
      %1222 = vst [vmem:[%s172 + $0xd8] sm:$0xf] %v1094
      %1223 = vst [vmem:[%s172 + $0xdc] sm:$0xf] %v1095
      %1224 = vst [vmem:[%s172 + $0xe0] sm:$0xf] %v1096
      %1225 = vst [vmem:[%s172 + $0xe4] sm:$0xf] %v1097
      %1226 = vst [vmem:[%s172 + $0xe8] sm:$0xf] %v1098
      %1227 = vst [vmem:[%s172 + $0xec] sm:$0xf] %v1099
      %1228 = vst [vmem:[%s172 + $0xf0] sm:$0xf] %v1100
      %1229 = vst [vmem:[%s172 + $0xf4] sm:$0xf] %v1101
      %1230 = vst [vmem:[%s172 + $0xf8] sm:$0xf] %v1102
      %1231 = vst [vmem:[%s172 + $0xfc] sm:$0xf] %v1103
      %s1232 = smul.u32 64, %s14
      %p1233 = scmp.lt.s32.totalorder %s1232, 127
      %s1234 = scalar_select %p1233, %s1232, 127
      %s1235 = smul.addr %s1234, 4
      %s1236 = scalar_lea.vmem %s3, %s1235
      // Predicated region
      $region33: #{hourglass_forward.6} parent=31 // pred_check
        %p1237 = pneg %p100
      $region34: #{hourglass_forward.6} parent=31 // pred_check_branch
        %1239 = sbr.rel (%p1237) target = $region36
      $region35: #{hourglass_forward.6} parent=31 // pred_region
        %s1240 = smul.u32 64, %s14
      $region36: #{hourglass_forward.6} parent=31 // pred_fallthru
        _
    $region32: #{hourglass_forward.6} parent=5 // pred_fallthru
      _
    %p1241 = scmp.le.s32.totalorder 2, %s9
    // Predicated region
    $region37: #{hourglass_forward.6} parent=5 // pred_check
      %p1242 = pneg %p1241
    $region38: #{hourglass_forward.6} parent=5 // pred_check_branch
      %1244 = sbr.rel (%p1242) target = $region40
    $region39: #{hourglass_forward.6} parent=5 // pred_region
      %s1245 = ssub.s32 %s9, 2
      // Predicated region
      $region41: #{hourglass_forward.6} parent=39 // pred_check
        %p1246 = pneg %p106
      $region42: #{hourglass_forward.6} parent=39 // pred_check_branch
        %1248 = sbr.rel (%p1246) target = $region44
      $region43: #{hourglass_forward.6} parent=39 // pred_region
        %s1249 = smul.u32 64, %s15
        %p1250 = scmp.lt.s32.totalorder %s1249, 127
        %s1251 = scalar_select %p1250, %s1249, 127
        %s1252 = smul.addr %s1251, 4
        %s1253 = scalar_lea.vmem %s3, %s1252
      $region44: #{hourglass_forward.6} parent=39 // pred_fallthru
        _
    $region40: #{hourglass_forward.6} parent=5 // pred_fallthru
      _
  $region6: #{hourglass_forward.6} parent=0 // loop_footer
    %s13 = sadd.s32 1, %s9
  $region7: #{hourglass_forward.6} parent=0 // loop_footer_branch
    %8 = sbr.rel target = $region3
  $region8: #{hourglass_forward.6} parent=0 // loop_exit
    _

// kernel: hourglass_forward.7
$region0: #{hourglass_forward.7}
  #allocation0 [shape = 'u32[]', space=smem, size = 0x4, offset = 0x4, fixed_abs, tag = 'smem constant byte address 0x4 - core index']
  #allocation1 [shape = 'u32[144,128]{1,0:T(1,128)}', space=vmem, size = 0x12000, scoped, tag = 'internal scratch']
  %s0 = inlined_call_operand.vmem [shape: bf16[1024,224], index: 0, kind: input, shape index: {}]
  %s1 = inlined_call_operand.vmem [shape: bf16[224,128], index: 1, kind: input, shape index: {}]
  %s2 = inlined_call_operand.vmem [shape: f32[1,128], index: 2, kind: input, shape index: {}]
  %s3 = inlined_call_operand.vmem [shape: bf16[1024,128], index: 3, kind: output, shape index: {}]
  %s4 = sld [smem:[#allocation0]]
  $region45: #{hourglass_forward.7} parent=0
    _
  %s6 = ssub.s32 1, %s4
  %s7 = scalar_select 0, %s6, %s4
  loop: start=0, step=1, limit=4
  $region2: #{hourglass_forward.7} parent=0 // loop_pre_header
    _
  $region3: #{hourglass_forward.7} parent=0 // loop_header
    %s9 = sphi 0, %s13
    %p10 = scmp.ge.s32.totalorder %s9, 4
    %s19 = sphi 0, %s21
    %s22 = sphi 0, %s19
    %s23 = sphi 0, %s22
    %s39 = sphi 0, %s23
    %s43 = sphi 0, %s43
    %s45 = sphi 0, %s43
    %s46 = sphi 0, %s45
    %s60 = sphi 0, %s46
    %s64 = sphi 0, %s64
    %s66 = sphi 0, %s64
    %s67 = sphi 0, %s66
    %s81 = sphi 0, %s67
    %s87 = sphi 0, %s89
    %s90 = sphi 0, %s87
    %s91 = sphi 0, %s90
    %s107 = sphi 0, %s91
  $region4: #{hourglass_forward.7} parent=0 // loop_header_branch
    %12 = sbr.rel (%p10) target = $region8
  $region5: #{hourglass_forward.7} parent=0 // loop_body
    %s14 = ssub.s32 %s9, 1
    %s15 = ssub.s32 %s9, 2
    %s16 = sadd.s32 %s9, 1
    %s17 = ssub.s32 %s9, %s16
    %p18 = scmp.eq.s32.totalorder %s17, 0
    %s20 = sadd.s32 %s19, 1
    %s21 = scalar_select %p18, %s19, %s20
    %p24 = pneg %p18
    %p25 = scmp.eq.s32.totalorder %s9, 1
    %p26 = por %p24, %p25
    %p27 = scmp.ne.s32.totalorder %s19, %s22
    %p28 = scmp.eq.s32.totalorder %s9, 0
    %p29 = por %p27, %p28
    %p30 = scmp.ne.s32.totalorder %s19, %s22
    %p31 = scmp.eq.s32.totalorder %s14, 1
    %p32 = por %p30, %p31
    %p33 = scmp.ne.s32.totalorder %s22, %s23
    %p34 = scmp.eq.s32.totalorder %s14, 0
    %p35 = por %p33, %p34
    %p36 = scmp.ne.s32.totalorder %s22, %s23
    %p37 = scmp.eq.s32.totalorder %s15, 1
    %p38 = por %p36, %p37
    %p40 = scmp.ne.s32.totalorder %s23, %s39
    %p41 = scmp.eq.s32.totalorder %s15, 0
    %p42 = por %p40, %p41
    %s44 = sadd.s32 %s43, 1
    %p47 = scmp.eq.s32.totalorder %s9, 1
    %p48 = scmp.ne.s32.totalorder %s43, %s45
    %p49 = scmp.eq.s32.totalorder %s9, 0
    %p50 = por %p48, %p49
    %p51 = scmp.ne.s32.totalorder %s43, %s45
    %p52 = scmp.eq.s32.totalorder %s14, 1
    %p53 = por %p51, %p52
    %p54 = scmp.ne.s32.totalorder %s45, %s46
    %p55 = scmp.eq.s32.totalorder %s14, 0
    %p56 = por %p54, %p55
    %p57 = scmp.ne.s32.totalorder %s45, %s46
    %p58 = scmp.eq.s32.totalorder %s15, 1
    %p59 = por %p57, %p58
    %p61 = scmp.ne.s32.totalorder %s46, %s60
    %p62 = scmp.eq.s32.totalorder %s15, 0
    %p63 = por %p61, %p62
    %s65 = sadd.s32 %s64, 1
    %p68 = scmp.eq.s32.totalorder %s9, 1
    %p69 = scmp.ne.s32.totalorder %s64, %s66
    %p70 = scmp.eq.s32.totalorder %s9, 0
    %p71 = por %p69, %p70
    %p72 = scmp.ne.s32.totalorder %s64, %s66
    %p73 = scmp.eq.s32.totalorder %s14, 1
    %p74 = por %p72, %p73
    %p75 = scmp.ne.s32.totalorder %s66, %s67
    %p76 = scmp.eq.s32.totalorder %s14, 0
    %p77 = por %p75, %p76
    %p78 = scmp.ne.s32.totalorder %s66, %s67
    %p79 = scmp.eq.s32.totalorder %s15, 1
    %p80 = por %p78, %p79
    %p82 = scmp.ne.s32.totalorder %s67, %s81
    %p83 = scmp.eq.s32.totalorder %s15, 0
    %p84 = por %p82, %p83
    %s85 = ssub.s32 %s9, %s16
    %p86 = scmp.eq.s32.totalorder %s85, 0
    %s88 = sadd.s32 %s87, 1
    %s89 = scalar_select %p86, %s87, %s88
    %p92 = pneg %p86
    %p93 = scmp.eq.s32.totalorder %s9, 1
    %p94 = por %p92, %p93
    %p95 = scmp.ne.s32.totalorder %s87, %s90
    %p96 = scmp.eq.s32.totalorder %s9, 0
    %p97 = por %p95, %p96
    %p98 = scmp.ne.s32.totalorder %s87, %s90
    %p99 = scmp.eq.s32.totalorder %s14, 1
    %p100 = por %p98, %p99
    %p101 = scmp.ne.s32.totalorder %s90, %s91
    %p102 = scmp.eq.s32.totalorder %s14, 0
    %p103 = por %p101, %p102
    %p104 = scmp.ne.s32.totalorder %s90, %s91
    %p105 = scmp.eq.s32.totalorder %s15, 1
    %p106 = por %p104, %p105
    %p108 = scmp.ne.s32.totalorder %s91, %s107
    %p109 = scmp.eq.s32.totalorder %s15, 0
    %p110 = por %p108, %p109
    %p111 = scmp.le.s32.totalorder 1, %s9
    %p112 = scmp.lt.s32.totalorder %s9, 3
    %p113 = pnand %p111, %p112
    %p114 = pneg %p113
    // Predicated region
    $region9: #{hourglass_forward.7} parent=5 // pred_check
      _
    $region10: #{hourglass_forward.7} parent=5 // pred_check_branch
      %116 = sbr.rel (%p113) target = $region12
    $region11: #{hourglass_forward.7} parent=5 // pred_region
      %s117 = ssub.s32 %s9, 1
      // Predicated region
      $region13: #{hourglass_forward.7} parent=11 // pred_check
        %p118 = pneg %p56
      $region14: #{hourglass_forward.7} parent=11 // pred_check_branch
        %120 = sbr.rel (%p118) target = $region16
      $region15: #{hourglass_forward.7} parent=11 // pred_region
        _
      $region16: #{hourglass_forward.7} parent=11 // pred_fallthru
        _
      // Predicated region
      $region17: #{hourglass_forward.7} parent=11 // pred_check
        %p121 = pneg %p77
      $region18: #{hourglass_forward.7} parent=11 // pred_check_branch
        %123 = sbr.rel (%p121) target = $region20
      $region19: #{hourglass_forward.7} parent=11 // pred_region
        _
      $region20: #{hourglass_forward.7} parent=11 // pred_fallthru
        _
    $region12: #{hourglass_forward.7} parent=5 // pred_fallthru
      _
    %p124 = scmp.lt.s32.totalorder %s9, 2
    // Predicated region
    $region21: #{hourglass_forward.7} parent=5 // pred_check
      %p125 = pneg %p124
    $region22: #{hourglass_forward.7} parent=5 // pred_check_branch
      %127 = sbr.rel (%p125) target = $region24
    $region23: #{hourglass_forward.7} parent=5 // pred_region
      // Predicated region
      $region25: #{hourglass_forward.7} parent=23 // pred_check
        %p128 = pneg %p29
      $region26: #{hourglass_forward.7} parent=23 // pred_check_branch
        %130 = sbr.rel (%p128) target = $region28
      $region27: #{hourglass_forward.7} parent=23 // pred_region
        %s131 = smul.u32 64, %s9
        %p132 = scmp.lt.s32.totalorder %s131, 127
        %s133 = scalar_select %p132, %s131, 127
        %s134 = smul.addr %s133, 2
        %s135 = smul.addr %s134, 4
        %s136 = scalar_lea.vmem %s0, %s135
        %s137 = smul.u32 64, %s9
      $region28: #{hourglass_forward.7} parent=23 // pred_fallthru
        _
    $region24: #{hourglass_forward.7} parent=5 // pred_fallthru
      _
    %p138 = scmp.le.s32.totalorder 1, %s9
    %p139 = scmp.lt.s32.totalorder %s9, 3
    %p140 = pnand %p138, %p139
    %p141 = pneg %p140
    // Predicated region
    $region29: #{hourglass_forward.7} parent=5 // pred_check
      _
    $region30: #{hourglass_forward.7} parent=5 // pred_check_branch
      %143 = sbr.rel (%p140) target = $region32
    $region31: #{hourglass_forward.7} parent=5 // pred_region
      %s144 = ssub.s32 %s9, 1
      %s145 = smul.u32 64, %s14
      %p146 = scmp.lt.s32.totalorder %s145, 127
      %s147 = scalar_select %p146, %s145, 127
      %s148 = smul.addr %s147, 2
      %s149 = smul.addr %s148, 4
      %s150 = scalar_lea.vmem %s0, %s149
      %p151 = pneg %p35
      %p152 = pneg %p32
      %p153 = pneg %p56
      %p154 = pneg %p53
      %p155 = pneg %p77
      %p156 = pneg %p74
      %p157 = pneg %p103
      %p158 = pneg %p100
      %s159 = smul.u32 64, %s14
      %p160 = scmp.lt.s32.totalorder %s159, 127
      %s161 = scalar_select %p160, %s159, 127
      %s162 = smul.addr %s161, 4
      %s163 = scalar_lea.vmem %s3, %s162
      %s164 = smul.u32 64, %s14
      %p165 = scmp.lt.s32.totalorder %s164, 127
      %s166 = scalar_select %p165, %s164, 127
      %s167 = smul.addr %s166, 2
      %s168 = smul.addr %s167, 4
      %s169 = scalar_lea.vmem %s0, %s168
      %s170 = smul.u32 64, %s14
      %s171 = smul.u32 64, %s14
      %p172 = scmp.lt.s32.totalorder %s171, 127
      %s173 = scalar_select %p172, %s171, 127
      %s174 = smul.addr %s173, 4
      %s175 = scalar_lea.vmem %s3, %s174
      %s176 = smul.u32 64, %s14
      %v178 = vld [vmem:[%s169] sm:$0xff]
      %v179 = vld [vmem:[%s169 + $0x8] sm:$0xff]
      %v180 = vld [vmem:[%s169 + $0x10] sm:$0xff]
      %v181 = vld [vmem:[%s169 + $0x18] sm:$0xff]
      %v182 = vld [vmem:[%s169 + $0x20] sm:$0xff]
      %v183 = vld [vmem:[%s169 + $0x28] sm:$0xff]
      %v184 = vld [vmem:[%s169 + $0x30] sm:$0xff]
      %v185 = vld [vmem:[%s169 + $0x38] sm:$0xff]
      %v186 = vld [vmem:[%s169 + $0x40] sm:$0xff]
      %v187 = vld [vmem:[%s169 + $0x48] sm:$0xff]
      %v188 = vld [vmem:[%s169 + $0x50] sm:$0xff]
      %v189 = vld [vmem:[%s169 + $0x58] sm:$0xff]
      %v190 = vld [vmem:[%s169 + $0x60] sm:$0xff]
      %v191 = vld [vmem:[%s169 + $0x68] sm:$0xff]
      %v192 = vld [vmem:[%s169 + $0x70] sm:$0xff]
      %v193 = vld [vmem:[%s169 + $0x78] sm:$0xff]
      %v194 = vld [vmem:[%s169 + $0x80] sm:$0xff]
      %v195 = vld [vmem:[%s169 + $0x88] sm:$0xff]
      %v196 = vld [vmem:[%s169 + $0x90] sm:$0xff]
      %v197 = vld [vmem:[%s169 + $0x98] sm:$0xff]
      %v198 = vld [vmem:[%s169 + $0xa0] sm:$0xff]
      %v199 = vld [vmem:[%s169 + $0xa8] sm:$0xff]
      %v200 = vld [vmem:[%s169 + $0xb0] sm:$0xff]
      %v201 = vld [vmem:[%s169 + $0xb8] sm:$0xff]
      %v202 = vld [vmem:[%s169 + $0xc0] sm:$0xff]
      %v203 = vld [vmem:[%s169 + $0xc8] sm:$0xff]
      %v204 = vld [vmem:[%s169 + $0xd0] sm:$0xff]
      %v205 = vld [vmem:[%s169 + $0xd8] sm:$0xff]
      %v206 = vld [vmem:[%s169 + $0xe0] sm:$0xff]
      %v207 = vld [vmem:[%s169 + $0xe8] sm:$0xff]
      %v208 = vld [vmem:[%s169 + $0xf0] sm:$0xff]
      %v209 = vld [vmem:[%s169 + $0xf8] sm:$0xff]
      %v210 = vld [vmem:[%s169 + $0x100] sm:$0xff]
      %v211 = vld [vmem:[%s169 + $0x108] sm:$0xff]
      %v212 = vld [vmem:[%s169 + $0x110] sm:$0xff]
      %v213 = vld [vmem:[%s169 + $0x118] sm:$0xff]
      %v214 = vld [vmem:[%s169 + $0x120] sm:$0xff]
      %v215 = vld [vmem:[%s169 + $0x128] sm:$0xff]
      %v216 = vld [vmem:[%s169 + $0x130] sm:$0xff]
      %v217 = vld [vmem:[%s169 + $0x138] sm:$0xff]
      %v218 = vld [vmem:[%s169 + $0x140] sm:$0xff]
      %v219 = vld [vmem:[%s169 + $0x148] sm:$0xff]
      %v220 = vld [vmem:[%s169 + $0x150] sm:$0xff]
      %v221 = vld [vmem:[%s169 + $0x158] sm:$0xff]
      %v222 = vld [vmem:[%s169 + $0x160] sm:$0xff]
      %v223 = vld [vmem:[%s169 + $0x168] sm:$0xff]
      %v224 = vld [vmem:[%s169 + $0x170] sm:$0xff]
      %v225 = vld [vmem:[%s169 + $0x178] sm:$0xff]
      %v226 = vld [vmem:[%s169 + $0x180] sm:$0xff]
      %v227 = vld [vmem:[%s169 + $0x188] sm:$0xff]
      %v228 = vld [vmem:[%s169 + $0x190] sm:$0xff]
      %v229 = vld [vmem:[%s169 + $0x198] sm:$0xff]
      %v230 = vld [vmem:[%s169 + $0x1a0] sm:$0xff]
      %v231 = vld [vmem:[%s169 + $0x1a8] sm:$0xff]
      %v232 = vld [vmem:[%s169 + $0x1b0] sm:$0xff]
      %v233 = vld [vmem:[%s169 + $0x1b8] sm:$0xff]
      %v234 = vld [vmem:[%s169 + $0x1c0] sm:$0xff]
      %v235 = vld [vmem:[%s169 + $0x1c8] sm:$0xff]
      %v236 = vld [vmem:[%s169 + $0x1d0] sm:$0xff]
      %v237 = vld [vmem:[%s169 + $0x1d8] sm:$0xff]
      %v238 = vld [vmem:[%s169 + $0x1e0] sm:$0xff]
      %v239 = vld [vmem:[%s169 + $0x1e8] sm:$0xff]
      %v240 = vld [vmem:[%s169 + $0x1f0] sm:$0xff]
      %v241 = vld [vmem:[%s169 + $0x1f8] sm:$0xff]
      %v242 = vld [vmem:[%s1] sm:$0xf]
      %v243 = vld [vmem:[%s1 + $0x4] sm:$0xf]
      %v244 = vld [vmem:[%s1 + $0x8] sm:$0xf]
      %v245 = vld [vmem:[%s1 + $0xc] sm:$0xf]
      %v246 = vld [vmem:[%s1 + $0x10] sm:$0xf]
      %v247 = vld [vmem:[%s1 + $0x14] sm:$0xf]
      %v248 = vld [vmem:[%s1 + $0x18] sm:$0xf]
      %v249 = vld [vmem:[%s1 + $0x1c] sm:$0xf]
      %v250 = vld [vmem:[%s1 + $0x20] sm:$0xf]
      %v251 = vld [vmem:[%s1 + $0x24] sm:$0xf]
      %v252 = vld [vmem:[%s1 + $0x28] sm:$0xf]
      %v253 = vld [vmem:[%s1 + $0x2c] sm:$0xf]
      %v254 = vld [vmem:[%s1 + $0x30] sm:$0xf]
      %v255 = vld [vmem:[%s1 + $0x34] sm:$0xf]
      %v256 = vld [vmem:[%s1 + $0x38] sm:$0xf]
      %v257 = vld [vmem:[%s1 + $0x3c] sm:$0xf]
      %v258 = vld [vmem:[%s1 + $0x40] sm:$0xf]
      %v259 = vld [vmem:[%s1 + $0x44] sm:$0xf]
      %v260 = vld [vmem:[%s1 + $0x48] sm:$0xf]
      %v261 = vld [vmem:[%s1 + $0x4c] sm:$0xf]
      %v262 = vld [vmem:[%s1 + $0x50] sm:$0xf]
      %v263 = vld [vmem:[%s1 + $0x54] sm:$0xf]
      %v264 = vld [vmem:[%s1 + $0x58] sm:$0xf]
      %v265 = vld [vmem:[%s1 + $0x5c] sm:$0xf]
      %v266 = vld [vmem:[%s1 + $0x60] sm:$0xf]
      %v267 = vld [vmem:[%s1 + $0x64] sm:$0xf]
      %v268 = vld [vmem:[%s1 + $0x68] sm:$0xf]
      %v269 = vld [vmem:[%s1 + $0x6c] sm:$0xf]
      %v270 = vld [vmem:[%s2] sm:$0x1]
      %v272 = vlaneseq
      %v273 = vshrl.u32 %v272, 7
      %v274 = vsub.s32 0, %v273
      %v275 = vrot.slane %v270, %v274
      %v341 = vunpack.c.l.b16 %v178
      %v342 = vunpack.c.h.b16 %v178
      %v343 = vunpack.c.l.b16 %v179
      %v344 = vunpack.c.h.b16 %v179
      %v345 = vunpack.c.l.b16 %v180
      %v346 = vunpack.c.h.b16 %v180
      %v347 = vunpack.c.l.b16 %v181
      %v348 = vunpack.c.h.b16 %v181
      %v349 = vunpack.c.l.b16 %v182
      %v350 = vunpack.c.h.b16 %v182
      %v351 = vunpack.c.l.b16 %v183
      %v352 = vunpack.c.h.b16 %v183
      %v353 = vunpack.c.l.b16 %v184
      %v354 = vunpack.c.h.b16 %v184
      %v355 = vunpack.c.l.b16 %v185
      %v356 = vunpack.c.h.b16 %v185
      %v357 = vunpack.c.l.b16 %v186
      %v358 = vunpack.c.h.b16 %v186
      %v359 = vunpack.c.l.b16 %v187
      %v360 = vunpack.c.h.b16 %v187
      %v361 = vunpack.c.l.b16 %v188
      %v362 = vunpack.c.h.b16 %v188
      %v363 = vunpack.c.l.b16 %v189
      %v364 = vunpack.c.h.b16 %v189
      %v365 = vunpack.c.l.b16 %v190
      %v366 = vunpack.c.h.b16 %v190
      %v367 = vunpack.c.l.b16 %v191
      %v368 = vunpack.c.h.b16 %v191
      %v369 = vunpack.c.l.b16 %v192
      %v370 = vunpack.c.h.b16 %v192
      %v371 = vunpack.c.l.b16 %v193
      %v372 = vunpack.c.h.b16 %v193
      %v373 = vunpack.c.l.b16 %v194
      %v374 = vunpack.c.h.b16 %v194
      %v375 = vunpack.c.l.b16 %v195
      %v376 = vunpack.c.h.b16 %v195
      %v377 = vunpack.c.l.b16 %v196
      %v378 = vunpack.c.h.b16 %v196
      %v379 = vunpack.c.l.b16 %v197
      %v380 = vunpack.c.h.b16 %v197
      %v381 = vunpack.c.l.b16 %v198
      %v382 = vunpack.c.h.b16 %v198
      %v383 = vunpack.c.l.b16 %v199
      %v384 = vunpack.c.h.b16 %v199
      %v385 = vunpack.c.l.b16 %v200
      %v386 = vunpack.c.h.b16 %v200
      %v387 = vunpack.c.l.b16 %v201
      %v388 = vunpack.c.h.b16 %v201
      %v389 = vunpack.c.l.b16 %v202
      %v390 = vunpack.c.h.b16 %v202
      %v391 = vunpack.c.l.b16 %v203
      %v392 = vunpack.c.h.b16 %v203
      %v393 = vunpack.c.l.b16 %v204
      %v394 = vunpack.c.h.b16 %v204
      %v395 = vunpack.c.l.b16 %v205
      %v396 = vunpack.c.h.b16 %v205
      %v397 = vunpack.c.l.b16 %v206
      %v398 = vunpack.c.h.b16 %v206
      %v399 = vunpack.c.l.b16 %v207
      %v400 = vunpack.c.h.b16 %v207
      %v401 = vunpack.c.l.b16 %v208
      %v402 = vunpack.c.h.b16 %v208
      %v403 = vunpack.c.l.b16 %v209
      %v404 = vunpack.c.h.b16 %v209
      %v405 = vunpack.c.l.b16 %v210
      %v406 = vunpack.c.h.b16 %v210
      %v407 = vunpack.c.l.b16 %v211
      %v408 = vunpack.c.h.b16 %v211
      %v409 = vunpack.c.l.b16 %v212
      %v410 = vunpack.c.h.b16 %v212
      %v411 = vunpack.c.l.b16 %v213
      %v412 = vunpack.c.h.b16 %v213
      %v413 = vunpack.c.l.b16 %v214
      %v414 = vunpack.c.h.b16 %v214
      %v415 = vunpack.c.l.b16 %v215
      %v416 = vunpack.c.h.b16 %v215
      %v417 = vunpack.c.l.b16 %v216
      %v418 = vunpack.c.h.b16 %v216
      %v419 = vunpack.c.l.b16 %v217
      %v420 = vunpack.c.h.b16 %v217
      %v421 = vunpack.c.l.b16 %v218
      %v422 = vunpack.c.h.b16 %v218
      %v423 = vunpack.c.l.b16 %v219
      %v424 = vunpack.c.h.b16 %v219
      %v425 = vunpack.c.l.b16 %v220
      %v426 = vunpack.c.h.b16 %v220
      %v427 = vunpack.c.l.b16 %v221
      %v428 = vunpack.c.h.b16 %v221
      %v429 = vunpack.c.l.b16 %v222
      %v430 = vunpack.c.h.b16 %v222
      %v431 = vunpack.c.l.b16 %v223
      %v432 = vunpack.c.h.b16 %v223
      %v433 = vunpack.c.l.b16 %v224
      %v434 = vunpack.c.h.b16 %v224
      %v435 = vunpack.c.l.b16 %v225
      %v436 = vunpack.c.h.b16 %v225
      %v437 = vunpack.c.l.b16 %v226
      %v438 = vunpack.c.h.b16 %v226
      %v439 = vunpack.c.l.b16 %v227
      %v440 = vunpack.c.h.b16 %v227
      %v441 = vunpack.c.l.b16 %v228
      %v442 = vunpack.c.h.b16 %v228
      %v443 = vunpack.c.l.b16 %v229
      %v444 = vunpack.c.h.b16 %v229
      %v445 = vunpack.c.l.b16 %v230
      %v446 = vunpack.c.h.b16 %v230
      %v447 = vunpack.c.l.b16 %v231
      %v448 = vunpack.c.h.b16 %v231
      %v449 = vunpack.c.l.b16 %v232
      %v450 = vunpack.c.h.b16 %v232
      %v451 = vunpack.c.l.b16 %v233
      %v452 = vunpack.c.h.b16 %v233
      %v453 = vunpack.c.l.b16 %v234
      %v454 = vunpack.c.h.b16 %v234
      %v455 = vunpack.c.l.b16 %v235
      %v456 = vunpack.c.h.b16 %v235
      %v457 = vunpack.c.l.b16 %v236
      %v458 = vunpack.c.h.b16 %v236
      %v459 = vunpack.c.l.b16 %v237
      %v460 = vunpack.c.h.b16 %v237
      %v461 = vunpack.c.l.b16 %v238
      %v462 = vunpack.c.h.b16 %v238
      %v463 = vunpack.c.l.b16 %v239
      %v464 = vunpack.c.h.b16 %v239
      %v465 = vunpack.c.l.b16 %v240
      %v466 = vunpack.c.h.b16 %v240
      %v467 = vunpack.c.l.b16 %v241
      %v468 = vunpack.c.h.b16 %v241
      %v469 = vpack.c.b16 %v343, %v341
      %v470 = vpack.c.b16 %v344, %v342
      %v471 = vpack.c.b16 %v347, %v345
      %v472 = vpack.c.b16 %v348, %v346
      %v473 = vpack.c.b16 %v351, %v349
      %v474 = vpack.c.b16 %v352, %v350
      %v475 = vpack.c.b16 %v355, %v353
      %v476 = vpack.c.b16 %v356, %v354
      %v477 = vpack.c.b16 %v359, %v357
      %v478 = vpack.c.b16 %v360, %v358
      %v479 = vpack.c.b16 %v363, %v361
      %v480 = vpack.c.b16 %v364, %v362
      %v481 = vpack.c.b16 %v367, %v365
      %v482 = vpack.c.b16 %v368, %v366
      %v483 = vpack.c.b16 %v371, %v369
      %v484 = vpack.c.b16 %v372, %v370
      %v485 = vpack.c.b16 %v375, %v373
      %v486 = vpack.c.b16 %v376, %v374
      %v487 = vpack.c.b16 %v379, %v377
      %v488 = vpack.c.b16 %v380, %v378
      %v489 = vpack.c.b16 %v383, %v381
      %v490 = vpack.c.b16 %v384, %v382
      %v491 = vpack.c.b16 %v387, %v385
      %v492 = vpack.c.b16 %v388, %v386
      %v493 = vpack.c.b16 %v391, %v389
      %v494 = vpack.c.b16 %v392, %v390
      %v495 = vpack.c.b16 %v395, %v393
      %v496 = vpack.c.b16 %v396, %v394
      %v497 = vpack.c.b16 %v399, %v397
      %v498 = vpack.c.b16 %v400, %v398
      %v499 = vpack.c.b16 %v403, %v401
      %v500 = vpack.c.b16 %v404, %v402
      %v501 = vpack.c.b16 %v407, %v405
      %v502 = vpack.c.b16 %v408, %v406
      %v503 = vpack.c.b16 %v411, %v409
      %v504 = vpack.c.b16 %v412, %v410
      %v505 = vpack.c.b16 %v415, %v413
      %v506 = vpack.c.b16 %v416, %v414
      %v507 = vpack.c.b16 %v419, %v417
      %v508 = vpack.c.b16 %v420, %v418
      %v509 = vpack.c.b16 %v423, %v421
      %v510 = vpack.c.b16 %v424, %v422
      %v511 = vpack.c.b16 %v427, %v425
      %v512 = vpack.c.b16 %v428, %v426
      %v513 = vpack.c.b16 %v431, %v429
      %v514 = vpack.c.b16 %v432, %v430
      %v515 = vpack.c.b16 %v435, %v433
      %v516 = vpack.c.b16 %v436, %v434
      %v517 = vpack.c.b16 %v439, %v437
      %v518 = vpack.c.b16 %v440, %v438
      %v519 = vpack.c.b16 %v443, %v441
      %v520 = vpack.c.b16 %v444, %v442
      %v521 = vpack.c.b16 %v447, %v445
      %v522 = vpack.c.b16 %v448, %v446
      %v523 = vpack.c.b16 %v451, %v449
      %v524 = vpack.c.b16 %v452, %v450
      %v525 = vpack.c.b16 %v455, %v453
      %v526 = vpack.c.b16 %v456, %v454
      %v527 = vpack.c.b16 %v459, %v457
      %v528 = vpack.c.b16 %v460, %v458
      %v529 = vpack.c.b16 %v463, %v461
      %v530 = vpack.c.b16 %v464, %v462
      %v531 = vpack.c.b16 %v467, %v465
      %v532 = vpack.c.b16 %v468, %v466
      %v593 = vunpack.c.l.b16 %v242
      %v594 = vunpack.c.l.b16 %v243
      %v595 = vunpack.c.l.b16 %v244
      %v596 = vunpack.c.l.b16 %v245
      %v597 = vunpack.c.l.b16 %v246
      %v598 = vunpack.c.l.b16 %v247
      %v599 = vunpack.c.l.b16 %v248
      %v600 = vunpack.c.l.b16 %v249
      %v601 = vunpack.c.l.b16 %v250
      %v602 = vunpack.c.l.b16 %v251
      %v603 = vunpack.c.l.b16 %v252
      %v604 = vunpack.c.l.b16 %v253
      %v605 = vunpack.c.l.b16 %v254
      %v606 = vunpack.c.l.b16 %v255
      %v607 = vunpack.c.l.b16 %v256
      %v608 = vunpack.c.l.b16 %v257
      %v609 = vunpack.c.l.b16 %v258
      %v610 = vunpack.c.l.b16 %v259
      %v611 = vunpack.c.l.b16 %v260
      %v612 = vunpack.c.l.b16 %v261
      %v613 = vunpack.c.l.b16 %v262
      %v614 = vunpack.c.l.b16 %v263
      %v615 = vunpack.c.l.b16 %v264
      %v616 = vunpack.c.l.b16 %v265
      %v617 = vunpack.c.l.b16 %v266
      %v618 = vunpack.c.l.b16 %v267
      %v619 = vunpack.c.l.b16 %v268
      %v620 = vunpack.c.l.b16 %v269
      %v621 = vpack.c.b16 %v594, %v593
      %v622 = vpack.c.b16 %v596, %v595
      %v623 = vpack.c.b16 %v598, %v597
      %v624 = vpack.c.b16 %v600, %v599
      %v625 = vpack.c.b16 %v602, %v601
      %v626 = vpack.c.b16 %v604, %v603
      %v627 = vpack.c.b16 %v606, %v605
      %v628 = vpack.c.b16 %v608, %v607
      %v629 = vpack.c.b16 %v610, %v609
      %v630 = vpack.c.b16 %v612, %v611
      %v631 = vpack.c.b16 %v614, %v613
      %v632 = vpack.c.b16 %v616, %v615
      %v633 = vpack.c.b16 %v618, %v617
      %v634 = vpack.c.b16 %v620, %v619
      %vm649 = vcmask 785408
      %v651 = vsel %vm649, %v470, 0
      %v654 = vsel %vm649, %v472, 0
      %v657 = vsel %vm649, %v474, 0
      %v660 = vsel %vm649, %v476, 0
      %v663 = vsel %vm649, %v478, 0
      %v666 = vsel %vm649, %v480, 0
      %v669 = vsel %vm649, %v482, 0
      %v672 = vsel %vm649, %v484, 0
      %v675 = vsel %vm649, %v486, 0
      %v678 = vsel %vm649, %v488, 0
      %v681 = vsel %vm649, %v490, 0
      %v684 = vsel %vm649, %v492, 0
      %v687 = vsel %vm649, %v494, 0
      %v690 = vsel %vm649, %v496, 0
      %v693 = vsel %vm649, %v498, 0
      %v696 = vsel %vm649, %v500, 0
      %v699 = vsel %vm649, %v502, 0
      %v702 = vsel %vm649, %v504, 0
      %v705 = vsel %vm649, %v506, 0
      %v708 = vsel %vm649, %v508, 0
      %v711 = vsel %vm649, %v510, 0
      %v714 = vsel %vm649, %v512, 0
      %v717 = vsel %vm649, %v514, 0
      %v720 = vsel %vm649, %v516, 0
      %v723 = vsel %vm649, %v518, 0
      %v726 = vsel %vm649, %v520, 0
      %v729 = vsel %vm649, %v522, 0
      %v732 = vsel %vm649, %v524, 0
      %v735 = vsel %vm649, %v526, 0
      %v738 = vsel %vm649, %v528, 0
      %v741 = vsel %vm649, %v530, 0
      %v744 = vsel %vm649, %v532, 0
      %746 = vmatprep.subr.bf16.mxu0 0
      %747 = vmatpush1.bf16.msra.mxu0 %v621
      %748 = vmatprep.subr.bf16.mxu0 0
      %749 = vmatpush1.bf16.msra.mxu0 %v622
      %750 = vmatprep.subr.bf16.mxu0 0
      %751 = vmatpush1.bf16.msra.mxu0 %v623
      %752 = vmatprep.subr.bf16.mxu0 0
      %753 = vmatpush1.bf16.msra.mxu0 %v624
      %754 = vmatprep.subr.bf16.mxu0 0
      %755 = vmatpush1.bf16.msra.mxu0 %v625
      %756 = vmatprep.subr.bf16.mxu0 0
      %757 = vmatpush1.bf16.msra.mxu0 %v626
      %758 = vmatprep.subr.bf16.mxu0 0
      %759 = vmatpush1.bf16.msra.mxu0 %v627
      %760 = vmatprep.subr.bf16.mxu0 0
      %761 = vmatpush1.bf16.msra.mxu0 %v628
      %762 = vmatprep.subr.bf16.mxu0 0
      %763 = vmatpush1.bf16.msra.mxu0 %v629
      %764 = vmatprep.subr.bf16.mxu0 0
      %765 = vmatpush1.bf16.msra.mxu0 %v630
      %766 = vmatprep.subr.bf16.mxu0 0
      %767 = vmatpush1.bf16.msra.mxu0 %v631
      %768 = vmatprep.subr.bf16.mxu0 0
      %769 = vmatpush1.bf16.msra.mxu0 %v632
      %770 = vmatprep.subr.bf16.mxu0 0
      %771 = vmatpush1.bf16.msra.mxu0 %v633
      %772 = vmatprep.subr.bf16.mxu0 0
      %773 = vmatpush1.bf16.msra.mxu0 %v634
      %774 = vmatprep.subr.bf16.mxu0 0
      %775 = vmatpush1.bf16.msra.mxu0 0
      %776 = vmatprep.subr.bf16.mxu0 0
      %777 = vmatpush1.bf16.msra.mxu0 0
      %778 = vmatprep.mubr.bf16.mxu0 %v651
      %779 = vmatmul.mubr.bf16.gmra.mrb[0].mxu0 %v469
      %v780 = vpop.f32.mrb[0].mxu0
      %v781 = vadd.f32 %v275, %v780
      %v782 = vpop.f32.mrb[0].mxu0
      %v783 = vpop.f32.mrb[0].mxu0
      %v784 = vadd.f32 %v275, %v783
      %v785 = vpop.f32.mrb[0].mxu0
      %786 = vmatprep.mubr.bf16.mxu0 %v654
      %787 = vmatmul.mubr.bf16.gmra.mrb[0].mxu0 %v471
      %v788 = vpop.f32.mrb[0].mxu0
      %v789 = vadd.f32 %v275, %v788
      %v790 = vpop.f32.mrb[0].mxu0
      %v791 = vpop.f32.mrb[0].mxu0
      %v792 = vadd.f32 %v275, %v791
      %v793 = vpop.f32.mrb[0].mxu0
      %794 = vmatprep.mubr.bf16.mxu0 %v657
      %795 = vmatmul.mubr.bf16.gmra.mrb[0].mxu0 %v473
      %v796 = vpop.f32.mrb[0].mxu0
      %v797 = vadd.f32 %v275, %v796
      %v798 = vpop.f32.mrb[0].mxu0
      %v799 = vpop.f32.mrb[0].mxu0
      %v800 = vadd.f32 %v275, %v799
      %v801 = vpop.f32.mrb[0].mxu0
      %802 = vmatprep.mubr.bf16.mxu0 %v660
      %803 = vmatmul.mubr.bf16.gmra.mrb[0].mxu0 %v475
      %v804 = vpop.f32.mrb[0].mxu0
      %v805 = vadd.f32 %v275, %v804
      %v806 = vpop.f32.mrb[0].mxu0
      %v807 = vpop.f32.mrb[0].mxu0
      %v808 = vadd.f32 %v275, %v807
      %v809 = vpop.f32.mrb[0].mxu0
      %810 = vmatprep.mubr.bf16.mxu0 %v663
      %811 = vmatmul.mubr.bf16.gmra.mrb[0].mxu0 %v477
      %v812 = vpop.f32.mrb[0].mxu0
      %v813 = vadd.f32 %v275, %v812
      %v814 = vpop.f32.mrb[0].mxu0
      %v815 = vpop.f32.mrb[0].mxu0
      %v816 = vadd.f32 %v275, %v815
      %v817 = vpop.f32.mrb[0].mxu0
      %818 = vmatprep.mubr.bf16.mxu0 %v666
      %819 = vmatmul.mubr.bf16.gmra.mrb[0].mxu0 %v479
      %v820 = vpop.f32.mrb[0].mxu0
      %v821 = vadd.f32 %v275, %v820
      %v822 = vpop.f32.mrb[0].mxu0
      %v823 = vpop.f32.mrb[0].mxu0
      %v824 = vadd.f32 %v275, %v823
      %v825 = vpop.f32.mrb[0].mxu0
      %826 = vmatprep.mubr.bf16.mxu0 %v669
      %827 = vmatmul.mubr.bf16.gmra.mrb[0].mxu0 %v481
      %v828 = vpop.f32.mrb[0].mxu0
      %v829 = vadd.f32 %v275, %v828
      %v830 = vpop.f32.mrb[0].mxu0
      %v831 = vpop.f32.mrb[0].mxu0
      %v832 = vadd.f32 %v275, %v831
      %v833 = vpop.f32.mrb[0].mxu0
      %834 = vmatprep.mubr.bf16.mxu0 %v672
      %835 = vmatmul.mubr.bf16.gmra.mrb[0].mxu0 %v483
      %v836 = vpop.f32.mrb[0].mxu0
      %v837 = vadd.f32 %v275, %v836
      %v838 = vpop.f32.mrb[0].mxu0
      %v839 = vpop.f32.mrb[0].mxu0
      %v840 = vadd.f32 %v275, %v839
      %v841 = vpop.f32.mrb[0].mxu0
      %842 = vmatprep.mubr.bf16.mxu0 %v675
      %843 = vmatmul.mubr.bf16.gmra.mrb[0].mxu0 %v485
      %v844 = vpop.f32.mrb[0].mxu0
      %v845 = vadd.f32 %v275, %v844
      %v846 = vpop.f32.mrb[0].mxu0
      %v847 = vpop.f32.mrb[0].mxu0
      %v848 = vadd.f32 %v275, %v847
      %v849 = vpop.f32.mrb[0].mxu0
      %850 = vmatprep.mubr.bf16.mxu0 %v678
      %851 = vmatmul.mubr.bf16.gmra.mrb[0].mxu0 %v487
      %v852 = vpop.f32.mrb[0].mxu0
      %v853 = vadd.f32 %v275, %v852
      %v854 = vpop.f32.mrb[0].mxu0
      %v855 = vpop.f32.mrb[0].mxu0
      %v856 = vadd.f32 %v275, %v855
      %v857 = vpop.f32.mrb[0].mxu0
      %858 = vmatprep.mubr.bf16.mxu0 %v681
      %859 = vmatmul.mubr.bf16.gmra.mrb[0].mxu0 %v489
      %v860 = vpop.f32.mrb[0].mxu0
      %v861 = vadd.f32 %v275, %v860
      %v862 = vpop.f32.mrb[0].mxu0
      %v863 = vpop.f32.mrb[0].mxu0
      %v864 = vadd.f32 %v275, %v863
      %v865 = vpop.f32.mrb[0].mxu0
      %866 = vmatprep.mubr.bf16.mxu0 %v684
      %867 = vmatmul.mubr.bf16.gmra.mrb[0].mxu0 %v491
      %v868 = vpop.f32.mrb[0].mxu0
      %v869 = vadd.f32 %v275, %v868
      %v870 = vpop.f32.mrb[0].mxu0
      %v871 = vpop.f32.mrb[0].mxu0
      %v872 = vadd.f32 %v275, %v871
      %v873 = vpop.f32.mrb[0].mxu0
      %874 = vmatprep.mubr.bf16.mxu0 %v687
      %875 = vmatmul.mubr.bf16.gmra.mrb[0].mxu0 %v493
      %v876 = vpop.f32.mrb[0].mxu0
      %v877 = vadd.f32 %v275, %v876
      %v878 = vpop.f32.mrb[0].mxu0
      %v879 = vpop.f32.mrb[0].mxu0
      %v880 = vadd.f32 %v275, %v879
      %v881 = vpop.f32.mrb[0].mxu0
      %882 = vmatprep.mubr.bf16.mxu0 %v690
      %883 = vmatmul.mubr.bf16.gmra.mrb[0].mxu0 %v495
      %v884 = vpop.f32.mrb[0].mxu0
      %v885 = vadd.f32 %v275, %v884
      %v886 = vpop.f32.mrb[0].mxu0
      %v887 = vpop.f32.mrb[0].mxu0
      %v888 = vadd.f32 %v275, %v887
      %v889 = vpop.f32.mrb[0].mxu0
      %890 = vmatprep.mubr.bf16.mxu0 %v693
      %891 = vmatmul.mubr.bf16.gmra.mrb[0].mxu0 %v497
      %v892 = vpop.f32.mrb[0].mxu0
      %v893 = vadd.f32 %v275, %v892
      %v894 = vpop.f32.mrb[0].mxu0
      %v895 = vpop.f32.mrb[0].mxu0
      %v896 = vadd.f32 %v275, %v895
      %v897 = vpop.f32.mrb[0].mxu0
      %898 = vmatprep.mubr.bf16.mxu0 %v696
      %899 = vmatmul.mubr.bf16.gmra.mrb[0].mxu0 %v499
      %v900 = vpop.f32.mrb[0].mxu0
      %v901 = vadd.f32 %v275, %v900
      %v902 = vpop.f32.mrb[0].mxu0
      %v903 = vpop.f32.mrb[0].mxu0
      %v904 = vadd.f32 %v275, %v903
      %v905 = vpop.f32.mrb[0].mxu0
      %906 = vmatprep.mubr.bf16.mxu0 %v699
      %907 = vmatmul.mubr.bf16.gmra.mrb[0].mxu0 %v501
      %v908 = vpop.f32.mrb[0].mxu0
      %v909 = vadd.f32 %v275, %v908
      %v910 = vpop.f32.mrb[0].mxu0
      %v911 = vpop.f32.mrb[0].mxu0
      %v912 = vadd.f32 %v275, %v911
      %v913 = vpop.f32.mrb[0].mxu0
      %914 = vmatprep.mubr.bf16.mxu0 %v702
      %915 = vmatmul.mubr.bf16.gmra.mrb[0].mxu0 %v503
      %v916 = vpop.f32.mrb[0].mxu0
      %v917 = vadd.f32 %v275, %v916
      %v918 = vpop.f32.mrb[0].mxu0
      %v919 = vpop.f32.mrb[0].mxu0
      %v920 = vadd.f32 %v275, %v919
      %v921 = vpop.f32.mrb[0].mxu0
      %922 = vmatprep.mubr.bf16.mxu0 %v705
      %923 = vmatmul.mubr.bf16.gmra.mrb[0].mxu0 %v505
      %v924 = vpop.f32.mrb[0].mxu0
      %v925 = vadd.f32 %v275, %v924
      %v926 = vpop.f32.mrb[0].mxu0
      %v927 = vpop.f32.mrb[0].mxu0
      %v928 = vadd.f32 %v275, %v927
      %v929 = vpop.f32.mrb[0].mxu0
      %930 = vmatprep.mubr.bf16.mxu0 %v708
      %931 = vmatmul.mubr.bf16.gmra.mrb[0].mxu0 %v507
      %v932 = vpop.f32.mrb[0].mxu0
      %v933 = vadd.f32 %v275, %v932
      %v934 = vpop.f32.mrb[0].mxu0
      %v935 = vpop.f32.mrb[0].mxu0
      %v936 = vadd.f32 %v275, %v935
      %v937 = vpop.f32.mrb[0].mxu0
      %938 = vmatprep.mubr.bf16.mxu0 %v711
      %939 = vmatmul.mubr.bf16.gmra.mrb[0].mxu0 %v509
      %v940 = vpop.f32.mrb[0].mxu0
      %v941 = vadd.f32 %v275, %v940
      %v942 = vpop.f32.mrb[0].mxu0
      %v943 = vpop.f32.mrb[0].mxu0
      %v944 = vadd.f32 %v275, %v943
      %v945 = vpop.f32.mrb[0].mxu0
      %946 = vmatprep.mubr.bf16.mxu0 %v714
      %947 = vmatmul.mubr.bf16.gmra.mrb[0].mxu0 %v511
      %v948 = vpop.f32.mrb[0].mxu0
      %v949 = vadd.f32 %v275, %v948
      %v950 = vpop.f32.mrb[0].mxu0
      %v951 = vpop.f32.mrb[0].mxu0
      %v952 = vadd.f32 %v275, %v951
      %v953 = vpop.f32.mrb[0].mxu0
      %954 = vmatprep.mubr.bf16.mxu0 %v717
      %955 = vmatmul.mubr.bf16.gmra.mrb[0].mxu0 %v513
      %v956 = vpop.f32.mrb[0].mxu0
      %v957 = vadd.f32 %v275, %v956
      %v958 = vpop.f32.mrb[0].mxu0
      %v959 = vpop.f32.mrb[0].mxu0
      %v960 = vadd.f32 %v275, %v959
      %v961 = vpop.f32.mrb[0].mxu0
      %962 = vmatprep.mubr.bf16.mxu0 %v720
      %963 = vmatmul.mubr.bf16.gmra.mrb[0].mxu0 %v515
      %v964 = vpop.f32.mrb[0].mxu0
      %v965 = vadd.f32 %v275, %v964
      %v966 = vpop.f32.mrb[0].mxu0
      %v967 = vpop.f32.mrb[0].mxu0
      %v968 = vadd.f32 %v275, %v967
      %v969 = vpop.f32.mrb[0].mxu0
      %970 = vmatprep.mubr.bf16.mxu0 %v723
      %971 = vmatmul.mubr.bf16.gmra.mrb[0].mxu0 %v517
      %v972 = vpop.f32.mrb[0].mxu0
      %v973 = vadd.f32 %v275, %v972
      %v974 = vpop.f32.mrb[0].mxu0
      %v975 = vpop.f32.mrb[0].mxu0
      %v976 = vadd.f32 %v275, %v975
      %v977 = vpop.f32.mrb[0].mxu0
      %978 = vmatprep.mubr.bf16.mxu0 %v726
      %979 = vmatmul.mubr.bf16.gmra.mrb[0].mxu0 %v519
      %v980 = vpop.f32.mrb[0].mxu0
      %v981 = vadd.f32 %v275, %v980
      %v982 = vpop.f32.mrb[0].mxu0
      %v983 = vpop.f32.mrb[0].mxu0
      %v984 = vadd.f32 %v275, %v983
      %v985 = vpop.f32.mrb[0].mxu0
      %986 = vmatprep.mubr.bf16.mxu0 %v729
      %987 = vmatmul.mubr.bf16.gmra.mrb[0].mxu0 %v521
      %v988 = vpop.f32.mrb[0].mxu0
      %v989 = vadd.f32 %v275, %v988
      %v990 = vpop.f32.mrb[0].mxu0
      %v991 = vpop.f32.mrb[0].mxu0
      %v992 = vadd.f32 %v275, %v991
      %v993 = vpop.f32.mrb[0].mxu0
      %994 = vmatprep.mubr.bf16.mxu0 %v732
      %995 = vmatmul.mubr.bf16.gmra.mrb[0].mxu0 %v523
      %v996 = vpop.f32.mrb[0].mxu0
      %v997 = vadd.f32 %v275, %v996
      %v998 = vpop.f32.mrb[0].mxu0
      %v999 = vpop.f32.mrb[0].mxu0
      %v1000 = vadd.f32 %v275, %v999
      %v1001 = vpop.f32.mrb[0].mxu0
      %1002 = vmatprep.mubr.bf16.mxu0 %v735
      %1003 = vmatmul.mubr.bf16.gmra.mrb[0].mxu0 %v525
      %v1004 = vpop.f32.mrb[0].mxu0
      %v1005 = vadd.f32 %v275, %v1004
      %v1006 = vpop.f32.mrb[0].mxu0
      %v1007 = vpop.f32.mrb[0].mxu0
      %v1008 = vadd.f32 %v275, %v1007
      %v1009 = vpop.f32.mrb[0].mxu0
      %1010 = vmatprep.mubr.bf16.mxu0 %v738
      %1011 = vmatmul.mubr.bf16.gmra.mrb[0].mxu0 %v527
      %v1012 = vpop.f32.mrb[0].mxu0
      %v1013 = vadd.f32 %v275, %v1012
      %v1014 = vpop.f32.mrb[0].mxu0
      %v1015 = vpop.f32.mrb[0].mxu0
      %v1016 = vadd.f32 %v275, %v1015
      %v1017 = vpop.f32.mrb[0].mxu0
      %1018 = vmatprep.mubr.bf16.mxu0 %v741
      %1019 = vmatmul.mubr.bf16.gmra.mrb[0].mxu0 %v529
      %v1020 = vpop.f32.mrb[0].mxu0
      %v1021 = vadd.f32 %v275, %v1020
      %v1022 = vpop.f32.mrb[0].mxu0
      %v1023 = vpop.f32.mrb[0].mxu0
      %v1024 = vadd.f32 %v275, %v1023
      %v1025 = vpop.f32.mrb[0].mxu0
      %1026 = vmatprep.mubr.bf16.mxu0 %v744
      %1027 = vmatmul.mubr.bf16.gmra.mrb[0].mxu0 %v531
      %v1028 = vpop.f32.mrb[0].mxu0
      %v1029 = vadd.f32 %v275, %v1028
      %v1030 = vpop.f32.mrb[0].mxu0
      %v1031 = vpop.f32.mrb[0].mxu0
      %v1032 = vadd.f32 %v275, %v1031
      %v1033 = vpop.f32.mrb[0].mxu0
      %1034 = vdwg.mxu0
      %v1035 = vmax.f32 %v781, 0.0
      %v1036 = vmax.f32 %v784, 0.0
      %v1037 = vmax.f32 %v789, 0.0
      %v1038 = vmax.f32 %v792, 0.0
      %v1039 = vmax.f32 %v797, 0.0
      %v1040 = vmax.f32 %v800, 0.0
      %v1041 = vmax.f32 %v805, 0.0
      %v1042 = vmax.f32 %v808, 0.0
      %v1043 = vmax.f32 %v813, 0.0
      %v1044 = vmax.f32 %v816, 0.0
      %v1045 = vmax.f32 %v821, 0.0
      %v1046 = vmax.f32 %v824, 0.0
      %v1047 = vmax.f32 %v829, 0.0
      %v1048 = vmax.f32 %v832, 0.0
      %v1049 = vmax.f32 %v837, 0.0
      %v1050 = vmax.f32 %v840, 0.0
      %v1051 = vmax.f32 %v845, 0.0
      %v1052 = vmax.f32 %v848, 0.0
      %v1053 = vmax.f32 %v853, 0.0
      %v1054 = vmax.f32 %v856, 0.0
      %v1055 = vmax.f32 %v861, 0.0
      %v1056 = vmax.f32 %v864, 0.0
      %v1057 = vmax.f32 %v869, 0.0
      %v1058 = vmax.f32 %v872, 0.0
      %v1059 = vmax.f32 %v877, 0.0
      %v1060 = vmax.f32 %v880, 0.0
      %v1061 = vmax.f32 %v885, 0.0
      %v1062 = vmax.f32 %v888, 0.0
      %v1063 = vmax.f32 %v893, 0.0
      %v1064 = vmax.f32 %v896, 0.0
      %v1065 = vmax.f32 %v901, 0.0
      %v1066 = vmax.f32 %v904, 0.0
      %v1067 = vmax.f32 %v909, 0.0
      %v1068 = vmax.f32 %v912, 0.0
      %v1069 = vmax.f32 %v917, 0.0
      %v1070 = vmax.f32 %v920, 0.0
      %v1071 = vmax.f32 %v925, 0.0
      %v1072 = vmax.f32 %v928, 0.0
      %v1073 = vmax.f32 %v933, 0.0
      %v1074 = vmax.f32 %v936, 0.0
      %v1075 = vmax.f32 %v941, 0.0
      %v1076 = vmax.f32 %v944, 0.0
      %v1077 = vmax.f32 %v949, 0.0
      %v1078 = vmax.f32 %v952, 0.0
      %v1079 = vmax.f32 %v957, 0.0
      %v1080 = vmax.f32 %v960, 0.0
      %v1081 = vmax.f32 %v965, 0.0
      %v1082 = vmax.f32 %v968, 0.0
      %v1083 = vmax.f32 %v973, 0.0
      %v1084 = vmax.f32 %v976, 0.0
      %v1085 = vmax.f32 %v981, 0.0
      %v1086 = vmax.f32 %v984, 0.0
      %v1087 = vmax.f32 %v989, 0.0
      %v1088 = vmax.f32 %v992, 0.0
      %v1089 = vmax.f32 %v997, 0.0
      %v1090 = vmax.f32 %v1000, 0.0
      %v1091 = vmax.f32 %v1005, 0.0
      %v1092 = vmax.f32 %v1008, 0.0
      %v1093 = vmax.f32 %v1013, 0.0
      %v1094 = vmax.f32 %v1016, 0.0
      %v1095 = vmax.f32 %v1021, 0.0
      %v1096 = vmax.f32 %v1024, 0.0
      %v1097 = vmax.f32 %v1029, 0.0
      %v1098 = vmax.f32 %v1032, 0.0
      %v1099 = vpack.c.bf16 %v1036, %v1035
      %v1100 = vpack.c.bf16 %v1038, %v1037
      %v1101 = vpack.c.bf16 %v1040, %v1039
      %v1102 = vpack.c.bf16 %v1042, %v1041
      %v1103 = vpack.c.bf16 %v1044, %v1043
      %v1104 = vpack.c.bf16 %v1046, %v1045
      %v1105 = vpack.c.bf16 %v1048, %v1047
      %v1106 = vpack.c.bf16 %v1050, %v1049
      %v1107 = vpack.c.bf16 %v1052, %v1051
      %v1108 = vpack.c.bf16 %v1054, %v1053
      %v1109 = vpack.c.bf16 %v1056, %v1055
      %v1110 = vpack.c.bf16 %v1058, %v1057
      %v1111 = vpack.c.bf16 %v1060, %v1059
      %v1112 = vpack.c.bf16 %v1062, %v1061
      %v1113 = vpack.c.bf16 %v1064, %v1063
      %v1114 = vpack.c.bf16 %v1066, %v1065
      %v1115 = vpack.c.bf16 %v1068, %v1067
      %v1116 = vpack.c.bf16 %v1070, %v1069
      %v1117 = vpack.c.bf16 %v1072, %v1071
      %v1118 = vpack.c.bf16 %v1074, %v1073
      %v1119 = vpack.c.bf16 %v1076, %v1075
      %v1120 = vpack.c.bf16 %v1078, %v1077
      %v1121 = vpack.c.bf16 %v1080, %v1079
      %v1122 = vpack.c.bf16 %v1082, %v1081
      %v1123 = vpack.c.bf16 %v1084, %v1083
      %v1124 = vpack.c.bf16 %v1086, %v1085
      %v1125 = vpack.c.bf16 %v1088, %v1087
      %v1126 = vpack.c.bf16 %v1090, %v1089
      %v1127 = vpack.c.bf16 %v1092, %v1091
      %v1128 = vpack.c.bf16 %v1094, %v1093
      %v1129 = vpack.c.bf16 %v1096, %v1095
      %v1130 = vpack.c.bf16 %v1098, %v1097
      %v1163 = vunpack.c.l.b16 %v1099
      %v1164 = vunpack.c.h.b16 %v1099
      %v1165 = vunpack.c.l.b16 %v1100
      %v1166 = vunpack.c.h.b16 %v1100
      %v1167 = vunpack.c.l.b16 %v1101
      %v1168 = vunpack.c.h.b16 %v1101
      %v1169 = vunpack.c.l.b16 %v1102
      %v1170 = vunpack.c.h.b16 %v1102
      %v1171 = vunpack.c.l.b16 %v1103
      %v1172 = vunpack.c.h.b16 %v1103
      %v1173 = vunpack.c.l.b16 %v1104
      %v1174 = vunpack.c.h.b16 %v1104
      %v1175 = vunpack.c.l.b16 %v1105
      %v1176 = vunpack.c.h.b16 %v1105
      %v1177 = vunpack.c.l.b16 %v1106
      %v1178 = vunpack.c.h.b16 %v1106
      %v1179 = vunpack.c.l.b16 %v1107
      %v1180 = vunpack.c.h.b16 %v1107
      %v1181 = vunpack.c.l.b16 %v1108
      %v1182 = vunpack.c.h.b16 %v1108
      %v1183 = vunpack.c.l.b16 %v1109
      %v1184 = vunpack.c.h.b16 %v1109
      %v1185 = vunpack.c.l.b16 %v1110
      %v1186 = vunpack.c.h.b16 %v1110
      %v1187 = vunpack.c.l.b16 %v1111
      %v1188 = vunpack.c.h.b16 %v1111
      %v1189 = vunpack.c.l.b16 %v1112
      %v1190 = vunpack.c.h.b16 %v1112
      %v1191 = vunpack.c.l.b16 %v1113
      %v1192 = vunpack.c.h.b16 %v1113
      %v1193 = vunpack.c.l.b16 %v1114
      %v1194 = vunpack.c.h.b16 %v1114
      %v1195 = vunpack.c.l.b16 %v1115
      %v1196 = vunpack.c.h.b16 %v1115
      %v1197 = vunpack.c.l.b16 %v1116
      %v1198 = vunpack.c.h.b16 %v1116
      %v1199 = vunpack.c.l.b16 %v1117
      %v1200 = vunpack.c.h.b16 %v1117
      %v1201 = vunpack.c.l.b16 %v1118
      %v1202 = vunpack.c.h.b16 %v1118
      %v1203 = vunpack.c.l.b16 %v1119
      %v1204 = vunpack.c.h.b16 %v1119
      %v1205 = vunpack.c.l.b16 %v1120
      %v1206 = vunpack.c.h.b16 %v1120
      %v1207 = vunpack.c.l.b16 %v1121
      %v1208 = vunpack.c.h.b16 %v1121
      %v1209 = vunpack.c.l.b16 %v1122
      %v1210 = vunpack.c.h.b16 %v1122
      %v1211 = vunpack.c.l.b16 %v1123
      %v1212 = vunpack.c.h.b16 %v1123
      %v1213 = vunpack.c.l.b16 %v1124
      %v1214 = vunpack.c.h.b16 %v1124
      %v1215 = vunpack.c.l.b16 %v1125
      %v1216 = vunpack.c.h.b16 %v1125
      %v1217 = vunpack.c.l.b16 %v1126
      %v1218 = vunpack.c.h.b16 %v1126
      %v1219 = vunpack.c.l.b16 %v1127
      %v1220 = vunpack.c.h.b16 %v1127
      %v1221 = vunpack.c.l.b16 %v1128
      %v1222 = vunpack.c.h.b16 %v1128
      %v1223 = vunpack.c.l.b16 %v1129
      %v1224 = vunpack.c.h.b16 %v1129
      %v1225 = vunpack.c.l.b16 %v1130
      %v1226 = vunpack.c.h.b16 %v1130
      %v1227 = vpack.c.b16 %v1163, %v1163
      %v1228 = vpack.c.b16 %v1164, %v1164
      %v1229 = vpack.c.b16 %v1165, %v1165
      %v1230 = vpack.c.b16 %v1166, %v1166
      %v1231 = vpack.c.b16 %v1167, %v1167
      %v1232 = vpack.c.b16 %v1168, %v1168
      %v1233 = vpack.c.b16 %v1169, %v1169
      %v1234 = vpack.c.b16 %v1170, %v1170
      %v1235 = vpack.c.b16 %v1171, %v1171
      %v1236 = vpack.c.b16 %v1172, %v1172
      %v1237 = vpack.c.b16 %v1173, %v1173
      %v1238 = vpack.c.b16 %v1174, %v1174
      %v1239 = vpack.c.b16 %v1175, %v1175
      %v1240 = vpack.c.b16 %v1176, %v1176
      %v1241 = vpack.c.b16 %v1177, %v1177
      %v1242 = vpack.c.b16 %v1178, %v1178
      %v1243 = vpack.c.b16 %v1179, %v1179
      %v1244 = vpack.c.b16 %v1180, %v1180
      %v1245 = vpack.c.b16 %v1181, %v1181
      %v1246 = vpack.c.b16 %v1182, %v1182
      %v1247 = vpack.c.b16 %v1183, %v1183
      %v1248 = vpack.c.b16 %v1184, %v1184
      %v1249 = vpack.c.b16 %v1185, %v1185
      %v1250 = vpack.c.b16 %v1186, %v1186
      %v1251 = vpack.c.b16 %v1187, %v1187
      %v1252 = vpack.c.b16 %v1188, %v1188
      %v1253 = vpack.c.b16 %v1189, %v1189
      %v1254 = vpack.c.b16 %v1190, %v1190
      %v1255 = vpack.c.b16 %v1191, %v1191
      %v1256 = vpack.c.b16 %v1192, %v1192
      %v1257 = vpack.c.b16 %v1193, %v1193
      %v1258 = vpack.c.b16 %v1194, %v1194
      %v1259 = vpack.c.b16 %v1195, %v1195
      %v1260 = vpack.c.b16 %v1196, %v1196
      %v1261 = vpack.c.b16 %v1197, %v1197
      %v1262 = vpack.c.b16 %v1198, %v1198
      %v1263 = vpack.c.b16 %v1199, %v1199
      %v1264 = vpack.c.b16 %v1200, %v1200
      %v1265 = vpack.c.b16 %v1201, %v1201
      %v1266 = vpack.c.b16 %v1202, %v1202
      %v1267 = vpack.c.b16 %v1203, %v1203
      %v1268 = vpack.c.b16 %v1204, %v1204
      %v1269 = vpack.c.b16 %v1205, %v1205
      %v1270 = vpack.c.b16 %v1206, %v1206
      %v1271 = vpack.c.b16 %v1207, %v1207
      %v1272 = vpack.c.b16 %v1208, %v1208
      %v1273 = vpack.c.b16 %v1209, %v1209
      %v1274 = vpack.c.b16 %v1210, %v1210
      %v1275 = vpack.c.b16 %v1211, %v1211
      %v1276 = vpack.c.b16 %v1212, %v1212
      %v1277 = vpack.c.b16 %v1213, %v1213
      %v1278 = vpack.c.b16 %v1214, %v1214
      %v1279 = vpack.c.b16 %v1215, %v1215
      %v1280 = vpack.c.b16 %v1216, %v1216
      %v1281 = vpack.c.b16 %v1217, %v1217
      %v1282 = vpack.c.b16 %v1218, %v1218
      %v1283 = vpack.c.b16 %v1219, %v1219
      %v1284 = vpack.c.b16 %v1220, %v1220
      %v1285 = vpack.c.b16 %v1221, %v1221
      %v1286 = vpack.c.b16 %v1222, %v1222
      %v1287 = vpack.c.b16 %v1223, %v1223
      %v1288 = vpack.c.b16 %v1224, %v1224
      %v1289 = vpack.c.b16 %v1225, %v1225
      %v1290 = vpack.c.b16 %v1226, %v1226
      %1355 = vst [vmem:[%s175] sm:$0xf] %v1227
      %1356 = vst [vmem:[%s175 + $0x4] sm:$0xf] %v1228
      %1357 = vst [vmem:[%s175 + $0x8] sm:$0xf] %v1229
      %1358 = vst [vmem:[%s175 + $0xc] sm:$0xf] %v1230
      %1359 = vst [vmem:[%s175 + $0x10] sm:$0xf] %v1231
      %1360 = vst [vmem:[%s175 + $0x14] sm:$0xf] %v1232
      %1361 = vst [vmem:[%s175 + $0x18] sm:$0xf] %v1233
      %1362 = vst [vmem:[%s175 + $0x1c] sm:$0xf] %v1234
      %1363 = vst [vmem:[%s175 + $0x20] sm:$0xf] %v1235
      %1364 = vst [vmem:[%s175 + $0x24] sm:$0xf] %v1236
      %1365 = vst [vmem:[%s175 + $0x28] sm:$0xf] %v1237
      %1366 = vst [vmem:[%s175 + $0x2c] sm:$0xf] %v1238
      %1367 = vst [vmem:[%s175 + $0x30] sm:$0xf] %v1239
      %1368 = vst [vmem:[%s175 + $0x34] sm:$0xf] %v1240
      %1369 = vst [vmem:[%s175 + $0x38] sm:$0xf] %v1241
      %1370 = vst [vmem:[%s175 + $0x3c] sm:$0xf] %v1242
      %1371 = vst [vmem:[%s175 + $0x40] sm:$0xf] %v1243
      %1372 = vst [vmem:[%s175 + $0x44] sm:$0xf] %v1244
      %1373 = vst [vmem:[%s175 + $0x48] sm:$0xf] %v1245
      %1374 = vst [vmem:[%s175 + $0x4c] sm:$0xf] %v1246
      %1375 = vst [vmem:[%s175 + $0x50] sm:$0xf] %v1247
      %1376 = vst [vmem:[%s175 + $0x54] sm:$0xf] %v1248
      %1377 = vst [vmem:[%s175 + $0x58] sm:$0xf] %v1249
      %1378 = vst [vmem:[%s175 + $0x5c] sm:$0xf] %v1250
      %1379 = vst [vmem:[%s175 + $0x60] sm:$0xf] %v1251
      %1380 = vst [vmem:[%s175 + $0x64] sm:$0xf] %v1252
      %1381 = vst [vmem:[%s175 + $0x68] sm:$0xf] %v1253
      %1382 = vst [vmem:[%s175 + $0x6c] sm:$0xf] %v1254
      %1383 = vst [vmem:[%s175 + $0x70] sm:$0xf] %v1255
      %1384 = vst [vmem:[%s175 + $0x74] sm:$0xf] %v1256
      %1385 = vst [vmem:[%s175 + $0x78] sm:$0xf] %v1257
      %1386 = vst [vmem:[%s175 + $0x7c] sm:$0xf] %v1258
      %1387 = vst [vmem:[%s175 + $0x80] sm:$0xf] %v1259
      %1388 = vst [vmem:[%s175 + $0x84] sm:$0xf] %v1260
      %1389 = vst [vmem:[%s175 + $0x88] sm:$0xf] %v1261
      %1390 = vst [vmem:[%s175 + $0x8c] sm:$0xf] %v1262
      %1391 = vst [vmem:[%s175 + $0x90] sm:$0xf] %v1263
      %1392 = vst [vmem:[%s175 + $0x94] sm:$0xf] %v1264
      %1393 = vst [vmem:[%s175 + $0x98] sm:$0xf] %v1265
      %1394 = vst [vmem:[%s175 + $0x9c] sm:$0xf] %v1266
      %1395 = vst [vmem:[%s175 + $0xa0] sm:$0xf] %v1267
      %1396 = vst [vmem:[%s175 + $0xa4] sm:$0xf] %v1268
      %1397 = vst [vmem:[%s175 + $0xa8] sm:$0xf] %v1269
      %1398 = vst [vmem:[%s175 + $0xac] sm:$0xf] %v1270
      %1399 = vst [vmem:[%s175 + $0xb0] sm:$0xf] %v1271
      %1400 = vst [vmem:[%s175 + $0xb4] sm:$0xf] %v1272
      %1401 = vst [vmem:[%s175 + $0xb8] sm:$0xf] %v1273
      %1402 = vst [vmem:[%s175 + $0xbc] sm:$0xf] %v1274
      %1403 = vst [vmem:[%s175 + $0xc0] sm:$0xf] %v1275
      %1404 = vst [vmem:[%s175 + $0xc4] sm:$0xf] %v1276
      %1405 = vst [vmem:[%s175 + $0xc8] sm:$0xf] %v1277
      %1406 = vst [vmem:[%s175 + $0xcc] sm:$0xf] %v1278
      %1407 = vst [vmem:[%s175 + $0xd0] sm:$0xf] %v1279
      %1408 = vst [vmem:[%s175 + $0xd4] sm:$0xf] %v1280
      %1409 = vst [vmem:[%s175 + $0xd8] sm:$0xf] %v1281
      %1410 = vst [vmem:[%s175 + $0xdc] sm:$0xf] %v1282
      %1411 = vst [vmem:[%s175 + $0xe0] sm:$0xf] %v1283
      %1412 = vst [vmem:[%s175 + $0xe4] sm:$0xf] %v1284
      %1413 = vst [vmem:[%s175 + $0xe8] sm:$0xf] %v1285
      %1414 = vst [vmem:[%s175 + $0xec] sm:$0xf] %v1286
      %1415 = vst [vmem:[%s175 + $0xf0] sm:$0xf] %v1287
      %1416 = vst [vmem:[%s175 + $0xf4] sm:$0xf] %v1288
      %1417 = vst [vmem:[%s175 + $0xf8] sm:$0xf] %v1289
      %1418 = vst [vmem:[%s175 + $0xfc] sm:$0xf] %v1290
      %s1419 = smul.u32 64, %s14
      %p1420 = scmp.lt.s32.totalorder %s1419, 127
      %s1421 = scalar_select %p1420, %s1419, 127
      %s1422 = smul.addr %s1421, 4
      %s1423 = scalar_lea.vmem %s3, %s1422
      // Predicated region
      $region33: #{hourglass_forward.7} parent=31 // pred_check
        %p1424 = pneg %p100
      $region34: #{hourglass_forward.7} parent=31 // pred_check_branch
        %1426 = sbr.rel (%p1424) target = $region36
      $region35: #{hourglass_forward.7} parent=31 // pred_region
        %s1427 = smul.u32 64, %s14
      $region36: #{hourglass_forward.7} parent=31 // pred_fallthru
        _
    $region32: #{hourglass_forward.7} parent=5 // pred_fallthru
      _
    %p1428 = scmp.le.s32.totalorder 2, %s9
    // Predicated region
    $region37: #{hourglass_forward.7} parent=5 // pred_check
      %p1429 = pneg %p1428
    $region38: #{hourglass_forward.7} parent=5 // pred_check_branch
      %1431 = sbr.rel (%p1429) target = $region40
    $region39: #{hourglass_forward.7} parent=5 // pred_region
      %s1432 = ssub.s32 %s9, 2
      // Predicated region
      $region41: #{hourglass_forward.7} parent=39 // pred_check
        %p1433 = pneg %p106
      $region42: #{hourglass_forward.7} parent=39 // pred_check_branch
        %1435 = sbr.rel (%p1433) target = $region44
      $region43: #{hourglass_forward.7} parent=39 // pred_region
        %s1436 = smul.u32 64, %s15
        %p1437 = scmp.lt.s32.totalorder %s1436, 127
        %s1438 = scalar_select %p1437, %s1436, 127
        %s1439 = smul.addr %s1438, 4
        %s1440 = scalar_lea.vmem %s3, %s1439
      $region44: #{hourglass_forward.7} parent=39 // pred_fallthru
        _
    $region40: #{hourglass_forward.7} parent=5 // pred_fallthru
      _
  $region6: #{hourglass_forward.7} parent=0 // loop_footer
    %s13 = sadd.s32 1, %s9
  $region7: #{hourglass_forward.7} parent=0 // loop_footer_branch
    %8 = sbr.rel target = $region3
  $region8: #{hourglass_forward.7} parent=0 // loop_exit
    _

// kernel: hourglass_forward.8
$region0: #{hourglass_forward.8}
  #allocation0 [shape = 'u32[]', space=smem, size = 0x4, offset = 0x4, fixed_abs, tag = 'smem constant byte address 0x4 - core index']
  #allocation1 [shape = 'u32[144,128]{1,0:T(1,128)}', space=vmem, size = 0x12000, scoped, tag = 'internal scratch']
  %s0 = inlined_call_operand.vmem [shape: bf16[128,224], index: 0, kind: input, shape index: {}]
  %s1 = inlined_call_operand.vmem [shape: bf16[224,128], index: 1, kind: input, shape index: {}]
  %s2 = inlined_call_operand.vmem [shape: f32[1,128], index: 2, kind: input, shape index: {}]
  %s3 = inlined_call_operand.vmem [shape: bf16[128,128], index: 3, kind: output, shape index: {}]
  %s4 = sld [smem:[#allocation0]]
  $region45: #{hourglass_forward.8} parent=0
    _
  %s6 = ssub.s32 1, %s4
  %s7 = scalar_select 0, %s6, %s4
  loop: start=0, step=1, limit=4
  $region2: #{hourglass_forward.8} parent=0 // loop_pre_header
    _
  $region3: #{hourglass_forward.8} parent=0 // loop_header
    %s9 = sphi 0, %s13
    %p10 = scmp.ge.s32.totalorder %s9, 4
    %s19 = sphi 0, %s21
    %s22 = sphi 0, %s19
    %s23 = sphi 0, %s22
    %s39 = sphi 0, %s23
    %s43 = sphi 0, %s43
    %s45 = sphi 0, %s43
    %s46 = sphi 0, %s45
    %s60 = sphi 0, %s46
    %s64 = sphi 0, %s64
    %s66 = sphi 0, %s64
    %s67 = sphi 0, %s66
    %s81 = sphi 0, %s67
    %s87 = sphi 0, %s89
    %s90 = sphi 0, %s87
    %s91 = sphi 0, %s90
    %s107 = sphi 0, %s91
  $region4: #{hourglass_forward.8} parent=0 // loop_header_branch
    %12 = sbr.rel (%p10) target = $region8
  $region5: #{hourglass_forward.8} parent=0 // loop_body
    %s14 = ssub.s32 %s9, 1
    %s15 = ssub.s32 %s9, 2
    %s16 = sadd.s32 %s9, 1
    %s17 = ssub.s32 %s9, %s16
    %p18 = scmp.eq.s32.totalorder %s17, 0
    %s20 = sadd.s32 %s19, 1
    %s21 = scalar_select %p18, %s19, %s20
    %p24 = pneg %p18
    %p25 = scmp.eq.s32.totalorder %s9, 1
    %p26 = por %p24, %p25
    %p27 = scmp.ne.s32.totalorder %s19, %s22
    %p28 = scmp.eq.s32.totalorder %s9, 0
    %p29 = por %p27, %p28
    %p30 = scmp.ne.s32.totalorder %s19, %s22
    %p31 = scmp.eq.s32.totalorder %s14, 1
    %p32 = por %p30, %p31
    %p33 = scmp.ne.s32.totalorder %s22, %s23
    %p34 = scmp.eq.s32.totalorder %s14, 0
    %p35 = por %p33, %p34
    %p36 = scmp.ne.s32.totalorder %s22, %s23
    %p37 = scmp.eq.s32.totalorder %s15, 1
    %p38 = por %p36, %p37
    %p40 = scmp.ne.s32.totalorder %s23, %s39
    %p41 = scmp.eq.s32.totalorder %s15, 0
    %p42 = por %p40, %p41
    %s44 = sadd.s32 %s43, 1
    %p47 = scmp.eq.s32.totalorder %s9, 1
    %p48 = scmp.ne.s32.totalorder %s43, %s45
    %p49 = scmp.eq.s32.totalorder %s9, 0
    %p50 = por %p48, %p49
    %p51 = scmp.ne.s32.totalorder %s43, %s45
    %p52 = scmp.eq.s32.totalorder %s14, 1
    %p53 = por %p51, %p52
    %p54 = scmp.ne.s32.totalorder %s45, %s46
    %p55 = scmp.eq.s32.totalorder %s14, 0
    %p56 = por %p54, %p55
    %p57 = scmp.ne.s32.totalorder %s45, %s46
    %p58 = scmp.eq.s32.totalorder %s15, 1
    %p59 = por %p57, %p58
    %p61 = scmp.ne.s32.totalorder %s46, %s60
    %p62 = scmp.eq.s32.totalorder %s15, 0
    %p63 = por %p61, %p62
    %s65 = sadd.s32 %s64, 1
    %p68 = scmp.eq.s32.totalorder %s9, 1
    %p69 = scmp.ne.s32.totalorder %s64, %s66
    %p70 = scmp.eq.s32.totalorder %s9, 0
    %p71 = por %p69, %p70
    %p72 = scmp.ne.s32.totalorder %s64, %s66
    %p73 = scmp.eq.s32.totalorder %s14, 1
    %p74 = por %p72, %p73
    %p75 = scmp.ne.s32.totalorder %s66, %s67
    %p76 = scmp.eq.s32.totalorder %s14, 0
    %p77 = por %p75, %p76
    %p78 = scmp.ne.s32.totalorder %s66, %s67
    %p79 = scmp.eq.s32.totalorder %s15, 1
    %p80 = por %p78, %p79
    %p82 = scmp.ne.s32.totalorder %s67, %s81
    %p83 = scmp.eq.s32.totalorder %s15, 0
    %p84 = por %p82, %p83
    %s85 = ssub.s32 %s9, %s16
    %p86 = scmp.eq.s32.totalorder %s85, 0
    %s88 = sadd.s32 %s87, 1
    %s89 = scalar_select %p86, %s87, %s88
    %p92 = pneg %p86
    %p93 = scmp.eq.s32.totalorder %s9, 1
    %p94 = por %p92, %p93
    %p95 = scmp.ne.s32.totalorder %s87, %s90
    %p96 = scmp.eq.s32.totalorder %s9, 0
    %p97 = por %p95, %p96
    %p98 = scmp.ne.s32.totalorder %s87, %s90
    %p99 = scmp.eq.s32.totalorder %s14, 1
    %p100 = por %p98, %p99
    %p101 = scmp.ne.s32.totalorder %s90, %s91
    %p102 = scmp.eq.s32.totalorder %s14, 0
    %p103 = por %p101, %p102
    %p104 = scmp.ne.s32.totalorder %s90, %s91
    %p105 = scmp.eq.s32.totalorder %s15, 1
    %p106 = por %p104, %p105
    %p108 = scmp.ne.s32.totalorder %s91, %s107
    %p109 = scmp.eq.s32.totalorder %s15, 0
    %p110 = por %p108, %p109
    %p111 = scmp.le.s32.totalorder 1, %s9
    %p112 = scmp.lt.s32.totalorder %s9, 3
    %p113 = pnand %p111, %p112
    %p114 = pneg %p113
    // Predicated region
    $region9: #{hourglass_forward.8} parent=5 // pred_check
      _
    $region10: #{hourglass_forward.8} parent=5 // pred_check_branch
      %116 = sbr.rel (%p113) target = $region12
    $region11: #{hourglass_forward.8} parent=5 // pred_region
      %s117 = ssub.s32 %s9, 1
      // Predicated region
      $region13: #{hourglass_forward.8} parent=11 // pred_check
        %p118 = pneg %p56
      $region14: #{hourglass_forward.8} parent=11 // pred_check_branch
        %120 = sbr.rel (%p118) target = $region16
      $region15: #{hourglass_forward.8} parent=11 // pred_region
        _
      $region16: #{hourglass_forward.8} parent=11 // pred_fallthru
        _
      // Predicated region
      $region17: #{hourglass_forward.8} parent=11 // pred_check
        %p121 = pneg %p77
      $region18: #{hourglass_forward.8} parent=11 // pred_check_branch
        %123 = sbr.rel (%p121) target = $region20
      $region19: #{hourglass_forward.8} parent=11 // pred_region
        _
      $region20: #{hourglass_forward.8} parent=11 // pred_fallthru
        _
    $region12: #{hourglass_forward.8} parent=5 // pred_fallthru
      _
    %p124 = scmp.lt.s32.totalorder %s9, 2
    // Predicated region
    $region21: #{hourglass_forward.8} parent=5 // pred_check
      %p125 = pneg %p124
    $region22: #{hourglass_forward.8} parent=5 // pred_check_branch
      %127 = sbr.rel (%p125) target = $region24
    $region23: #{hourglass_forward.8} parent=5 // pred_region
      // Predicated region
      $region25: #{hourglass_forward.8} parent=23 // pred_check
        %p128 = pneg %p29
      $region26: #{hourglass_forward.8} parent=23 // pred_check_branch
        %130 = sbr.rel (%p128) target = $region28
      $region27: #{hourglass_forward.8} parent=23 // pred_region
        %s131 = smul.u32 8, %s9
        %p132 = scmp.lt.s32.totalorder %s131, 15
        %s133 = scalar_select %p132, %s131, 15
        %s134 = smul.addr %s133, 2
        %s135 = smul.addr %s134, 4
        %s136 = scalar_lea.vmem %s0, %s135
        %s137 = smul.u32 8, %s9
      $region28: #{hourglass_forward.8} parent=23 // pred_fallthru
        _
    $region24: #{hourglass_forward.8} parent=5 // pred_fallthru
      _
    %p138 = scmp.le.s32.totalorder 1, %s9
    %p139 = scmp.lt.s32.totalorder %s9, 3
    %p140 = pnand %p138, %p139
    %p141 = pneg %p140
    // Predicated region
    $region29: #{hourglass_forward.8} parent=5 // pred_check
      _
    $region30: #{hourglass_forward.8} parent=5 // pred_check_branch
      %143 = sbr.rel (%p140) target = $region32
    $region31: #{hourglass_forward.8} parent=5 // pred_region
      %s144 = ssub.s32 %s9, 1
      %s145 = smul.u32 8, %s14
      %p146 = scmp.lt.s32.totalorder %s145, 15
      %s147 = scalar_select %p146, %s145, 15
      %s148 = smul.addr %s147, 2
      %s149 = smul.addr %s148, 4
      %s150 = scalar_lea.vmem %s0, %s149
      %p151 = pneg %p35
      %p152 = pneg %p32
      %p153 = pneg %p56
      %p154 = pneg %p53
      %p155 = pneg %p77
      %p156 = pneg %p74
      %p157 = pneg %p103
      %p158 = pneg %p100
      %s159 = smul.u32 8, %s14
      %p160 = scmp.lt.s32.totalorder %s159, 15
      %s161 = scalar_select %p160, %s159, 15
      %s162 = smul.addr %s161, 4
      %s163 = scalar_lea.vmem %s3, %s162
      %s164 = smul.u32 8, %s14
      %p165 = scmp.lt.s32.totalorder %s164, 15
      %s166 = scalar_select %p165, %s164, 15
      %s167 = smul.addr %s166, 2
      %s168 = smul.addr %s167, 4
      %s169 = scalar_lea.vmem %s0, %s168
      %s170 = smul.u32 8, %s14
      %s171 = smul.u32 8, %s14
      %p172 = scmp.lt.s32.totalorder %s171, 15
      %s173 = scalar_select %p172, %s171, 15
      %s174 = smul.addr %s173, 4
      %s175 = scalar_lea.vmem %s3, %s174
      %s176 = smul.u32 8, %s14
      %v178 = vld [vmem:[%s169] sm:$0xff]
      %v179 = vld [vmem:[%s169 + $0x8] sm:$0xff]
      %v180 = vld [vmem:[%s169 + $0x10] sm:$0xff]
      %v181 = vld [vmem:[%s169 + $0x18] sm:$0xff]
      %v182 = vld [vmem:[%s169 + $0x20] sm:$0xff]
      %v183 = vld [vmem:[%s169 + $0x28] sm:$0xff]
      %v184 = vld [vmem:[%s169 + $0x30] sm:$0xff]
      %v185 = vld [vmem:[%s169 + $0x38] sm:$0xff]
      %v186 = vld [vmem:[%s1] sm:$0xf]
      %v187 = vld [vmem:[%s1 + $0x4] sm:$0xf]
      %v188 = vld [vmem:[%s1 + $0x8] sm:$0xf]
      %v189 = vld [vmem:[%s1 + $0xc] sm:$0xf]
      %v190 = vld [vmem:[%s1 + $0x10] sm:$0xf]
      %v191 = vld [vmem:[%s1 + $0x14] sm:$0xf]
      %v192 = vld [vmem:[%s1 + $0x18] sm:$0xf]
      %v193 = vld [vmem:[%s1 + $0x1c] sm:$0xf]
      %v194 = vld [vmem:[%s1 + $0x20] sm:$0xf]
      %v195 = vld [vmem:[%s1 + $0x24] sm:$0xf]
      %v196 = vld [vmem:[%s1 + $0x28] sm:$0xf]
      %v197 = vld [vmem:[%s1 + $0x2c] sm:$0xf]
      %v198 = vld [vmem:[%s1 + $0x30] sm:$0xf]
      %v199 = vld [vmem:[%s1 + $0x34] sm:$0xf]
      %v200 = vld [vmem:[%s1 + $0x38] sm:$0xf]
      %v201 = vld [vmem:[%s1 + $0x3c] sm:$0xf]
      %v202 = vld [vmem:[%s1 + $0x40] sm:$0xf]
      %v203 = vld [vmem:[%s1 + $0x44] sm:$0xf]
      %v204 = vld [vmem:[%s1 + $0x48] sm:$0xf]
      %v205 = vld [vmem:[%s1 + $0x4c] sm:$0xf]
      %v206 = vld [vmem:[%s1 + $0x50] sm:$0xf]
      %v207 = vld [vmem:[%s1 + $0x54] sm:$0xf]
      %v208 = vld [vmem:[%s1 + $0x58] sm:$0xf]
      %v209 = vld [vmem:[%s1 + $0x5c] sm:$0xf]
      %v210 = vld [vmem:[%s1 + $0x60] sm:$0xf]
      %v211 = vld [vmem:[%s1 + $0x64] sm:$0xf]
      %v212 = vld [vmem:[%s1 + $0x68] sm:$0xf]
      %v213 = vld [vmem:[%s1 + $0x6c] sm:$0xf]
      %v214 = vld [vmem:[%s2] sm:$0x1]
      %v216 = vlaneseq
      %v217 = vshrl.u32 %v216, 7
      %v218 = vsub.s32 0, %v217
      %v219 = vrot.slane %v214, %v218
      %v229 = vunpack.c.l.b16 %v178
      %v230 = vunpack.c.h.b16 %v178
      %v231 = vunpack.c.l.b16 %v179
      %v232 = vunpack.c.h.b16 %v179
      %v233 = vunpack.c.l.b16 %v180
      %v234 = vunpack.c.h.b16 %v180
      %v235 = vunpack.c.l.b16 %v181
      %v236 = vunpack.c.h.b16 %v181
      %v237 = vunpack.c.l.b16 %v182
      %v238 = vunpack.c.h.b16 %v182
      %v239 = vunpack.c.l.b16 %v183
      %v240 = vunpack.c.h.b16 %v183
      %v241 = vunpack.c.l.b16 %v184
      %v242 = vunpack.c.h.b16 %v184
      %v243 = vunpack.c.l.b16 %v185
      %v244 = vunpack.c.h.b16 %v185
      %v245 = vpack.c.b16 %v231, %v229
      %v246 = vpack.c.b16 %v232, %v230
      %v247 = vpack.c.b16 %v235, %v233
      %v248 = vpack.c.b16 %v236, %v234
      %v249 = vpack.c.b16 %v239, %v237
      %v250 = vpack.c.b16 %v240, %v238
      %v251 = vpack.c.b16 %v243, %v241
      %v252 = vpack.c.b16 %v244, %v242
      %v285 = vunpack.c.l.b16 %v186
      %v286 = vunpack.c.l.b16 %v187
      %v287 = vunpack.c.l.b16 %v188
      %v288 = vunpack.c.l.b16 %v189
      %v289 = vunpack.c.l.b16 %v190
      %v290 = vunpack.c.l.b16 %v191
      %v291 = vunpack.c.l.b16 %v192
      %v292 = vunpack.c.l.b16 %v193
      %v293 = vunpack.c.l.b16 %v194
      %v294 = vunpack.c.l.b16 %v195
      %v295 = vunpack.c.l.b16 %v196
      %v296 = vunpack.c.l.b16 %v197
      %v297 = vunpack.c.l.b16 %v198
      %v298 = vunpack.c.l.b16 %v199
      %v299 = vunpack.c.l.b16 %v200
      %v300 = vunpack.c.l.b16 %v201
      %v301 = vunpack.c.l.b16 %v202
      %v302 = vunpack.c.l.b16 %v203
      %v303 = vunpack.c.l.b16 %v204
      %v304 = vunpack.c.l.b16 %v205
      %v305 = vunpack.c.l.b16 %v206
      %v306 = vunpack.c.l.b16 %v207
      %v307 = vunpack.c.l.b16 %v208
      %v308 = vunpack.c.l.b16 %v209
      %v309 = vunpack.c.l.b16 %v210
      %v310 = vunpack.c.l.b16 %v211
      %v311 = vunpack.c.l.b16 %v212
      %v312 = vunpack.c.l.b16 %v213
      %v313 = vpack.c.b16 %v286, %v285
      %v314 = vpack.c.b16 %v288, %v287
      %v315 = vpack.c.b16 %v290, %v289
      %v316 = vpack.c.b16 %v292, %v291
      %v317 = vpack.c.b16 %v294, %v293
      %v318 = vpack.c.b16 %v296, %v295
      %v319 = vpack.c.b16 %v298, %v297
      %v320 = vpack.c.b16 %v300, %v299
      %v321 = vpack.c.b16 %v302, %v301
      %v322 = vpack.c.b16 %v304, %v303
      %v323 = vpack.c.b16 %v306, %v305
      %v324 = vpack.c.b16 %v308, %v307
      %v325 = vpack.c.b16 %v310, %v309
      %v326 = vpack.c.b16 %v312, %v311
      %vm341 = vcmask 785408
      %v343 = vsel %vm341, %v246, 0
      %v346 = vsel %vm341, %v248, 0
      %v349 = vsel %vm341, %v250, 0
      %v352 = vsel %vm341, %v252, 0
      %354 = vmatprep.subr.bf16.mxu0 0
      %355 = vmatpush1.bf16.msra.mxu0 %v313
      %356 = vmatprep.subr.bf16.mxu0 0
      %357 = vmatpush1.bf16.msra.mxu0 %v314
      %358 = vmatprep.subr.bf16.mxu0 0
      %359 = vmatpush1.bf16.msra.mxu0 %v315
      %360 = vmatprep.subr.bf16.mxu0 0
      %361 = vmatpush1.bf16.msra.mxu0 %v316
      %362 = vmatprep.subr.bf16.mxu0 0
      %363 = vmatpush1.bf16.msra.mxu0 %v317
      %364 = vmatprep.subr.bf16.mxu0 0
      %365 = vmatpush1.bf16.msra.mxu0 %v318
      %366 = vmatprep.subr.bf16.mxu0 0
      %367 = vmatpush1.bf16.msra.mxu0 %v319
      %368 = vmatprep.subr.bf16.mxu0 0
      %369 = vmatpush1.bf16.msra.mxu0 %v320
      %370 = vmatprep.subr.bf16.mxu0 0
      %371 = vmatpush1.bf16.msra.mxu0 %v321
      %372 = vmatprep.subr.bf16.mxu0 0
      %373 = vmatpush1.bf16.msra.mxu0 %v322
      %374 = vmatprep.subr.bf16.mxu0 0
      %375 = vmatpush1.bf16.msra.mxu0 %v323
      %376 = vmatprep.subr.bf16.mxu0 0
      %377 = vmatpush1.bf16.msra.mxu0 %v324
      %378 = vmatprep.subr.bf16.mxu0 0
      %379 = vmatpush1.bf16.msra.mxu0 %v325
      %380 = vmatprep.subr.bf16.mxu0 0
      %381 = vmatpush1.bf16.msra.mxu0 %v326
      %382 = vmatprep.subr.bf16.mxu0 0
      %383 = vmatpush1.bf16.msra.mxu0 0
      %384 = vmatprep.subr.bf16.mxu0 0
      %385 = vmatpush1.bf16.msra.mxu0 0
      %386 = vmatprep.mubr.bf16.mxu0 %v343
      %387 = vmatmul.mubr.bf16.gmra.mrb[0].mxu0 %v245
      %v388 = vpop.f32.mrb[0].mxu0
      %v389 = vadd.f32 %v219, %v388
      %v390 = vpop.f32.mrb[0].mxu0
      %v391 = vpop.f32.mrb[0].mxu0
      %v392 = vadd.f32 %v219, %v391
      %v393 = vpop.f32.mrb[0].mxu0
      %394 = vmatprep.mubr.bf16.mxu0 %v346
      %395 = vmatmul.mubr.bf16.gmra.mrb[0].mxu0 %v247
      %v396 = vpop.f32.mrb[0].mxu0
      %v397 = vadd.f32 %v219, %v396
      %v398 = vpop.f32.mrb[0].mxu0
      %v399 = vpop.f32.mrb[0].mxu0
      %v400 = vadd.f32 %v219, %v399
      %v401 = vpop.f32.mrb[0].mxu0
      %402 = vmatprep.mubr.bf16.mxu0 %v349
      %403 = vmatmul.mubr.bf16.gmra.mrb[0].mxu0 %v249
      %v404 = vpop.f32.mrb[0].mxu0
      %v405 = vadd.f32 %v219, %v404
      %v406 = vpop.f32.mrb[0].mxu0
      %v407 = vpop.f32.mrb[0].mxu0
      %v408 = vadd.f32 %v219, %v407
      %v409 = vpop.f32.mrb[0].mxu0
      %410 = vmatprep.mubr.bf16.mxu0 %v352
      %411 = vmatmul.mubr.bf16.gmra.mrb[0].mxu0 %v251
      %v412 = vpop.f32.mrb[0].mxu0
      %v413 = vadd.f32 %v219, %v412
      %v414 = vpop.f32.mrb[0].mxu0
      %v415 = vpop.f32.mrb[0].mxu0
      %v416 = vadd.f32 %v219, %v415
      %v417 = vpop.f32.mrb[0].mxu0
      %418 = vdwg.mxu0
      %v419 = vmax.f32 %v389, 0.0
      %v420 = vmax.f32 %v392, 0.0
      %v421 = vmax.f32 %v397, 0.0
      %v422 = vmax.f32 %v400, 0.0
      %v423 = vmax.f32 %v405, 0.0
      %v424 = vmax.f32 %v408, 0.0
      %v425 = vmax.f32 %v413, 0.0
      %v426 = vmax.f32 %v416, 0.0
      %v427 = vpack.c.bf16 %v420, %v419
      %v428 = vpack.c.bf16 %v422, %v421
      %v429 = vpack.c.bf16 %v424, %v423
      %v430 = vpack.c.bf16 %v426, %v425
      %v435 = vunpack.c.l.b16 %v427
      %v436 = vunpack.c.h.b16 %v427
      %v437 = vunpack.c.l.b16 %v428
      %v438 = vunpack.c.h.b16 %v428
      %v439 = vunpack.c.l.b16 %v429
      %v440 = vunpack.c.h.b16 %v429
      %v441 = vunpack.c.l.b16 %v430
      %v442 = vunpack.c.h.b16 %v430
      %v443 = vpack.c.b16 %v435, %v435
      %v444 = vpack.c.b16 %v436, %v436
      %v445 = vpack.c.b16 %v437, %v437
      %v446 = vpack.c.b16 %v438, %v438
      %v447 = vpack.c.b16 %v439, %v439
      %v448 = vpack.c.b16 %v440, %v440
      %v449 = vpack.c.b16 %v441, %v441
      %v450 = vpack.c.b16 %v442, %v442
      %459 = vst [vmem:[%s175] sm:$0xf] %v443
      %460 = vst [vmem:[%s175 + $0x4] sm:$0xf] %v444
      %461 = vst [vmem:[%s175 + $0x8] sm:$0xf] %v445
      %462 = vst [vmem:[%s175 + $0xc] sm:$0xf] %v446
      %463 = vst [vmem:[%s175 + $0x10] sm:$0xf] %v447
      %464 = vst [vmem:[%s175 + $0x14] sm:$0xf] %v448
      %465 = vst [vmem:[%s175 + $0x18] sm:$0xf] %v449
      %466 = vst [vmem:[%s175 + $0x1c] sm:$0xf] %v450
      %s467 = smul.u32 8, %s14
      %p468 = scmp.lt.s32.totalorder %s467, 15
      %s469 = scalar_select %p468, %s467, 15
      %s470 = smul.addr %s469, 4
      %s471 = scalar_lea.vmem %s3, %s470
      // Predicated region
      $region33: #{hourglass_forward.8} parent=31 // pred_check
        %p472 = pneg %p100
      $region34: #{hourglass_forward.8} parent=31 // pred_check_branch
        %474 = sbr.rel (%p472) target = $region36
      $region35: #{hourglass_forward.8} parent=31 // pred_region
        %s475 = smul.u32 8, %s14
      $region36: #{hourglass_forward.8} parent=31 // pred_fallthru
        _
    $region32: #{hourglass_forward.8} parent=5 // pred_fallthru
      _
    %p476 = scmp.le.s32.totalorder 2, %s9
    // Predicated region
    $region37: #{hourglass_forward.8} parent=5 // pred_check
      %p477 = pneg %p476
    $region38: #{hourglass_forward.8} parent=5 // pred_check_branch
      %479 = sbr.rel (%p477) target = $region40
    $region39: #{hourglass_forward.8} parent=5 // pred_region
      %s480 = ssub.s32 %s9, 2
      // Predicated region
      $region41: #{hourglass_forward.8} parent=39 // pred_check
        %p481 = pneg %p106
      $region42: #{hourglass_forward.8} parent=39 // pred_check_branch
        %483 = sbr.rel (%p481) target = $region44
      $region43: #{hourglass_forward.8} parent=39 // pred_region
        %s484 = smul.u32 8, %s15
        %p485 = scmp.lt.s32.totalorder %s484, 15
        %s486 = scalar_select %p485, %s484, 15
        %s487 = smul.addr %s486, 4
        %s488 = scalar_lea.vmem %s3, %s487
      $region44: #{hourglass_forward.8} parent=39 // pred_fallthru
        _
    $region40: #{hourglass_forward.8} parent=5 // pred_fallthru
      _
  $region6: #{hourglass_forward.8} parent=0 // loop_footer
    %s13 = sadd.s32 1, %s9
  $region7: #{hourglass_forward.8} parent=0 // loop_footer_branch
    %8 = sbr.rel target = $region3
  $region8: #{hourglass_forward.8} parent=0 // loop_exit
    _

// kernel: hourglass_forward.10
$region0: #{hourglass_forward.10}
  #allocation0 [shape = 'u32[]', space=smem, size = 0x4, offset = 0x4, fixed_abs, tag = 'smem constant byte address 0x4 - core index']
  #allocation1 [shape = 'u32[144,128]{1,0:T(1,128)}', space=vmem, size = 0x12000, scoped, tag = 'internal scratch']
  %s0 = inlined_call_operand.vmem [shape: bf16[128,64], index: 0, kind: input, shape index: {}]
  %s1 = inlined_call_operand.vmem [shape: bf16[64,128], index: 1, kind: input, shape index: {}]
  %s2 = inlined_call_operand.vmem [shape: f32[1,128], index: 2, kind: input, shape index: {}]
  %s3 = inlined_call_operand.vmem [shape: bf16[128,128], index: 3, kind: input, shape index: {}]
  %s4 = inlined_call_operand.vmem [shape: bf16[128,128], index: 4, kind: output, shape index: {}]
  %s5 = sld [smem:[#allocation0]]
  $region49: #{hourglass_forward.10} parent=0
    _
  %s7 = ssub.s32 1, %s5
  %s8 = scalar_select 0, %s7, %s5
  loop: start=0, step=1, limit=4
  $region2: #{hourglass_forward.10} parent=0 // loop_pre_header
    _
  $region3: #{hourglass_forward.10} parent=0 // loop_header
    %s10 = sphi 0, %s14
    %p11 = scmp.ge.s32.totalorder %s10, 4
    %s20 = sphi 0, %s22
    %s23 = sphi 0, %s20
    %s24 = sphi 0, %s23
    %s40 = sphi 0, %s24
    %s44 = sphi 0, %s44
    %s46 = sphi 0, %s44
    %s47 = sphi 0, %s46
    %s61 = sphi 0, %s47
    %s65 = sphi 0, %s65
    %s67 = sphi 0, %s65
    %s68 = sphi 0, %s67
    %s82 = sphi 0, %s68
    %s88 = sphi 0, %s90
    %s91 = sphi 0, %s88
    %s92 = sphi 0, %s91
    %s108 = sphi 0, %s92
    %s114 = sphi 0, %s116
    %s117 = sphi 0, %s114
    %s118 = sphi 0, %s117
    %s134 = sphi 0, %s118
  $region4: #{hourglass_forward.10} parent=0 // loop_header_branch
    %13 = sbr.rel (%p11) target = $region8
  $region5: #{hourglass_forward.10} parent=0 // loop_body
    %s15 = ssub.s32 %s10, 1
    %s16 = ssub.s32 %s10, 2
    %s17 = sadd.s32 %s10, 1
    %s18 = ssub.s32 %s10, %s17
    %p19 = scmp.eq.s32.totalorder %s18, 0
    %s21 = sadd.s32 %s20, 1
    %s22 = scalar_select %p19, %s20, %s21
    %p25 = pneg %p19
    %p26 = scmp.eq.s32.totalorder %s10, 1
    %p27 = por %p25, %p26
    %p28 = scmp.ne.s32.totalorder %s20, %s23
    %p29 = scmp.eq.s32.totalorder %s10, 0
    %p30 = por %p28, %p29
    %p31 = scmp.ne.s32.totalorder %s20, %s23
    %p32 = scmp.eq.s32.totalorder %s15, 1
    %p33 = por %p31, %p32
    %p34 = scmp.ne.s32.totalorder %s23, %s24
    %p35 = scmp.eq.s32.totalorder %s15, 0
    %p36 = por %p34, %p35
    %p37 = scmp.ne.s32.totalorder %s23, %s24
    %p38 = scmp.eq.s32.totalorder %s16, 1
    %p39 = por %p37, %p38
    %p41 = scmp.ne.s32.totalorder %s24, %s40
    %p42 = scmp.eq.s32.totalorder %s16, 0
    %p43 = por %p41, %p42
    %s45 = sadd.s32 %s44, 1
    %p48 = scmp.eq.s32.totalorder %s10, 1
    %p49 = scmp.ne.s32.totalorder %s44, %s46
    %p50 = scmp.eq.s32.totalorder %s10, 0
    %p51 = por %p49, %p50
    %p52 = scmp.ne.s32.totalorder %s44, %s46
    %p53 = scmp.eq.s32.totalorder %s15, 1
    %p54 = por %p52, %p53
    %p55 = scmp.ne.s32.totalorder %s46, %s47
    %p56 = scmp.eq.s32.totalorder %s15, 0
    %p57 = por %p55, %p56
    %p58 = scmp.ne.s32.totalorder %s46, %s47
    %p59 = scmp.eq.s32.totalorder %s16, 1
    %p60 = por %p58, %p59
    %p62 = scmp.ne.s32.totalorder %s47, %s61
    %p63 = scmp.eq.s32.totalorder %s16, 0
    %p64 = por %p62, %p63
    %s66 = sadd.s32 %s65, 1
    %p69 = scmp.eq.s32.totalorder %s10, 1
    %p70 = scmp.ne.s32.totalorder %s65, %s67
    %p71 = scmp.eq.s32.totalorder %s10, 0
    %p72 = por %p70, %p71
    %p73 = scmp.ne.s32.totalorder %s65, %s67
    %p74 = scmp.eq.s32.totalorder %s15, 1
    %p75 = por %p73, %p74
    %p76 = scmp.ne.s32.totalorder %s67, %s68
    %p77 = scmp.eq.s32.totalorder %s15, 0
    %p78 = por %p76, %p77
    %p79 = scmp.ne.s32.totalorder %s67, %s68
    %p80 = scmp.eq.s32.totalorder %s16, 1
    %p81 = por %p79, %p80
    %p83 = scmp.ne.s32.totalorder %s68, %s82
    %p84 = scmp.eq.s32.totalorder %s16, 0
    %p85 = por %p83, %p84
    %s86 = ssub.s32 %s10, %s17
    %p87 = scmp.eq.s32.totalorder %s86, 0
    %s89 = sadd.s32 %s88, 1
    %s90 = scalar_select %p87, %s88, %s89
    %p93 = pneg %p87
    %p94 = scmp.eq.s32.totalorder %s10, 1
    %p95 = por %p93, %p94
    %p96 = scmp.ne.s32.totalorder %s88, %s91
    %p97 = scmp.eq.s32.totalorder %s10, 0
    %p98 = por %p96, %p97
    %p99 = scmp.ne.s32.totalorder %s88, %s91
    %p100 = scmp.eq.s32.totalorder %s15, 1
    %p101 = por %p99, %p100
    %p102 = scmp.ne.s32.totalorder %s91, %s92
    %p103 = scmp.eq.s32.totalorder %s15, 0
    %p104 = por %p102, %p103
    %p105 = scmp.ne.s32.totalorder %s91, %s92
    %p106 = scmp.eq.s32.totalorder %s16, 1
    %p107 = por %p105, %p106
    %p109 = scmp.ne.s32.totalorder %s92, %s108
    %p110 = scmp.eq.s32.totalorder %s16, 0
    %p111 = por %p109, %p110
    %s112 = ssub.s32 %s10, %s17
    %p113 = scmp.eq.s32.totalorder %s112, 0
    %s115 = sadd.s32 %s114, 1
    %s116 = scalar_select %p113, %s114, %s115
    %p119 = pneg %p113
    %p120 = scmp.eq.s32.totalorder %s10, 1
    %p121 = por %p119, %p120
    %p122 = scmp.ne.s32.totalorder %s114, %s117
    %p123 = scmp.eq.s32.totalorder %s10, 0
    %p124 = por %p122, %p123
    %p125 = scmp.ne.s32.totalorder %s114, %s117
    %p126 = scmp.eq.s32.totalorder %s15, 1
    %p127 = por %p125, %p126
    %p128 = scmp.ne.s32.totalorder %s117, %s118
    %p129 = scmp.eq.s32.totalorder %s15, 0
    %p130 = por %p128, %p129
    %p131 = scmp.ne.s32.totalorder %s117, %s118
    %p132 = scmp.eq.s32.totalorder %s16, 1
    %p133 = por %p131, %p132
    %p135 = scmp.ne.s32.totalorder %s118, %s134
    %p136 = scmp.eq.s32.totalorder %s16, 0
    %p137 = por %p135, %p136
    %p138 = scmp.le.s32.totalorder 1, %s10
    %p139 = scmp.lt.s32.totalorder %s10, 3
    %p140 = pnand %p138, %p139
    %p141 = pneg %p140
    // Predicated region
    $region9: #{hourglass_forward.10} parent=5 // pred_check
      _
    $region10: #{hourglass_forward.10} parent=5 // pred_check_branch
      %143 = sbr.rel (%p140) target = $region12
    $region11: #{hourglass_forward.10} parent=5 // pred_region
      %s144 = ssub.s32 %s10, 1
      // Predicated region
      $region13: #{hourglass_forward.10} parent=11 // pred_check
        %p145 = pneg %p57
      $region14: #{hourglass_forward.10} parent=11 // pred_check_branch
        %147 = sbr.rel (%p145) target = $region16
      $region15: #{hourglass_forward.10} parent=11 // pred_region
        _
      $region16: #{hourglass_forward.10} parent=11 // pred_fallthru
        _
      // Predicated region
      $region17: #{hourglass_forward.10} parent=11 // pred_check
        %p148 = pneg %p78
      $region18: #{hourglass_forward.10} parent=11 // pred_check_branch
        %150 = sbr.rel (%p148) target = $region20
      $region19: #{hourglass_forward.10} parent=11 // pred_region
        _
      $region20: #{hourglass_forward.10} parent=11 // pred_fallthru
        _
    $region12: #{hourglass_forward.10} parent=5 // pred_fallthru
      _
    %p151 = scmp.lt.s32.totalorder %s10, 2
    // Predicated region
    $region21: #{hourglass_forward.10} parent=5 // pred_check
      %p152 = pneg %p151
    $region22: #{hourglass_forward.10} parent=5 // pred_check_branch
      %154 = sbr.rel (%p152) target = $region24
    $region23: #{hourglass_forward.10} parent=5 // pred_region
      // Predicated region
      $region25: #{hourglass_forward.10} parent=23 // pred_check
        %p155 = pneg %p30
      $region26: #{hourglass_forward.10} parent=23 // pred_check_branch
        %157 = sbr.rel (%p155) target = $region28
      $region27: #{hourglass_forward.10} parent=23 // pred_region
        %s158 = smul.u32 8, %s10
        %p159 = scmp.lt.s32.totalorder %s158, 15
        %s160 = scalar_select %p159, %s158, 15
        %s161 = smul.addr %s160, 4
        %s162 = scalar_lea.vmem %s0, %s161
        %s163 = smul.u32 8, %s10
      $region28: #{hourglass_forward.10} parent=23 // pred_fallthru
        _
      // Predicated region
      $region29: #{hourglass_forward.10} parent=23 // pred_check
        %p164 = pneg %p98
      $region30: #{hourglass_forward.10} parent=23 // pred_check_branch
        %166 = sbr.rel (%p164) target = $region32
      $region31: #{hourglass_forward.10} parent=23 // pred_region
        %s167 = smul.u32 8, %s10
        %p168 = scmp.lt.s32.totalorder %s167, 15
        %s169 = scalar_select %p168, %s167, 15
        %s170 = smul.addr %s169, 4
        %s171 = scalar_lea.vmem %s3, %s170
        %s172 = smul.u32 8, %s10
      $region32: #{hourglass_forward.10} parent=23 // pred_fallthru
        _
    $region24: #{hourglass_forward.10} parent=5 // pred_fallthru
      _
    %p173 = scmp.le.s32.totalorder 1, %s10
    %p174 = scmp.lt.s32.totalorder %s10, 3
    %p175 = pnand %p173, %p174
    %p176 = pneg %p175
    // Predicated region
    $region33: #{hourglass_forward.10} parent=5 // pred_check
      _
    $region34: #{hourglass_forward.10} parent=5 // pred_check_branch
      %178 = sbr.rel (%p175) target = $region36
    $region35: #{hourglass_forward.10} parent=5 // pred_region
      %s179 = ssub.s32 %s10, 1
      %s180 = smul.u32 8, %s15
      %p181 = scmp.lt.s32.totalorder %s180, 15
      %s182 = scalar_select %p181, %s180, 15
      %s183 = smul.addr %s182, 4
      %s184 = scalar_lea.vmem %s0, %s183
      %p185 = pneg %p36
      %p186 = pneg %p33
      %p187 = pneg %p57
      %p188 = pneg %p54
      %p189 = pneg %p78
      %p190 = pneg %p75
      %s191 = smul.u32 8, %s15
      %p192 = scmp.lt.s32.totalorder %s191, 15
      %s193 = scalar_select %p192, %s191, 15
      %s194 = smul.addr %s193, 4
      %s195 = scalar_lea.vmem %s3, %s194
      %p196 = pneg %p104
      %p197 = pneg %p101
      %p198 = pneg %p130
      %p199 = pneg %p127
      %s200 = smul.u32 8, %s15
      %p201 = scmp.lt.s32.totalorder %s200, 15
      %s202 = scalar_select %p201, %s200, 15
      %s203 = smul.addr %s202, 4
      %s204 = scalar_lea.vmem %s4, %s203
      %s205 = smul.u32 8, %s15
      %p206 = scmp.lt.s32.totalorder %s205, 15
      %s207 = scalar_select %p206, %s205, 15
      %s208 = smul.addr %s207, 4
      %s209 = scalar_lea.vmem %s0, %s208
      %s210 = smul.u32 8, %s15
      %s211 = smul.u32 8, %s15
      %p212 = scmp.lt.s32.totalorder %s211, 15
      %s213 = scalar_select %p212, %s211, 15
      %s214 = smul.addr %s213, 4
      %s215 = scalar_lea.vmem %s3, %s214
      %s216 = smul.u32 8, %s15
      %s217 = smul.u32 8, %s15
      %p218 = scmp.lt.s32.totalorder %s217, 15
      %s219 = scalar_select %p218, %s217, 15
      %s220 = smul.addr %s219, 4
      %s221 = scalar_lea.vmem %s4, %s220
      %s222 = smul.u32 8, %s15
      %v224 = vld [vmem:[%s209] sm:$0xf]
      %v225 = vld [vmem:[%s209 + $0x4] sm:$0xf]
      %v226 = vld [vmem:[%s209 + $0x8] sm:$0xf]
      %v227 = vld [vmem:[%s209 + $0xc] sm:$0xf]
      %v228 = vld [vmem:[%s209 + $0x10] sm:$0xf]
      %v229 = vld [vmem:[%s209 + $0x14] sm:$0xf]
      %v230 = vld [vmem:[%s209 + $0x18] sm:$0xf]
      %v231 = vld [vmem:[%s209 + $0x1c] sm:$0xf]
      %v232 = vld [vmem:[%s1] sm:$0xf]
      %v233 = vld [vmem:[%s1 + $0x4] sm:$0xf]
      %v234 = vld [vmem:[%s1 + $0x8] sm:$0xf]
      %v235 = vld [vmem:[%s1 + $0xc] sm:$0xf]
      %v236 = vld [vmem:[%s1 + $0x10] sm:$0xf]
      %v237 = vld [vmem:[%s1 + $0x14] sm:$0xf]
      %v238 = vld [vmem:[%s1 + $0x18] sm:$0xf]
      %v239 = vld [vmem:[%s1 + $0x1c] sm:$0xf]
      %v240 = vld [vmem:[%s2] sm:$0x1]
      %v242 = vlaneseq
      %v243 = vshrl.u32 %v242, 7
      %v244 = vsub.s32 0, %v243
      %v245 = vrot.slane %v240, %v244
      %v255 = vunpack.c.l.b16 %v224
      %v256 = vunpack.c.l.b16 %v225
      %v257 = vunpack.c.l.b16 %v226
      %v258 = vunpack.c.l.b16 %v227
      %v259 = vunpack.c.l.b16 %v228
      %v260 = vunpack.c.l.b16 %v229
      %v261 = vunpack.c.l.b16 %v230
      %v262 = vunpack.c.l.b16 %v231
      %v263 = vpack.c.b16 %v256, %v255
      %v264 = vpack.c.b16 %v258, %v257
      %v265 = vpack.c.b16 %v260, %v259
      %v266 = vpack.c.b16 %v262, %v261
      %v275 = vunpack.c.l.b16 %v232
      %v276 = vunpack.c.l.b16 %v233
      %v277 = vunpack.c.l.b16 %v234
      %v278 = vunpack.c.l.b16 %v235
      %v279 = vunpack.c.l.b16 %v236
      %v280 = vunpack.c.l.b16 %v237
      %v281 = vunpack.c.l.b16 %v238
      %v282 = vunpack.c.l.b16 %v239
      %v283 = vpack.c.b16 %v276, %v275
      %v284 = vpack.c.b16 %v278, %v277
      %v285 = vpack.c.b16 %v280, %v279
      %v286 = vpack.c.b16 %v282, %v281
      %vm291 = vcmask 523264
      %v293 = vsel %vm291, %v263, 0
      %v296 = vsel %vm291, %v264, 0
      %v299 = vsel %vm291, %v265, 0
      %v302 = vsel %vm291, %v266, 0
      %304 = vmatprep.subr.bf16.mxu0 0
      %305 = vmatpush1.bf16.msra.mxu0 %v283
      %306 = vmatprep.subr.bf16.mxu0 0
      %307 = vmatpush1.bf16.msra.mxu0 %v284
      %308 = vmatprep.subr.bf16.mxu0 0
      %309 = vmatpush1.bf16.msra.mxu0 %v285
      %310 = vmatprep.subr.bf16.mxu0 0
      %311 = vmatpush1.bf16.msra.mxu0 %v286
      %312 = vmatprep.subr.bf16.mxu0 0
      %313 = vmatpush1.bf16.msra.mxu0 0
      %314 = vmatprep.subr.bf16.mxu0 0
      %315 = vmatpush1.bf16.msra.mxu0 0
      %316 = vmatprep.subr.bf16.mxu0 0
      %317 = vmatpush1.bf16.msra.mxu0 0
      %318 = vmatprep.subr.bf16.mxu0 0
      %319 = vmatpush1.bf16.msra.mxu0 0
      %320 = vmatprep.subr.bf16.mxu0 0
      %321 = vmatpush1.bf16.msra.mxu0 0
      %322 = vmatprep.subr.bf16.mxu0 0
      %323 = vmatpush1.bf16.msra.mxu0 0
      %324 = vmatprep.subr.bf16.mxu0 0
      %325 = vmatpush1.bf16.msra.mxu0 0
      %326 = vmatprep.subr.bf16.mxu0 0
      %327 = vmatpush1.bf16.msra.mxu0 0
      %328 = vmatprep.subr.bf16.mxu0 0
      %329 = vmatpush1.bf16.msra.mxu0 0
      %330 = vmatprep.subr.bf16.mxu0 0
      %331 = vmatpush1.bf16.msra.mxu0 0
      %332 = vmatprep.subr.bf16.mxu0 0
      %333 = vmatpush1.bf16.msra.mxu0 0
      %334 = vmatprep.subr.bf16.mxu0 0
      %335 = vmatpush1.bf16.msra.mxu0 0
      %336 = vmatprep.mubr.bf16.mxu0 0
      %337 = vmatmul.mubr.bf16.gmra.mrb[0].mxu0 %v293
      %v338 = vpop.f32.mrb[0].mxu0
      %v339 = vadd.f32 %v245, %v338
      %v340 = vpop.f32.mrb[0].mxu0
      %v341 = vpop.f32.mrb[0].mxu0
      %v342 = vadd.f32 %v245, %v341
      %v343 = vpop.f32.mrb[0].mxu0
      %344 = vmatprep.mubr.bf16.mxu0 0
      %345 = vmatmul.mubr.bf16.gmra.mrb[0].mxu0 %v296
      %v346 = vpop.f32.mrb[0].mxu0
      %v347 = vadd.f32 %v245, %v346
      %v348 = vpop.f32.mrb[0].mxu0
      %v349 = vpop.f32.mrb[0].mxu0
      %v350 = vadd.f32 %v245, %v349
      %v351 = vpop.f32.mrb[0].mxu0
      %352 = vmatprep.mubr.bf16.mxu0 0
      %353 = vmatmul.mubr.bf16.gmra.mrb[0].mxu0 %v299
      %v354 = vpop.f32.mrb[0].mxu0
      %v355 = vadd.f32 %v245, %v354
      %v356 = vpop.f32.mrb[0].mxu0
      %v357 = vpop.f32.mrb[0].mxu0
      %v358 = vadd.f32 %v245, %v357
      %v359 = vpop.f32.mrb[0].mxu0
      %360 = vmatprep.mubr.bf16.mxu0 0
      %361 = vmatmul.mubr.bf16.gmra.mrb[0].mxu0 %v302
      %v362 = vpop.f32.mrb[0].mxu0
      %v363 = vadd.f32 %v245, %v362
      %v364 = vpop.f32.mrb[0].mxu0
      %v365 = vpop.f32.mrb[0].mxu0
      %v366 = vadd.f32 %v245, %v365
      %v367 = vpop.f32.mrb[0].mxu0
      %368 = vdwg.mxu0
      %v369 = vld [vmem:[%s215] sm:$0xf]
      %v370 = vld [vmem:[%s215 + $0x4] sm:$0xf]
      %v371 = vld [vmem:[%s215 + $0x8] sm:$0xf]
      %v372 = vld [vmem:[%s215 + $0xc] sm:$0xf]
      %v373 = vld [vmem:[%s215 + $0x10] sm:$0xf]
      %v374 = vld [vmem:[%s215 + $0x14] sm:$0xf]
      %v375 = vld [vmem:[%s215 + $0x18] sm:$0xf]
      %v376 = vld [vmem:[%s215 + $0x1c] sm:$0xf]
      %v377 = vunpack.c.l.bf16 %v369
      %v378 = vunpack.c.l.bf16 %v370
      %v379 = vunpack.c.l.bf16 %v371
      %v380 = vunpack.c.l.bf16 %v372
      %v381 = vunpack.c.l.bf16 %v373
      %v382 = vunpack.c.l.bf16 %v374
      %v383 = vunpack.c.l.bf16 %v375
      %v384 = vunpack.c.l.bf16 %v376
      %v385 = vadd.f32 %v339, %v377
      %v386 = vadd.f32 %v342, %v378
      %v387 = vadd.f32 %v347, %v379
      %v388 = vadd.f32 %v350, %v380
      %v389 = vadd.f32 %v355, %v381
      %v390 = vadd.f32 %v358, %v382
      %v391 = vadd.f32 %v363, %v383
      %v392 = vadd.f32 %v366, %v384
      %v393 = vmax.f32 %v385, 0.0
      %v394 = vmax.f32 %v386, 0.0
      %v395 = vmax.f32 %v387, 0.0
      %v396 = vmax.f32 %v388, 0.0
      %v397 = vmax.f32 %v389, 0.0
      %v398 = vmax.f32 %v390, 0.0
      %v399 = vmax.f32 %v391, 0.0
      %v400 = vmax.f32 %v392, 0.0
      %v401 = vpack.c.bf16 %v394, %v393
      %v402 = vpack.c.bf16 %v396, %v395
      %v403 = vpack.c.bf16 %v398, %v397
      %v404 = vpack.c.bf16 %v400, %v399
      %v409 = vunpack.c.l.b16 %v401
      %v410 = vunpack.c.h.b16 %v401
      %v411 = vunpack.c.l.b16 %v402
      %v412 = vunpack.c.h.b16 %v402
      %v413 = vunpack.c.l.b16 %v403
      %v414 = vunpack.c.h.b16 %v403
      %v415 = vunpack.c.l.b16 %v404
      %v416 = vunpack.c.h.b16 %v404
      %v417 = vpack.c.b16 %v409, %v409
      %v418 = vpack.c.b16 %v410, %v410
      %v419 = vpack.c.b16 %v411, %v411
      %v420 = vpack.c.b16 %v412, %v412
      %v421 = vpack.c.b16 %v413, %v413
      %v422 = vpack.c.b16 %v414, %v414
      %v423 = vpack.c.b16 %v415, %v415
      %v424 = vpack.c.b16 %v416, %v416
      %433 = vst [vmem:[%s221] sm:$0xf] %v417
      %434 = vst [vmem:[%s221 + $0x4] sm:$0xf] %v418
      %435 = vst [vmem:[%s221 + $0x8] sm:$0xf] %v419
      %436 = vst [vmem:[%s221 + $0xc] sm:$0xf] %v420
      %437 = vst [vmem:[%s221 + $0x10] sm:$0xf] %v421
      %438 = vst [vmem:[%s221 + $0x14] sm:$0xf] %v422
      %439 = vst [vmem:[%s221 + $0x18] sm:$0xf] %v423
      %440 = vst [vmem:[%s221 + $0x1c] sm:$0xf] %v424
      %s441 = smul.u32 8, %s15
      %p442 = scmp.lt.s32.totalorder %s441, 15
      %s443 = scalar_select %p442, %s441, 15
      %s444 = smul.addr %s443, 4
      %s445 = scalar_lea.vmem %s4, %s444
      // Predicated region
      $region37: #{hourglass_forward.10} parent=35 // pred_check
        %p446 = pneg %p127
      $region38: #{hourglass_forward.10} parent=35 // pred_check_branch
        %448 = sbr.rel (%p446) target = $region40
      $region39: #{hourglass_forward.10} parent=35 // pred_region
        %s449 = smul.u32 8, %s15
      $region40: #{hourglass_forward.10} parent=35 // pred_fallthru
        _
    $region36: #{hourglass_forward.10} parent=5 // pred_fallthru
      _
    %p450 = scmp.le.s32.totalorder 2, %s10
    // Predicated region
    $region41: #{hourglass_forward.10} parent=5 // pred_check
      %p451 = pneg %p450
    $region42: #{hourglass_forward.10} parent=5 // pred_check_branch
      %453 = sbr.rel (%p451) target = $region44
    $region43: #{hourglass_forward.10} parent=5 // pred_region
      %s454 = ssub.s32 %s10, 2
      // Predicated region
      $region45: #{hourglass_forward.10} parent=43 // pred_check
        %p455 = pneg %p133
      $region46: #{hourglass_forward.10} parent=43 // pred_check_branch
        %457 = sbr.rel (%p455) target = $region48
      $region47: #{hourglass_forward.10} parent=43 // pred_region
        %s458 = smul.u32 8, %s16
        %p459 = scmp.lt.s32.totalorder %s458, 15
        %s460 = scalar_select %p459, %s458, 15
        %s461 = smul.addr %s460, 4
        %s462 = scalar_lea.vmem %s4, %s461
      $region48: #{hourglass_forward.10} parent=43 // pred_fallthru
        _
    $region44: #{hourglass_forward.10} parent=5 // pred_fallthru
      _
  $region6: #{hourglass_forward.10} parent=0 // loop_footer
    %s14 = sadd.s32 1, %s10
  $region7: #{hourglass_forward.10} parent=0 // loop_footer_branch
    %9 = sbr.rel target = $region3
  $region8: #{hourglass_forward.10} parent=0 // loop_exit
    _

// kernel: hourglass_forward.11
$region0: #{hourglass_forward.11}
  #allocation0 [shape = 'u32[]', space=smem, size = 0x4, offset = 0x4, fixed_abs, tag = 'smem constant byte address 0x4 - core index']
  #allocation1 [shape = 'u32[144,128]{1,0:T(1,128)}', space=vmem, size = 0x12000, scoped, tag = 'internal scratch']
  %s0 = inlined_call_operand.vmem [shape: bf16[1024,64], index: 0, kind: input, shape index: {}]
  %s1 = inlined_call_operand.vmem [shape: bf16[64,128], index: 1, kind: input, shape index: {}]
  %s2 = inlined_call_operand.vmem [shape: f32[1,128], index: 2, kind: input, shape index: {}]
  %s3 = inlined_call_operand.vmem [shape: bf16[1024,128], index: 3, kind: output, shape index: {}]
  %s4 = sld [smem:[#allocation0]]
  $region45: #{hourglass_forward.11} parent=0
    _
  %s6 = ssub.s32 1, %s4
  %s7 = scalar_select 0, %s6, %s4
  loop: start=0, step=1, limit=4
  $region2: #{hourglass_forward.11} parent=0 // loop_pre_header
    _
  $region3: #{hourglass_forward.11} parent=0 // loop_header
    %s9 = sphi 0, %s13
    %p10 = scmp.ge.s32.totalorder %s9, 4
    %s19 = sphi 0, %s21
    %s22 = sphi 0, %s19
    %s23 = sphi 0, %s22
    %s39 = sphi 0, %s23
    %s43 = sphi 0, %s43
    %s45 = sphi 0, %s43
    %s46 = sphi 0, %s45
    %s60 = sphi 0, %s46
    %s64 = sphi 0, %s64
    %s66 = sphi 0, %s64
    %s67 = sphi 0, %s66
    %s81 = sphi 0, %s67
    %s87 = sphi 0, %s89
    %s90 = sphi 0, %s87
    %s91 = sphi 0, %s90
    %s107 = sphi 0, %s91
  $region4: #{hourglass_forward.11} parent=0 // loop_header_branch
    %12 = sbr.rel (%p10) target = $region8
  $region5: #{hourglass_forward.11} parent=0 // loop_body
    %s14 = ssub.s32 %s9, 1
    %s15 = ssub.s32 %s9, 2
    %s16 = sadd.s32 %s9, 1
    %s17 = ssub.s32 %s9, %s16
    %p18 = scmp.eq.s32.totalorder %s17, 0
    %s20 = sadd.s32 %s19, 1
    %s21 = scalar_select %p18, %s19, %s20
    %p24 = pneg %p18
    %p25 = scmp.eq.s32.totalorder %s9, 1
    %p26 = por %p24, %p25
    %p27 = scmp.ne.s32.totalorder %s19, %s22
    %p28 = scmp.eq.s32.totalorder %s9, 0
    %p29 = por %p27, %p28
    %p30 = scmp.ne.s32.totalorder %s19, %s22
    %p31 = scmp.eq.s32.totalorder %s14, 1
    %p32 = por %p30, %p31
    %p33 = scmp.ne.s32.totalorder %s22, %s23
    %p34 = scmp.eq.s32.totalorder %s14, 0
    %p35 = por %p33, %p34
    %p36 = scmp.ne.s32.totalorder %s22, %s23
    %p37 = scmp.eq.s32.totalorder %s15, 1
    %p38 = por %p36, %p37
    %p40 = scmp.ne.s32.totalorder %s23, %s39
    %p41 = scmp.eq.s32.totalorder %s15, 0
    %p42 = por %p40, %p41
    %s44 = sadd.s32 %s43, 1
    %p47 = scmp.eq.s32.totalorder %s9, 1
    %p48 = scmp.ne.s32.totalorder %s43, %s45
    %p49 = scmp.eq.s32.totalorder %s9, 0
    %p50 = por %p48, %p49
    %p51 = scmp.ne.s32.totalorder %s43, %s45
    %p52 = scmp.eq.s32.totalorder %s14, 1
    %p53 = por %p51, %p52
    %p54 = scmp.ne.s32.totalorder %s45, %s46
    %p55 = scmp.eq.s32.totalorder %s14, 0
    %p56 = por %p54, %p55
    %p57 = scmp.ne.s32.totalorder %s45, %s46
    %p58 = scmp.eq.s32.totalorder %s15, 1
    %p59 = por %p57, %p58
    %p61 = scmp.ne.s32.totalorder %s46, %s60
    %p62 = scmp.eq.s32.totalorder %s15, 0
    %p63 = por %p61, %p62
    %s65 = sadd.s32 %s64, 1
    %p68 = scmp.eq.s32.totalorder %s9, 1
    %p69 = scmp.ne.s32.totalorder %s64, %s66
    %p70 = scmp.eq.s32.totalorder %s9, 0
    %p71 = por %p69, %p70
    %p72 = scmp.ne.s32.totalorder %s64, %s66
    %p73 = scmp.eq.s32.totalorder %s14, 1
    %p74 = por %p72, %p73
    %p75 = scmp.ne.s32.totalorder %s66, %s67
    %p76 = scmp.eq.s32.totalorder %s14, 0
    %p77 = por %p75, %p76
    %p78 = scmp.ne.s32.totalorder %s66, %s67
    %p79 = scmp.eq.s32.totalorder %s15, 1
    %p80 = por %p78, %p79
    %p82 = scmp.ne.s32.totalorder %s67, %s81
    %p83 = scmp.eq.s32.totalorder %s15, 0
    %p84 = por %p82, %p83
    %s85 = ssub.s32 %s9, %s16
    %p86 = scmp.eq.s32.totalorder %s85, 0
    %s88 = sadd.s32 %s87, 1
    %s89 = scalar_select %p86, %s87, %s88
    %p92 = pneg %p86
    %p93 = scmp.eq.s32.totalorder %s9, 1
    %p94 = por %p92, %p93
    %p95 = scmp.ne.s32.totalorder %s87, %s90
    %p96 = scmp.eq.s32.totalorder %s9, 0
    %p97 = por %p95, %p96
    %p98 = scmp.ne.s32.totalorder %s87, %s90
    %p99 = scmp.eq.s32.totalorder %s14, 1
    %p100 = por %p98, %p99
    %p101 = scmp.ne.s32.totalorder %s90, %s91
    %p102 = scmp.eq.s32.totalorder %s14, 0
    %p103 = por %p101, %p102
    %p104 = scmp.ne.s32.totalorder %s90, %s91
    %p105 = scmp.eq.s32.totalorder %s15, 1
    %p106 = por %p104, %p105
    %p108 = scmp.ne.s32.totalorder %s91, %s107
    %p109 = scmp.eq.s32.totalorder %s15, 0
    %p110 = por %p108, %p109
    %p111 = scmp.le.s32.totalorder 1, %s9
    %p112 = scmp.lt.s32.totalorder %s9, 3
    %p113 = pnand %p111, %p112
    %p114 = pneg %p113
    // Predicated region
    $region9: #{hourglass_forward.11} parent=5 // pred_check
      _
    $region10: #{hourglass_forward.11} parent=5 // pred_check_branch
      %116 = sbr.rel (%p113) target = $region12
    $region11: #{hourglass_forward.11} parent=5 // pred_region
      %s117 = ssub.s32 %s9, 1
      // Predicated region
      $region13: #{hourglass_forward.11} parent=11 // pred_check
        %p118 = pneg %p56
      $region14: #{hourglass_forward.11} parent=11 // pred_check_branch
        %120 = sbr.rel (%p118) target = $region16
      $region15: #{hourglass_forward.11} parent=11 // pred_region
        _
      $region16: #{hourglass_forward.11} parent=11 // pred_fallthru
        _
      // Predicated region
      $region17: #{hourglass_forward.11} parent=11 // pred_check
        %p121 = pneg %p77
      $region18: #{hourglass_forward.11} parent=11 // pred_check_branch
        %123 = sbr.rel (%p121) target = $region20
      $region19: #{hourglass_forward.11} parent=11 // pred_region
        _
      $region20: #{hourglass_forward.11} parent=11 // pred_fallthru
        _
    $region12: #{hourglass_forward.11} parent=5 // pred_fallthru
      _
    %p124 = scmp.lt.s32.totalorder %s9, 2
    // Predicated region
    $region21: #{hourglass_forward.11} parent=5 // pred_check
      %p125 = pneg %p124
    $region22: #{hourglass_forward.11} parent=5 // pred_check_branch
      %127 = sbr.rel (%p125) target = $region24
    $region23: #{hourglass_forward.11} parent=5 // pred_region
      // Predicated region
      $region25: #{hourglass_forward.11} parent=23 // pred_check
        %p128 = pneg %p29
      $region26: #{hourglass_forward.11} parent=23 // pred_check_branch
        %130 = sbr.rel (%p128) target = $region28
      $region27: #{hourglass_forward.11} parent=23 // pred_region
        %s131 = smul.u32 64, %s9
        %p132 = scmp.lt.s32.totalorder %s131, 127
        %s133 = scalar_select %p132, %s131, 127
        %s134 = smul.addr %s133, 4
        %s135 = scalar_lea.vmem %s0, %s134
        %s136 = smul.u32 64, %s9
      $region28: #{hourglass_forward.11} parent=23 // pred_fallthru
        _
    $region24: #{hourglass_forward.11} parent=5 // pred_fallthru
      _
    %p137 = scmp.le.s32.totalorder 1, %s9
    %p138 = scmp.lt.s32.totalorder %s9, 3
    %p139 = pnand %p137, %p138
    %p140 = pneg %p139
    // Predicated region
    $region29: #{hourglass_forward.11} parent=5 // pred_check
      _
    $region30: #{hourglass_forward.11} parent=5 // pred_check_branch
      %142 = sbr.rel (%p139) target = $region32
    $region31: #{hourglass_forward.11} parent=5 // pred_region
      %s143 = ssub.s32 %s9, 1
      %s144 = smul.u32 64, %s14
      %p145 = scmp.lt.s32.totalorder %s144, 127
      %s146 = scalar_select %p145, %s144, 127
      %s147 = smul.addr %s146, 4
      %s148 = scalar_lea.vmem %s0, %s147
      %p149 = pneg %p35
      %p150 = pneg %p32
      %p151 = pneg %p56
      %p152 = pneg %p53
      %p153 = pneg %p77
      %p154 = pneg %p74
      %p155 = pneg %p103
      %p156 = pneg %p100
      %s157 = smul.u32 64, %s14
      %p158 = scmp.lt.s32.totalorder %s157, 127
      %s159 = scalar_select %p158, %s157, 127
      %s160 = smul.addr %s159, 4
      %s161 = scalar_lea.vmem %s3, %s160
      %s162 = smul.u32 64, %s14
      %p163 = scmp.lt.s32.totalorder %s162, 127
      %s164 = scalar_select %p163, %s162, 127
      %s165 = smul.addr %s164, 4
      %s166 = scalar_lea.vmem %s0, %s165
      %s167 = smul.u32 64, %s14
      %s168 = smul.u32 64, %s14
      %p169 = scmp.lt.s32.totalorder %s168, 127
      %s170 = scalar_select %p169, %s168, 127
      %s171 = smul.addr %s170, 4
      %s172 = scalar_lea.vmem %s3, %s171
      %s173 = smul.u32 64, %s14
      %v175 = vld [vmem:[%s166] sm:$0xf]
      %v176 = vld [vmem:[%s166 + $0x4] sm:$0xf]
      %v177 = vld [vmem:[%s166 + $0x8] sm:$0xf]
      %v178 = vld [vmem:[%s166 + $0xc] sm:$0xf]
      %v179 = vld [vmem:[%s166 + $0x10] sm:$0xf]
      %v180 = vld [vmem:[%s166 + $0x14] sm:$0xf]
      %v181 = vld [vmem:[%s166 + $0x18] sm:$0xf]
      %v182 = vld [vmem:[%s166 + $0x1c] sm:$0xf]
      %v183 = vld [vmem:[%s166 + $0x20] sm:$0xf]
      %v184 = vld [vmem:[%s166 + $0x24] sm:$0xf]
      %v185 = vld [vmem:[%s166 + $0x28] sm:$0xf]
      %v186 = vld [vmem:[%s166 + $0x2c] sm:$0xf]
      %v187 = vld [vmem:[%s166 + $0x30] sm:$0xf]
      %v188 = vld [vmem:[%s166 + $0x34] sm:$0xf]
      %v189 = vld [vmem:[%s166 + $0x38] sm:$0xf]
      %v190 = vld [vmem:[%s166 + $0x3c] sm:$0xf]
      %v191 = vld [vmem:[%s166 + $0x40] sm:$0xf]
      %v192 = vld [vmem:[%s166 + $0x44] sm:$0xf]
      %v193 = vld [vmem:[%s166 + $0x48] sm:$0xf]
      %v194 = vld [vmem:[%s166 + $0x4c] sm:$0xf]
      %v195 = vld [vmem:[%s166 + $0x50] sm:$0xf]
      %v196 = vld [vmem:[%s166 + $0x54] sm:$0xf]
      %v197 = vld [vmem:[%s166 + $0x58] sm:$0xf]
      %v198 = vld [vmem:[%s166 + $0x5c] sm:$0xf]
      %v199 = vld [vmem:[%s166 + $0x60] sm:$0xf]
      %v200 = vld [vmem:[%s166 + $0x64] sm:$0xf]
      %v201 = vld [vmem:[%s166 + $0x68] sm:$0xf]
      %v202 = vld [vmem:[%s166 + $0x6c] sm:$0xf]
      %v203 = vld [vmem:[%s166 + $0x70] sm:$0xf]
      %v204 = vld [vmem:[%s166 + $0x74] sm:$0xf]
      %v205 = vld [vmem:[%s166 + $0x78] sm:$0xf]
      %v206 = vld [vmem:[%s166 + $0x7c] sm:$0xf]
      %v207 = vld [vmem:[%s166 + $0x80] sm:$0xf]
      %v208 = vld [vmem:[%s166 + $0x84] sm:$0xf]
      %v209 = vld [vmem:[%s166 + $0x88] sm:$0xf]
      %v210 = vld [vmem:[%s166 + $0x8c] sm:$0xf]
      %v211 = vld [vmem:[%s166 + $0x90] sm:$0xf]
      %v212 = vld [vmem:[%s166 + $0x94] sm:$0xf]
      %v213 = vld [vmem:[%s166 + $0x98] sm:$0xf]
      %v214 = vld [vmem:[%s166 + $0x9c] sm:$0xf]
      %v215 = vld [vmem:[%s166 + $0xa0] sm:$0xf]
      %v216 = vld [vmem:[%s166 + $0xa4] sm:$0xf]
      %v217 = vld [vmem:[%s166 + $0xa8] sm:$0xf]
      %v218 = vld [vmem:[%s166 + $0xac] sm:$0xf]
      %v219 = vld [vmem:[%s166 + $0xb0] sm:$0xf]
      %v220 = vld [vmem:[%s166 + $0xb4] sm:$0xf]
      %v221 = vld [vmem:[%s166 + $0xb8] sm:$0xf]
      %v222 = vld [vmem:[%s166 + $0xbc] sm:$0xf]
      %v223 = vld [vmem:[%s166 + $0xc0] sm:$0xf]
      %v224 = vld [vmem:[%s166 + $0xc4] sm:$0xf]
      %v225 = vld [vmem:[%s166 + $0xc8] sm:$0xf]
      %v226 = vld [vmem:[%s166 + $0xcc] sm:$0xf]
      %v227 = vld [vmem:[%s166 + $0xd0] sm:$0xf]
      %v228 = vld [vmem:[%s166 + $0xd4] sm:$0xf]
      %v229 = vld [vmem:[%s166 + $0xd8] sm:$0xf]
      %v230 = vld [vmem:[%s166 + $0xdc] sm:$0xf]
      %v231 = vld [vmem:[%s166 + $0xe0] sm:$0xf]
      %v232 = vld [vmem:[%s166 + $0xe4] sm:$0xf]
      %v233 = vld [vmem:[%s166 + $0xe8] sm:$0xf]
      %v234 = vld [vmem:[%s166 + $0xec] sm:$0xf]
      %v235 = vld [vmem:[%s166 + $0xf0] sm:$0xf]
      %v236 = vld [vmem:[%s166 + $0xf4] sm:$0xf]
      %v237 = vld [vmem:[%s166 + $0xf8] sm:$0xf]
      %v238 = vld [vmem:[%s166 + $0xfc] sm:$0xf]
      %v239 = vld [vmem:[%s1] sm:$0xf]
      %v240 = vld [vmem:[%s1 + $0x4] sm:$0xf]
      %v241 = vld [vmem:[%s1 + $0x8] sm:$0xf]
      %v242 = vld [vmem:[%s1 + $0xc] sm:$0xf]
      %v243 = vld [vmem:[%s1 + $0x10] sm:$0xf]
      %v244 = vld [vmem:[%s1 + $0x14] sm:$0xf]
      %v245 = vld [vmem:[%s1 + $0x18] sm:$0xf]
      %v246 = vld [vmem:[%s1 + $0x1c] sm:$0xf]
      %v247 = vld [vmem:[%s2] sm:$0x1]
      %v249 = vlaneseq
      %v250 = vshrl.u32 %v249, 7
      %v251 = vsub.s32 0, %v250
      %v252 = vrot.slane %v247, %v251
      %v318 = vunpack.c.l.b16 %v175
      %v319 = vunpack.c.l.b16 %v176
      %v320 = vunpack.c.l.b16 %v177
      %v321 = vunpack.c.l.b16 %v178
      %v322 = vunpack.c.l.b16 %v179
      %v323 = vunpack.c.l.b16 %v180
      %v324 = vunpack.c.l.b16 %v181
      %v325 = vunpack.c.l.b16 %v182
      %v326 = vunpack.c.l.b16 %v183
      %v327 = vunpack.c.l.b16 %v184
      %v328 = vunpack.c.l.b16 %v185
      %v329 = vunpack.c.l.b16 %v186
      %v330 = vunpack.c.l.b16 %v187
      %v331 = vunpack.c.l.b16 %v188
      %v332 = vunpack.c.l.b16 %v189
      %v333 = vunpack.c.l.b16 %v190
      %v334 = vunpack.c.l.b16 %v191
      %v335 = vunpack.c.l.b16 %v192
      %v336 = vunpack.c.l.b16 %v193
      %v337 = vunpack.c.l.b16 %v194
      %v338 = vunpack.c.l.b16 %v195
      %v339 = vunpack.c.l.b16 %v196
      %v340 = vunpack.c.l.b16 %v197
      %v341 = vunpack.c.l.b16 %v198
      %v342 = vunpack.c.l.b16 %v199
      %v343 = vunpack.c.l.b16 %v200
      %v344 = vunpack.c.l.b16 %v201
      %v345 = vunpack.c.l.b16 %v202
      %v346 = vunpack.c.l.b16 %v203
      %v347 = vunpack.c.l.b16 %v204
      %v348 = vunpack.c.l.b16 %v205
      %v349 = vunpack.c.l.b16 %v206
      %v350 = vunpack.c.l.b16 %v207
      %v351 = vunpack.c.l.b16 %v208
      %v352 = vunpack.c.l.b16 %v209
      %v353 = vunpack.c.l.b16 %v210
      %v354 = vunpack.c.l.b16 %v211
      %v355 = vunpack.c.l.b16 %v212
      %v356 = vunpack.c.l.b16 %v213
      %v357 = vunpack.c.l.b16 %v214
      %v358 = vunpack.c.l.b16 %v215
      %v359 = vunpack.c.l.b16 %v216
      %v360 = vunpack.c.l.b16 %v217
      %v361 = vunpack.c.l.b16 %v218
      %v362 = vunpack.c.l.b16 %v219
      %v363 = vunpack.c.l.b16 %v220
      %v364 = vunpack.c.l.b16 %v221
      %v365 = vunpack.c.l.b16 %v222
      %v366 = vunpack.c.l.b16 %v223
      %v367 = vunpack.c.l.b16 %v224
      %v368 = vunpack.c.l.b16 %v225
      %v369 = vunpack.c.l.b16 %v226
      %v370 = vunpack.c.l.b16 %v227
      %v371 = vunpack.c.l.b16 %v228
      %v372 = vunpack.c.l.b16 %v229
      %v373 = vunpack.c.l.b16 %v230
      %v374 = vunpack.c.l.b16 %v231
      %v375 = vunpack.c.l.b16 %v232
      %v376 = vunpack.c.l.b16 %v233
      %v377 = vunpack.c.l.b16 %v234
      %v378 = vunpack.c.l.b16 %v235
      %v379 = vunpack.c.l.b16 %v236
      %v380 = vunpack.c.l.b16 %v237
      %v381 = vunpack.c.l.b16 %v238
      %v382 = vpack.c.b16 %v319, %v318
      %v383 = vpack.c.b16 %v321, %v320
      %v384 = vpack.c.b16 %v323, %v322
      %v385 = vpack.c.b16 %v325, %v324
      %v386 = vpack.c.b16 %v327, %v326
      %v387 = vpack.c.b16 %v329, %v328
      %v388 = vpack.c.b16 %v331, %v330
      %v389 = vpack.c.b16 %v333, %v332
      %v390 = vpack.c.b16 %v335, %v334
      %v391 = vpack.c.b16 %v337, %v336
      %v392 = vpack.c.b16 %v339, %v338
      %v393 = vpack.c.b16 %v341, %v340
      %v394 = vpack.c.b16 %v343, %v342
      %v395 = vpack.c.b16 %v345, %v344
      %v396 = vpack.c.b16 %v347, %v346
      %v397 = vpack.c.b16 %v349, %v348
      %v398 = vpack.c.b16 %v351, %v350
      %v399 = vpack.c.b16 %v353, %v352
      %v400 = vpack.c.b16 %v355, %v354
      %v401 = vpack.c.b16 %v357, %v356
      %v402 = vpack.c.b16 %v359, %v358
      %v403 = vpack.c.b16 %v361, %v360
      %v404 = vpack.c.b16 %v363, %v362
      %v405 = vpack.c.b16 %v365, %v364
      %v406 = vpack.c.b16 %v367, %v366
      %v407 = vpack.c.b16 %v369, %v368
      %v408 = vpack.c.b16 %v371, %v370
      %v409 = vpack.c.b16 %v373, %v372
      %v410 = vpack.c.b16 %v375, %v374
      %v411 = vpack.c.b16 %v377, %v376
      %v412 = vpack.c.b16 %v379, %v378
      %v413 = vpack.c.b16 %v381, %v380
      %v422 = vunpack.c.l.b16 %v239
      %v423 = vunpack.c.l.b16 %v240
      %v424 = vunpack.c.l.b16 %v241
      %v425 = vunpack.c.l.b16 %v242
      %v426 = vunpack.c.l.b16 %v243
      %v427 = vunpack.c.l.b16 %v244
      %v428 = vunpack.c.l.b16 %v245
      %v429 = vunpack.c.l.b16 %v246
      %v430 = vpack.c.b16 %v423, %v422
      %v431 = vpack.c.b16 %v425, %v424
      %v432 = vpack.c.b16 %v427, %v426
      %v433 = vpack.c.b16 %v429, %v428
      %vm438 = vcmask 523264
      %v440 = vsel %vm438, %v382, 0
      %v443 = vsel %vm438, %v383, 0
      %v446 = vsel %vm438, %v384, 0
      %v449 = vsel %vm438, %v385, 0
      %v452 = vsel %vm438, %v386, 0
      %v455 = vsel %vm438, %v387, 0
      %v458 = vsel %vm438, %v388, 0
      %v461 = vsel %vm438, %v389, 0
      %v464 = vsel %vm438, %v390, 0
      %v467 = vsel %vm438, %v391, 0
      %v470 = vsel %vm438, %v392, 0
      %v473 = vsel %vm438, %v393, 0
      %v476 = vsel %vm438, %v394, 0
      %v479 = vsel %vm438, %v395, 0
      %v482 = vsel %vm438, %v396, 0
      %v485 = vsel %vm438, %v397, 0
      %v488 = vsel %vm438, %v398, 0
      %v491 = vsel %vm438, %v399, 0
      %v494 = vsel %vm438, %v400, 0
      %v497 = vsel %vm438, %v401, 0
      %v500 = vsel %vm438, %v402, 0
      %v503 = vsel %vm438, %v403, 0
      %v506 = vsel %vm438, %v404, 0
      %v509 = vsel %vm438, %v405, 0
      %v512 = vsel %vm438, %v406, 0
      %v515 = vsel %vm438, %v407, 0
      %v518 = vsel %vm438, %v408, 0
      %v521 = vsel %vm438, %v409, 0
      %v524 = vsel %vm438, %v410, 0
      %v527 = vsel %vm438, %v411, 0
      %v530 = vsel %vm438, %v412, 0
      %v533 = vsel %vm438, %v413, 0
      %535 = vmatprep.subr.bf16.mxu0 0
      %536 = vmatpush1.bf16.msra.mxu0 %v430
      %537 = vmatprep.subr.bf16.mxu0 0
      %538 = vmatpush1.bf16.msra.mxu0 %v431
      %539 = vmatprep.subr.bf16.mxu0 0
      %540 = vmatpush1.bf16.msra.mxu0 %v432
      %541 = vmatprep.subr.bf16.mxu0 0
      %542 = vmatpush1.bf16.msra.mxu0 %v433
      %543 = vmatprep.subr.bf16.mxu0 0
      %544 = vmatpush1.bf16.msra.mxu0 0
      %545 = vmatprep.subr.bf16.mxu0 0
      %546 = vmatpush1.bf16.msra.mxu0 0
      %547 = vmatprep.subr.bf16.mxu0 0
      %548 = vmatpush1.bf16.msra.mxu0 0
      %549 = vmatprep.subr.bf16.mxu0 0
      %550 = vmatpush1.bf16.msra.mxu0 0
      %551 = vmatprep.subr.bf16.mxu0 0
      %552 = vmatpush1.bf16.msra.mxu0 0
      %553 = vmatprep.subr.bf16.mxu0 0
      %554 = vmatpush1.bf16.msra.mxu0 0
      %555 = vmatprep.subr.bf16.mxu0 0
      %556 = vmatpush1.bf16.msra.mxu0 0
      %557 = vmatprep.subr.bf16.mxu0 0
      %558 = vmatpush1.bf16.msra.mxu0 0
      %559 = vmatprep.subr.bf16.mxu0 0
      %560 = vmatpush1.bf16.msra.mxu0 0
      %561 = vmatprep.subr.bf16.mxu0 0
      %562 = vmatpush1.bf16.msra.mxu0 0
      %563 = vmatprep.subr.bf16.mxu0 0
      %564 = vmatpush1.bf16.msra.mxu0 0
      %565 = vmatprep.subr.bf16.mxu0 0
      %566 = vmatpush1.bf16.msra.mxu0 0
      %567 = vmatprep.mubr.bf16.mxu0 0
      %568 = vmatmul.mubr.bf16.gmra.mrb[0].mxu0 %v440
      %v569 = vpop.f32.mrb[0].mxu0
      %v570 = vadd.f32 %v252, %v569
      %v571 = vpop.f32.mrb[0].mxu0
      %v572 = vpop.f32.mrb[0].mxu0
      %v573 = vadd.f32 %v252, %v572
      %v574 = vpop.f32.mrb[0].mxu0
      %575 = vmatprep.mubr.bf16.mxu0 0
      %576 = vmatmul.mubr.bf16.gmra.mrb[0].mxu0 %v443
      %v577 = vpop.f32.mrb[0].mxu0
      %v578 = vadd.f32 %v252, %v577
      %v579 = vpop.f32.mrb[0].mxu0
      %v580 = vpop.f32.mrb[0].mxu0
      %v581 = vadd.f32 %v252, %v580
      %v582 = vpop.f32.mrb[0].mxu0
      %583 = vmatprep.mubr.bf16.mxu0 0
      %584 = vmatmul.mubr.bf16.gmra.mrb[0].mxu0 %v446
      %v585 = vpop.f32.mrb[0].mxu0
      %v586 = vadd.f32 %v252, %v585
      %v587 = vpop.f32.mrb[0].mxu0
      %v588 = vpop.f32.mrb[0].mxu0
      %v589 = vadd.f32 %v252, %v588
      %v590 = vpop.f32.mrb[0].mxu0
      %591 = vmatprep.mubr.bf16.mxu0 0
      %592 = vmatmul.mubr.bf16.gmra.mrb[0].mxu0 %v449
      %v593 = vpop.f32.mrb[0].mxu0
      %v594 = vadd.f32 %v252, %v593
      %v595 = vpop.f32.mrb[0].mxu0
      %v596 = vpop.f32.mrb[0].mxu0
      %v597 = vadd.f32 %v252, %v596
      %v598 = vpop.f32.mrb[0].mxu0
      %599 = vmatprep.mubr.bf16.mxu0 0
      %600 = vmatmul.mubr.bf16.gmra.mrb[0].mxu0 %v452
      %v601 = vpop.f32.mrb[0].mxu0
      %v602 = vadd.f32 %v252, %v601
      %v603 = vpop.f32.mrb[0].mxu0
      %v604 = vpop.f32.mrb[0].mxu0
      %v605 = vadd.f32 %v252, %v604
      %v606 = vpop.f32.mrb[0].mxu0
      %607 = vmatprep.mubr.bf16.mxu0 0
      %608 = vmatmul.mubr.bf16.gmra.mrb[0].mxu0 %v455
      %v609 = vpop.f32.mrb[0].mxu0
      %v610 = vadd.f32 %v252, %v609
      %v611 = vpop.f32.mrb[0].mxu0
      %v612 = vpop.f32.mrb[0].mxu0
      %v613 = vadd.f32 %v252, %v612
      %v614 = vpop.f32.mrb[0].mxu0
      %615 = vmatprep.mubr.bf16.mxu0 0
      %616 = vmatmul.mubr.bf16.gmra.mrb[0].mxu0 %v458
      %v617 = vpop.f32.mrb[0].mxu0
      %v618 = vadd.f32 %v252, %v617
      %v619 = vpop.f32.mrb[0].mxu0
      %v620 = vpop.f32.mrb[0].mxu0
      %v621 = vadd.f32 %v252, %v620
      %v622 = vpop.f32.mrb[0].mxu0
      %623 = vmatprep.mubr.bf16.mxu0 0
      %624 = vmatmul.mubr.bf16.gmra.mrb[0].mxu0 %v461
      %v625 = vpop.f32.mrb[0].mxu0
      %v626 = vadd.f32 %v252, %v625
      %v627 = vpop.f32.mrb[0].mxu0
      %v628 = vpop.f32.mrb[0].mxu0
      %v629 = vadd.f32 %v252, %v628
      %v630 = vpop.f32.mrb[0].mxu0
      %631 = vmatprep.mubr.bf16.mxu0 0
      %632 = vmatmul.mubr.bf16.gmra.mrb[0].mxu0 %v464
      %v633 = vpop.f32.mrb[0].mxu0
      %v634 = vadd.f32 %v252, %v633
      %v635 = vpop.f32.mrb[0].mxu0
      %v636 = vpop.f32.mrb[0].mxu0
      %v637 = vadd.f32 %v252, %v636
      %v638 = vpop.f32.mrb[0].mxu0
      %639 = vmatprep.mubr.bf16.mxu0 0
      %640 = vmatmul.mubr.bf16.gmra.mrb[0].mxu0 %v467
      %v641 = vpop.f32.mrb[0].mxu0
      %v642 = vadd.f32 %v252, %v641
      %v643 = vpop.f32.mrb[0].mxu0
      %v644 = vpop.f32.mrb[0].mxu0
      %v645 = vadd.f32 %v252, %v644
      %v646 = vpop.f32.mrb[0].mxu0
      %647 = vmatprep.mubr.bf16.mxu0 0
      %648 = vmatmul.mubr.bf16.gmra.mrb[0].mxu0 %v470
      %v649 = vpop.f32.mrb[0].mxu0
      %v650 = vadd.f32 %v252, %v649
      %v651 = vpop.f32.mrb[0].mxu0
      %v652 = vpop.f32.mrb[0].mxu0
      %v653 = vadd.f32 %v252, %v652
      %v654 = vpop.f32.mrb[0].mxu0
      %655 = vmatprep.mubr.bf16.mxu0 0
      %656 = vmatmul.mubr.bf16.gmra.mrb[0].mxu0 %v473
      %v657 = vpop.f32.mrb[0].mxu0
      %v658 = vadd.f32 %v252, %v657
      %v659 = vpop.f32.mrb[0].mxu0
      %v660 = vpop.f32.mrb[0].mxu0
      %v661 = vadd.f32 %v252, %v660
      %v662 = vpop.f32.mrb[0].mxu0
      %663 = vmatprep.mubr.bf16.mxu0 0
      %664 = vmatmul.mubr.bf16.gmra.mrb[0].mxu0 %v476
      %v665 = vpop.f32.mrb[0].mxu0
      %v666 = vadd.f32 %v252, %v665
      %v667 = vpop.f32.mrb[0].mxu0
      %v668 = vpop.f32.mrb[0].mxu0
      %v669 = vadd.f32 %v252, %v668
      %v670 = vpop.f32.mrb[0].mxu0
      %671 = vmatprep.mubr.bf16.mxu0 0
      %672 = vmatmul.mubr.bf16.gmra.mrb[0].mxu0 %v479
      %v673 = vpop.f32.mrb[0].mxu0
      %v674 = vadd.f32 %v252, %v673
      %v675 = vpop.f32.mrb[0].mxu0
      %v676 = vpop.f32.mrb[0].mxu0
      %v677 = vadd.f32 %v252, %v676
      %v678 = vpop.f32.mrb[0].mxu0
      %679 = vmatprep.mubr.bf16.mxu0 0
      %680 = vmatmul.mubr.bf16.gmra.mrb[0].mxu0 %v482
      %v681 = vpop.f32.mrb[0].mxu0
      %v682 = vadd.f32 %v252, %v681
      %v683 = vpop.f32.mrb[0].mxu0
      %v684 = vpop.f32.mrb[0].mxu0
      %v685 = vadd.f32 %v252, %v684
      %v686 = vpop.f32.mrb[0].mxu0
      %687 = vmatprep.mubr.bf16.mxu0 0
      %688 = vmatmul.mubr.bf16.gmra.mrb[0].mxu0 %v485
      %v689 = vpop.f32.mrb[0].mxu0
      %v690 = vadd.f32 %v252, %v689
      %v691 = vpop.f32.mrb[0].mxu0
      %v692 = vpop.f32.mrb[0].mxu0
      %v693 = vadd.f32 %v252, %v692
      %v694 = vpop.f32.mrb[0].mxu0
      %695 = vmatprep.mubr.bf16.mxu0 0
      %696 = vmatmul.mubr.bf16.gmra.mrb[0].mxu0 %v488
      %v697 = vpop.f32.mrb[0].mxu0
      %v698 = vadd.f32 %v252, %v697
      %v699 = vpop.f32.mrb[0].mxu0
      %v700 = vpop.f32.mrb[0].mxu0
      %v701 = vadd.f32 %v252, %v700
      %v702 = vpop.f32.mrb[0].mxu0
      %703 = vmatprep.mubr.bf16.mxu0 0
      %704 = vmatmul.mubr.bf16.gmra.mrb[0].mxu0 %v491
      %v705 = vpop.f32.mrb[0].mxu0
      %v706 = vadd.f32 %v252, %v705
      %v707 = vpop.f32.mrb[0].mxu0
      %v708 = vpop.f32.mrb[0].mxu0
      %v709 = vadd.f32 %v252, %v708
      %v710 = vpop.f32.mrb[0].mxu0
      %711 = vmatprep.mubr.bf16.mxu0 0
      %712 = vmatmul.mubr.bf16.gmra.mrb[0].mxu0 %v494
      %v713 = vpop.f32.mrb[0].mxu0
      %v714 = vadd.f32 %v252, %v713
      %v715 = vpop.f32.mrb[0].mxu0
      %v716 = vpop.f32.mrb[0].mxu0
      %v717 = vadd.f32 %v252, %v716
      %v718 = vpop.f32.mrb[0].mxu0
      %719 = vmatprep.mubr.bf16.mxu0 0
      %720 = vmatmul.mubr.bf16.gmra.mrb[0].mxu0 %v497
      %v721 = vpop.f32.mrb[0].mxu0
      %v722 = vadd.f32 %v252, %v721
      %v723 = vpop.f32.mrb[0].mxu0
      %v724 = vpop.f32.mrb[0].mxu0
      %v725 = vadd.f32 %v252, %v724
      %v726 = vpop.f32.mrb[0].mxu0
      %727 = vmatprep.mubr.bf16.mxu0 0
      %728 = vmatmul.mubr.bf16.gmra.mrb[0].mxu0 %v500
      %v729 = vpop.f32.mrb[0].mxu0
      %v730 = vadd.f32 %v252, %v729
      %v731 = vpop.f32.mrb[0].mxu0
      %v732 = vpop.f32.mrb[0].mxu0
      %v733 = vadd.f32 %v252, %v732
      %v734 = vpop.f32.mrb[0].mxu0
      %735 = vmatprep.mubr.bf16.mxu0 0
      %736 = vmatmul.mubr.bf16.gmra.mrb[0].mxu0 %v503
      %v737 = vpop.f32.mrb[0].mxu0
      %v738 = vadd.f32 %v252, %v737
      %v739 = vpop.f32.mrb[0].mxu0
      %v740 = vpop.f32.mrb[0].mxu0
      %v741 = vadd.f32 %v252, %v740
      %v742 = vpop.f32.mrb[0].mxu0
      %743 = vmatprep.mubr.bf16.mxu0 0
      %744 = vmatmul.mubr.bf16.gmra.mrb[0].mxu0 %v506
      %v745 = vpop.f32.mrb[0].mxu0
      %v746 = vadd.f32 %v252, %v745
      %v747 = vpop.f32.mrb[0].mxu0
      %v748 = vpop.f32.mrb[0].mxu0
      %v749 = vadd.f32 %v252, %v748
      %v750 = vpop.f32.mrb[0].mxu0
      %751 = vmatprep.mubr.bf16.mxu0 0
      %752 = vmatmul.mubr.bf16.gmra.mrb[0].mxu0 %v509
      %v753 = vpop.f32.mrb[0].mxu0
      %v754 = vadd.f32 %v252, %v753
      %v755 = vpop.f32.mrb[0].mxu0
      %v756 = vpop.f32.mrb[0].mxu0
      %v757 = vadd.f32 %v252, %v756
      %v758 = vpop.f32.mrb[0].mxu0
      %759 = vmatprep.mubr.bf16.mxu0 0
      %760 = vmatmul.mubr.bf16.gmra.mrb[0].mxu0 %v512
      %v761 = vpop.f32.mrb[0].mxu0
      %v762 = vadd.f32 %v252, %v761
      %v763 = vpop.f32.mrb[0].mxu0
      %v764 = vpop.f32.mrb[0].mxu0
      %v765 = vadd.f32 %v252, %v764
      %v766 = vpop.f32.mrb[0].mxu0
      %767 = vmatprep.mubr.bf16.mxu0 0
      %768 = vmatmul.mubr.bf16.gmra.mrb[0].mxu0 %v515
      %v769 = vpop.f32.mrb[0].mxu0
      %v770 = vadd.f32 %v252, %v769
      %v771 = vpop.f32.mrb[0].mxu0
      %v772 = vpop.f32.mrb[0].mxu0
      %v773 = vadd.f32 %v252, %v772
      %v774 = vpop.f32.mrb[0].mxu0
      %775 = vmatprep.mubr.bf16.mxu0 0
      %776 = vmatmul.mubr.bf16.gmra.mrb[0].mxu0 %v518
      %v777 = vpop.f32.mrb[0].mxu0
      %v778 = vadd.f32 %v252, %v777
      %v779 = vpop.f32.mrb[0].mxu0
      %v780 = vpop.f32.mrb[0].mxu0
      %v781 = vadd.f32 %v252, %v780
      %v782 = vpop.f32.mrb[0].mxu0
      %783 = vmatprep.mubr.bf16.mxu0 0
      %784 = vmatmul.mubr.bf16.gmra.mrb[0].mxu0 %v521
      %v785 = vpop.f32.mrb[0].mxu0
      %v786 = vadd.f32 %v252, %v785
      %v787 = vpop.f32.mrb[0].mxu0
      %v788 = vpop.f32.mrb[0].mxu0
      %v789 = vadd.f32 %v252, %v788
      %v790 = vpop.f32.mrb[0].mxu0
      %791 = vmatprep.mubr.bf16.mxu0 0
      %792 = vmatmul.mubr.bf16.gmra.mrb[0].mxu0 %v524
      %v793 = vpop.f32.mrb[0].mxu0
      %v794 = vadd.f32 %v252, %v793
      %v795 = vpop.f32.mrb[0].mxu0
      %v796 = vpop.f32.mrb[0].mxu0
      %v797 = vadd.f32 %v252, %v796
      %v798 = vpop.f32.mrb[0].mxu0
      %799 = vmatprep.mubr.bf16.mxu0 0
      %800 = vmatmul.mubr.bf16.gmra.mrb[0].mxu0 %v527
      %v801 = vpop.f32.mrb[0].mxu0
      %v802 = vadd.f32 %v252, %v801
      %v803 = vpop.f32.mrb[0].mxu0
      %v804 = vpop.f32.mrb[0].mxu0
      %v805 = vadd.f32 %v252, %v804
      %v806 = vpop.f32.mrb[0].mxu0
      %807 = vmatprep.mubr.bf16.mxu0 0
      %808 = vmatmul.mubr.bf16.gmra.mrb[0].mxu0 %v530
      %v809 = vpop.f32.mrb[0].mxu0
      %v810 = vadd.f32 %v252, %v809
      %v811 = vpop.f32.mrb[0].mxu0
      %v812 = vpop.f32.mrb[0].mxu0
      %v813 = vadd.f32 %v252, %v812
      %v814 = vpop.f32.mrb[0].mxu0
      %815 = vmatprep.mubr.bf16.mxu0 0
      %816 = vmatmul.mubr.bf16.gmra.mrb[0].mxu0 %v533
      %v817 = vpop.f32.mrb[0].mxu0
      %v818 = vadd.f32 %v252, %v817
      %v819 = vpop.f32.mrb[0].mxu0
      %v820 = vpop.f32.mrb[0].mxu0
      %v821 = vadd.f32 %v252, %v820
      %v822 = vpop.f32.mrb[0].mxu0
      %823 = vdwg.mxu0
      %v824 = vpack.c.bf16 %v573, %v570
      %v825 = vpack.c.bf16 %v581, %v578
      %v826 = vpack.c.bf16 %v589, %v586
      %v827 = vpack.c.bf16 %v597, %v594
      %v828 = vpack.c.bf16 %v605, %v602
      %v829 = vpack.c.bf16 %v613, %v610
      %v830 = vpack.c.bf16 %v621, %v618
      %v831 = vpack.c.bf16 %v629, %v626
      %v832 = vpack.c.bf16 %v637, %v634
      %v833 = vpack.c.bf16 %v645, %v642
      %v834 = vpack.c.bf16 %v653, %v650
      %v835 = vpack.c.bf16 %v661, %v658
      %v836 = vpack.c.bf16 %v669, %v666
      %v837 = vpack.c.bf16 %v677, %v674
      %v838 = vpack.c.bf16 %v685, %v682
      %v839 = vpack.c.bf16 %v693, %v690
      %v840 = vpack.c.bf16 %v701, %v698
      %v841 = vpack.c.bf16 %v709, %v706
      %v842 = vpack.c.bf16 %v717, %v714
      %v843 = vpack.c.bf16 %v725, %v722
      %v844 = vpack.c.bf16 %v733, %v730
      %v845 = vpack.c.bf16 %v741, %v738
      %v846 = vpack.c.bf16 %v749, %v746
      %v847 = vpack.c.bf16 %v757, %v754
      %v848 = vpack.c.bf16 %v765, %v762
      %v849 = vpack.c.bf16 %v773, %v770
      %v850 = vpack.c.bf16 %v781, %v778
      %v851 = vpack.c.bf16 %v789, %v786
      %v852 = vpack.c.bf16 %v797, %v794
      %v853 = vpack.c.bf16 %v805, %v802
      %v854 = vpack.c.bf16 %v813, %v810
      %v855 = vpack.c.bf16 %v821, %v818
      %v888 = vunpack.c.l.b16 %v824
      %v889 = vunpack.c.h.b16 %v824
      %v890 = vunpack.c.l.b16 %v825
      %v891 = vunpack.c.h.b16 %v825
      %v892 = vunpack.c.l.b16 %v826
      %v893 = vunpack.c.h.b16 %v826
      %v894 = vunpack.c.l.b16 %v827
      %v895 = vunpack.c.h.b16 %v827
      %v896 = vunpack.c.l.b16 %v828
      %v897 = vunpack.c.h.b16 %v828
      %v898 = vunpack.c.l.b16 %v829
      %v899 = vunpack.c.h.b16 %v829
      %v900 = vunpack.c.l.b16 %v830
      %v901 = vunpack.c.h.b16 %v830
      %v902 = vunpack.c.l.b16 %v831
      %v903 = vunpack.c.h.b16 %v831
      %v904 = vunpack.c.l.b16 %v832
      %v905 = vunpack.c.h.b16 %v832
      %v906 = vunpack.c.l.b16 %v833
      %v907 = vunpack.c.h.b16 %v833
      %v908 = vunpack.c.l.b16 %v834
      %v909 = vunpack.c.h.b16 %v834
      %v910 = vunpack.c.l.b16 %v835
      %v911 = vunpack.c.h.b16 %v835
      %v912 = vunpack.c.l.b16 %v836
      %v913 = vunpack.c.h.b16 %v836
      %v914 = vunpack.c.l.b16 %v837
      %v915 = vunpack.c.h.b16 %v837
      %v916 = vunpack.c.l.b16 %v838
      %v917 = vunpack.c.h.b16 %v838
      %v918 = vunpack.c.l.b16 %v839
      %v919 = vunpack.c.h.b16 %v839
      %v920 = vunpack.c.l.b16 %v840
      %v921 = vunpack.c.h.b16 %v840
      %v922 = vunpack.c.l.b16 %v841
      %v923 = vunpack.c.h.b16 %v841
      %v924 = vunpack.c.l.b16 %v842
      %v925 = vunpack.c.h.b16 %v842
      %v926 = vunpack.c.l.b16 %v843
      %v927 = vunpack.c.h.b16 %v843
      %v928 = vunpack.c.l.b16 %v844
      %v929 = vunpack.c.h.b16 %v844
      %v930 = vunpack.c.l.b16 %v845
      %v931 = vunpack.c.h.b16 %v845
      %v932 = vunpack.c.l.b16 %v846
      %v933 = vunpack.c.h.b16 %v846
      %v934 = vunpack.c.l.b16 %v847
      %v935 = vunpack.c.h.b16 %v847
      %v936 = vunpack.c.l.b16 %v848
      %v937 = vunpack.c.h.b16 %v848
      %v938 = vunpack.c.l.b16 %v849
      %v939 = vunpack.c.h.b16 %v849
      %v940 = vunpack.c.l.b16 %v850
      %v941 = vunpack.c.h.b16 %v850
      %v942 = vunpack.c.l.b16 %v851
      %v943 = vunpack.c.h.b16 %v851
      %v944 = vunpack.c.l.b16 %v852
      %v945 = vunpack.c.h.b16 %v852
      %v946 = vunpack.c.l.b16 %v853
      %v947 = vunpack.c.h.b16 %v853
      %v948 = vunpack.c.l.b16 %v854
      %v949 = vunpack.c.h.b16 %v854
      %v950 = vunpack.c.l.b16 %v855
      %v951 = vunpack.c.h.b16 %v855
      %v952 = vpack.c.b16 %v888, %v888
      %v953 = vpack.c.b16 %v889, %v889
      %v954 = vpack.c.b16 %v890, %v890
      %v955 = vpack.c.b16 %v891, %v891
      %v956 = vpack.c.b16 %v892, %v892
      %v957 = vpack.c.b16 %v893, %v893
      %v958 = vpack.c.b16 %v894, %v894
      %v959 = vpack.c.b16 %v895, %v895
      %v960 = vpack.c.b16 %v896, %v896
      %v961 = vpack.c.b16 %v897, %v897
      %v962 = vpack.c.b16 %v898, %v898
      %v963 = vpack.c.b16 %v899, %v899
      %v964 = vpack.c.b16 %v900, %v900
      %v965 = vpack.c.b16 %v901, %v901
      %v966 = vpack.c.b16 %v902, %v902
      %v967 = vpack.c.b16 %v903, %v903
      %v968 = vpack.c.b16 %v904, %v904
      %v969 = vpack.c.b16 %v905, %v905
      %v970 = vpack.c.b16 %v906, %v906
      %v971 = vpack.c.b16 %v907, %v907
      %v972 = vpack.c.b16 %v908, %v908
      %v973 = vpack.c.b16 %v909, %v909
      %v974 = vpack.c.b16 %v910, %v910
      %v975 = vpack.c.b16 %v911, %v911
      %v976 = vpack.c.b16 %v912, %v912
      %v977 = vpack.c.b16 %v913, %v913
      %v978 = vpack.c.b16 %v914, %v914
      %v979 = vpack.c.b16 %v915, %v915
      %v980 = vpack.c.b16 %v916, %v916
      %v981 = vpack.c.b16 %v917, %v917
      %v982 = vpack.c.b16 %v918, %v918
      %v983 = vpack.c.b16 %v919, %v919
      %v984 = vpack.c.b16 %v920, %v920
      %v985 = vpack.c.b16 %v921, %v921
      %v986 = vpack.c.b16 %v922, %v922
      %v987 = vpack.c.b16 %v923, %v923
      %v988 = vpack.c.b16 %v924, %v924
      %v989 = vpack.c.b16 %v925, %v925
      %v990 = vpack.c.b16 %v926, %v926
      %v991 = vpack.c.b16 %v927, %v927
      %v992 = vpack.c.b16 %v928, %v928
      %v993 = vpack.c.b16 %v929, %v929
      %v994 = vpack.c.b16 %v930, %v930
      %v995 = vpack.c.b16 %v931, %v931
      %v996 = vpack.c.b16 %v932, %v932
      %v997 = vpack.c.b16 %v933, %v933
      %v998 = vpack.c.b16 %v934, %v934
      %v999 = vpack.c.b16 %v935, %v935
      %v1000 = vpack.c.b16 %v936, %v936
      %v1001 = vpack.c.b16 %v937, %v937
      %v1002 = vpack.c.b16 %v938, %v938
      %v1003 = vpack.c.b16 %v939, %v939
      %v1004 = vpack.c.b16 %v940, %v940
      %v1005 = vpack.c.b16 %v941, %v941
      %v1006 = vpack.c.b16 %v942, %v942
      %v1007 = vpack.c.b16 %v943, %v943
      %v1008 = vpack.c.b16 %v944, %v944
      %v1009 = vpack.c.b16 %v945, %v945
      %v1010 = vpack.c.b16 %v946, %v946
      %v1011 = vpack.c.b16 %v947, %v947
      %v1012 = vpack.c.b16 %v948, %v948
      %v1013 = vpack.c.b16 %v949, %v949
      %v1014 = vpack.c.b16 %v950, %v950
      %v1015 = vpack.c.b16 %v951, %v951
      %1080 = vst [vmem:[%s172] sm:$0xf] %v952
      %1081 = vst [vmem:[%s172 + $0x4] sm:$0xf] %v953
      %1082 = vst [vmem:[%s172 + $0x8] sm:$0xf] %v954
      %1083 = vst [vmem:[%s172 + $0xc] sm:$0xf] %v955
      %1084 = vst [vmem:[%s172 + $0x10] sm:$0xf] %v956
      %1085 = vst [vmem:[%s172 + $0x14] sm:$0xf] %v957
      %1086 = vst [vmem:[%s172 + $0x18] sm:$0xf] %v958
      %1087 = vst [vmem:[%s172 + $0x1c] sm:$0xf] %v959
      %1088 = vst [vmem:[%s172 + $0x20] sm:$0xf] %v960
      %1089 = vst [vmem:[%s172 + $0x24] sm:$0xf] %v961
      %1090 = vst [vmem:[%s172 + $0x28] sm:$0xf] %v962
      %1091 = vst [vmem:[%s172 + $0x2c] sm:$0xf] %v963
      %1092 = vst [vmem:[%s172 + $0x30] sm:$0xf] %v964
      %1093 = vst [vmem:[%s172 + $0x34] sm:$0xf] %v965
      %1094 = vst [vmem:[%s172 + $0x38] sm:$0xf] %v966
      %1095 = vst [vmem:[%s172 + $0x3c] sm:$0xf] %v967
      %1096 = vst [vmem:[%s172 + $0x40] sm:$0xf] %v968
      %1097 = vst [vmem:[%s172 + $0x44] sm:$0xf] %v969
      %1098 = vst [vmem:[%s172 + $0x48] sm:$0xf] %v970
      %1099 = vst [vmem:[%s172 + $0x4c] sm:$0xf] %v971
      %1100 = vst [vmem:[%s172 + $0x50] sm:$0xf] %v972
      %1101 = vst [vmem:[%s172 + $0x54] sm:$0xf] %v973
      %1102 = vst [vmem:[%s172 + $0x58] sm:$0xf] %v974
      %1103 = vst [vmem:[%s172 + $0x5c] sm:$0xf] %v975
      %1104 = vst [vmem:[%s172 + $0x60] sm:$0xf] %v976
      %1105 = vst [vmem:[%s172 + $0x64] sm:$0xf] %v977
      %1106 = vst [vmem:[%s172 + $0x68] sm:$0xf] %v978
      %1107 = vst [vmem:[%s172 + $0x6c] sm:$0xf] %v979
      %1108 = vst [vmem:[%s172 + $0x70] sm:$0xf] %v980
      %1109 = vst [vmem:[%s172 + $0x74] sm:$0xf] %v981
      %1110 = vst [vmem:[%s172 + $0x78] sm:$0xf] %v982
      %1111 = vst [vmem:[%s172 + $0x7c] sm:$0xf] %v983
      %1112 = vst [vmem:[%s172 + $0x80] sm:$0xf] %v984
      %1113 = vst [vmem:[%s172 + $0x84] sm:$0xf] %v985
      %1114 = vst [vmem:[%s172 + $0x88] sm:$0xf] %v986
      %1115 = vst [vmem:[%s172 + $0x8c] sm:$0xf] %v987
      %1116 = vst [vmem:[%s172 + $0x90] sm:$0xf] %v988
      %1117 = vst [vmem:[%s172 + $0x94] sm:$0xf] %v989
      %1118 = vst [vmem:[%s172 + $0x98] sm:$0xf] %v990
      %1119 = vst [vmem:[%s172 + $0x9c] sm:$0xf] %v991
      %1120 = vst [vmem:[%s172 + $0xa0] sm:$0xf] %v992
      %1121 = vst [vmem:[%s172 + $0xa4] sm:$0xf] %v993
      %1122 = vst [vmem:[%s172 + $0xa8] sm:$0xf] %v994
      %1123 = vst [vmem:[%s172 + $0xac] sm:$0xf] %v995
      %1124 = vst [vmem:[%s172 + $0xb0] sm:$0xf] %v996
      %1125 = vst [vmem:[%s172 + $0xb4] sm:$0xf] %v997
      %1126 = vst [vmem:[%s172 + $0xb8] sm:$0xf] %v998
      %1127 = vst [vmem:[%s172 + $0xbc] sm:$0xf] %v999
      %1128 = vst [vmem:[%s172 + $0xc0] sm:$0xf] %v1000
      %1129 = vst [vmem:[%s172 + $0xc4] sm:$0xf] %v1001
      %1130 = vst [vmem:[%s172 + $0xc8] sm:$0xf] %v1002
      %1131 = vst [vmem:[%s172 + $0xcc] sm:$0xf] %v1003
      %1132 = vst [vmem:[%s172 + $0xd0] sm:$0xf] %v1004
      %1133 = vst [vmem:[%s172 + $0xd4] sm:$0xf] %v1005
      %1134 = vst [vmem:[%s172 + $0xd8] sm:$0xf] %v1006
      %1135 = vst [vmem:[%s172 + $0xdc] sm:$0xf] %v1007
      %1136 = vst [vmem:[%s172 + $0xe0] sm:$0xf] %v1008
      %1137 = vst [vmem:[%s172 + $0xe4] sm:$0xf] %v1009
      %1138 = vst [vmem:[%s172 + $0xe8] sm:$0xf] %v1010
      %1139 = vst [vmem:[%s172 + $0xec] sm:$0xf] %v1011
      %1140 = vst [vmem:[%s172 + $0xf0] sm:$0xf] %v1012
      %1141 = vst [vmem:[%s172 + $0xf4] sm:$0xf] %v1013
      %1142 = vst [vmem:[%s172 + $0xf8] sm:$0xf] %v1014
      %1143 = vst [vmem:[%s172 + $0xfc] sm:$0xf] %v1015
      %s1144 = smul.u32 64, %s14
      %p1145 = scmp.lt.s32.totalorder %s1144, 127
      %s1146 = scalar_select %p1145, %s1144, 127
      %s1147 = smul.addr %s1146, 4
      %s1148 = scalar_lea.vmem %s3, %s1147
      // Predicated region
      $region33: #{hourglass_forward.11} parent=31 // pred_check
        %p1149 = pneg %p100
      $region34: #{hourglass_forward.11} parent=31 // pred_check_branch
        %1151 = sbr.rel (%p1149) target = $region36
      $region35: #{hourglass_forward.11} parent=31 // pred_region
        %s1152 = smul.u32 64, %s14
      $region36: #{hourglass_forward.11} parent=31 // pred_fallthru
        _
    $region32: #{hourglass_forward.11} parent=5 // pred_fallthru
      _
    %p1153 = scmp.le.s32.totalorder 2, %s9
    // Predicated region
    $region37: #{hourglass_forward.11} parent=5 // pred_check
      %p1154 = pneg %p1153
    $region38: #{hourglass_forward.11} parent=5 // pred_check_branch
      %1156 = sbr.rel (%p1154) target = $region40
    $region39: #{hourglass_forward.11} parent=5 // pred_region
      %s1157 = ssub.s32 %s9, 2
      // Predicated region
      $region41: #{hourglass_forward.11} parent=39 // pred_check
        %p1158 = pneg %p106
      $region42: #{hourglass_forward.11} parent=39 // pred_check_branch
        %1160 = sbr.rel (%p1158) target = $region44
      $region43: #{hourglass_forward.11} parent=39 // pred_region
        %s1161 = smul.u32 64, %s15
        %p1162 = scmp.lt.s32.totalorder %s1161, 127
        %s1163 = scalar_select %p1162, %s1161, 127
        %s1164 = smul.addr %s1163, 4
        %s1165 = scalar_lea.vmem %s3, %s1164
      $region44: #{hourglass_forward.11} parent=39 // pred_fallthru
        _
    $region40: #{hourglass_forward.11} parent=5 // pred_fallthru
      _
  $region6: #{hourglass_forward.11} parent=0 // loop_footer
    %s13 = sadd.s32 1, %s9
  $region7: #{hourglass_forward.11} parent=0 // loop_footer_branch
    %8 = sbr.rel target = $region3
  $region8: #{hourglass_forward.11} parent=0 // loop_exit
    _

</llo_original>
